<compile_context>
chip_gen: v6e
topology: v6e:2x2x1
jax: 0.10.0
libtpu: 0.0.40
codegen_flags: <defaults>
</compile_context>

<pallas_src>
import jax
import jax.numpy as jnp
from jax.experimental import pallas as pl
from jax.experimental.pallas import tpu as pltpu

EPS = 1e-5
HW = 9                 # 3x3 board
C_IN = 128
K_FLAT = C_IN * HW     # 1152
NV = 27                # value-conv flat width (3 ch * 9 cells)
NV_PAD = 32            # value lanes padded to 32
NP = 32 * HW           # policy-conv flat width (288)
N_FUSED = NV_PAD + NP  # 320


def _round_up(x, m):
    return (x + m - 1) // m * m


def outblock_kernel(
    x_ref,      # (TB, 1152) bf16   NCHW-flat input block, flat index = c*9 + hw
    wc_ref,     # (1152, 320) bf16  fused value|policy 1x1 conv (+BN), hw-expanded
    bc_ref,     # (1, 320)   f32    fused conv bias
    w1_ref,     # (32, 32)   f32    value fc1 (rows 27..31 zero)
    b1_ref,     # (1, 32)    f32
    wf_ref,     # (320, 16)  f32    policy fc -> lanes 0..8 (rows 0..31 zero)
    w2_ref,     # (32, 16)   f32    value fc2 -> lane 9
    bo_ref,     # (1, 16)    f32    merged final bias
    out_ref,    # (TB, 16)   f32    lanes 0..8 policy probs, lane 9 value, 10..15 zero
):
    # ---- fused 1x1 convs (+BN) for both heads: one bf16 matmul, f32 acc -----
    slab = jnp.dot(x_ref[...], wc_ref[...],
                   preferred_element_type=jnp.float32) + bc_ref[...]    # (TB, 320)
    slab = jnp.maximum(slab, 0.0)

    # ---- value head: fc1 -> relu  (slab lanes 0..26 are the value conv) -----
    vh = jnp.dot(slab[:, :NV_PAD], w1_ref[...],
                 preferred_element_type=jnp.float32) + b1_ref[...]      # (TB, 32)
    vh = jnp.maximum(vh, 0.0)

    # ---- merged final projection into one 16-lane slab -----------------------
    # lanes 0..8: policy logits (policy part of slab via wf), lane 9: value pre-tanh
    z = (jnp.dot(slab, wf_ref[...], preferred_element_type=jnp.float32)
         + jnp.dot(vh, w2_ref[...], preferred_element_type=jnp.float32)
         + bo_ref[...])                                                 # (TB, 16)

    lane = jax.lax.broadcasted_iota(jnp.int32, z.shape, 1)
    is_pol = lane < HW

    # softmax over the 9 policy lanes (logsoftmax(dim=1).exp() == softmax), f32
    zl = jnp.where(is_pol, z, jnp.float32(-1e30))
    m = jnp.max(zl, axis=-1, keepdims=True)
    e = jnp.where(is_pol, jnp.exp(zl - m), 0.0)
    s = jnp.sum(e, axis=-1, keepdims=True)
    inv = pl.reciprocal(s, approx=True)        # EUP seed (free slot) ...
    inv = inv * (2.0 - s * inv)                # ... + 1 Newton step -> ~f32 exact
    probs = e * inv

    val = jnp.tanh(z)                          # only lane 9 is kept

    out_ref[...] = jnp.where(is_pol, probs,
                             jnp.where(lane == HW, val, 0.0))


def _pick_tb(B, tb_max):
    """Pick the batch tile.

    Preference order:
      1) largest multiple-of-8 divisor of B giving >= 2 grid steps (v7x: both
         TensorCores busy; no padding, no ragged tail),
      2) largest multiple-of-8 divisor of B (single step),
      3) B itself as a single full-dim block (tiny / odd batches, no padding),
      4) rare fallback: tb_max with a zero-padded tail.
    Returns (tb, pad_rows)."""
    tb_max = max(8, int(tb_max))
    best_half, best_full = None, None
    for t in range(8, min(tb_max, B) + 1, 8):
        if B % t == 0:
            best_full = t
            if 2 * t <= B:
                best_half = t
    if best_half is not None:
        return best_half, 0
    if best_full is not None:
        return best_full, 0
    if B <= tb_max:
        return B, 0
    return tb_max, (-B) % tb_max


def outblock_forward(x_nchw, kernel_params, tb=1024):
    """x_nchw: (B, 128, 3, 3) float32 (PyTorch layout). Returns (p (B,9), v (B,1))."""
    B = x_nchw.shape[0]
    # Pure view (C-major flatten, flat index = c*9+hw) + bf16 cast: the only
    # large HBM stream is halved; no NCHW->NHWC transpose pass over HBM.
    x_flat = x_nchw.reshape(B, K_FLAT).astype(jnp.bfloat16)

    tb, pad = _pick_tb(B, tb)
    if pad:
        # Rare fallback only (B > tile and no multiple-of-8 divisor of B).
        x_flat = jnp.pad(x_flat, ((0, pad), (0, 0)))
    b_tot = B + pad

    wc, bc, w1, b1, wf, w2, bo = kernel_params
    weights = (wc, bc, w1, b1, wf, w2, bo)

    def const_spec(a, single_buffer):
        if single_buffer:
            # Constant index_map -> single buffer is enough; saves VMEM.
            return pl.BlockSpec(a.shape, lambda i: (0,) * a.ndim,
                                pipeline_mode=pl.Buffered(1))
        return pl.BlockSpec(a.shape, lambda i: (0,) * a.ndim)

    def build(single_buffer):
        return pl.pallas_call(
            outblock_kernel,
            out_shape=jax.ShapeDtypeStruct((b_tot, 16), jnp.float32),
            grid_spec=pltpu.PrefetchScalarGridSpec(
                num_scalar_prefetch=0,
                grid=(b_tot // tb,),
                in_specs=[pl.BlockSpec((tb, K_FLAT), lambda i: (i, 0))]
                         + [const_spec(a, single_buffer) for a in weights],
                out_specs=pl.BlockSpec((tb, 16), lambda i: (i, 0)),
            ),
            compiler_params=pltpu.CompilerParams(
                dimension_semantics=("parallel",),
                vmem_limit_bytes=32 * 1024 * 1024),
        )

    try:
        out = build(True)(x_flat, *weights)
    except Exception:
        # This Pallas/libtpu build rejected Buffered(1); default double-buffering
        # is still well within VMEM at tb<=1024 with bf16 x.
        out = build(False)(x_flat, *weights)

    return out[:B, :HW], out[:B, HW:HW + 1]


def make_params(key):
    """Deterministic synthetic parameters with PyTorch shapes, transformed to the
    kernel layout (BN folded, convs hw-expanded + fused, final FCs merged)."""
    ks = jax.random.split(key, 20)
    u = lambda k, s, lo=-0.1, hi=0.1: jax.random.uniform(k, s, jnp.float32, lo, hi)

    # torch-shaped raw params
    Wcv = u(ks[0], (3, 128));   bcv = u(ks[1], (3,))
    gv = u(ks[2], (3,), 0.5, 1.5); bev = u(ks[3], (3,))
    mv = u(ks[4], (3,));        vv = u(ks[5], (3,), 0.5, 1.5)
    W1 = u(ks[6], (32, 27));    b1 = u(ks[7], (32,))
    W2 = u(ks[8], (1, 32));     b2 = u(ks[9], (1,))
    Wcp = u(ks[10], (32, 128)); bcp = u(ks[11], (32,))
    gp = u(ks[12], (32,), 0.5, 1.5); bep = u(ks[13], (32,))
    mp = u(ks[14], (32,));      vp = u(ks[15], (32,), 0.5, 1.5)
    Wf = u(ks[16], (9, 288));   bf = u(ks[17], (9,))

    torch_params = (Wcv, bcv, gv, bev, mv, vv, W1, b1, W2, b2,
                    Wcp, bcp, gp, bep, mp, vp, Wf, bf)

    # ---- fold BN (inference semantics) into the 1x1 convs
    sv = gv / jnp.sqrt(vv + EPS)
    Wv_f = Wcv * sv[:, None]                       # (3, 128)
    bv_f = bcv * sv + bev - mv * sv                # (3,)
    sp = gp / jnp.sqrt(vp + EPS)
    Wp_f = Wcp * sp[:, None]                       # (32, 128)
    bp_f = bcp * sp + bep - mp * sp                # (32,)

    # ---- expand the 1x1 convs over the 9 board cells so they act directly on
    # the NCHW C-major flat input (index c*9+hw) and produce PyTorch's C-major
    # flatten order (index oc*9+hw):  W_exp[c*9+h, oc*9+h] = W_folded[oc, c]
    def expand(w_oc_c):
        n_out, n_in = w_oc_c.shape
        eye = jnp.eye(HW, dtype=w_oc_c.dtype)
        return jnp.einsum('oc,hk->chok', w_oc_c, eye).reshape(n_in * HW, n_out * HW)

    wv_exp = expand(Wv_f)                          # (1152, 27)
    wp_exp = expand(Wp_f)                          # (1152, 288)
    bv_exp = jnp.repeat(bv_f, HW)                  # (27,)
    bp_exp = jnp.repeat(bp_f, HW)                  # (288,)

    # ---- fuse both conv heads into one (1152, 320) weight (bf16) + (1,320) bias
    # cols 0..26 value conv, 27..31 zero pad, 32..319 policy conv
    wc = jnp.concatenate(
        [wv_exp, jnp.zeros((K_FLAT, NV_PAD - NV), jnp.float32), wp_exp], axis=1)
    bc = jnp.concatenate(
        [bv_exp, jnp.zeros((NV_PAD - NV,), jnp.float32), bp_exp]).reshape(1, N_FUSED)
    wc = wc.astype(jnp.bfloat16)                   # big weight streamed in bf16

    # ---- value fc1: (27,32) -> zero-row-padded (32,32) (slab cols 27..31 are 0)
    w1k = jnp.pad(W1.T, ((0, NV_PAD - NV), (0, 0)))          # (32, 32)
    b1k = b1.reshape(1, 32)

    # ---- merged final projection into a single 16-lane slab:
    # lanes 0..8 <- policy fc (on the full 320-wide slab, 32 leading zero rows),
    # lane 9 <- value fc2, lanes 10..15 <- 0
    wfk = jnp.pad(Wf.T, ((NV_PAD, 0), (0, 16 - HW)))         # (320, 16)
    w2k = jnp.pad(W2.T, ((0, 0), (HW, 16 - HW - 1)))         # (32, 16), data in col 9
    bok = jnp.concatenate([bf, b2, jnp.zeros((6,), jnp.float32)]).reshape(1, 16)

    kernel_params = (wc, bc, w1k, b1k, wfk, w2k, bok)
    return torch_params, kernel_params


def reference_forward(x_nchw, torch_params):
    """Pure-JAX replica of the PyTorch forward (eval-mode BN), f32."""
    (Wcv, bcv, gv, bev, mv, vv, W1, b1, W2, b2,
     Wcp, bcp, gp, bep, mp, vp, Wf, bf) = torch_params
    B = x_nchw.shape[0]

    def bn(x, g, be, m, v):
        return (x - m[None, :, None, None]) / jnp.sqrt(v + EPS)[None, :, None, None] \
               * g[None, :, None, None] + be[None, :, None, None]

    v_ = jnp.einsum('bchw,oc->bohw', x_nchw, Wcv) + bcv[None, :, None, None]
    v_ = jax.nn.relu(bn(v_, gv, bev, mv, vv)).reshape(B, 27)
    v_ = jax.nn.relu(v_ @ W1.T + b1)
    v_ = jnp.tanh(v_ @ W2.T + b2)

    p_ = jnp.einsum('bchw,oc->bohw', x_nchw, Wcp) + bcp[None, :, None, None]
    p_ = jax.nn.relu(bn(p_, gp, bep, mp, vp)).reshape(B, 288)
    p_ = p_ @ Wf.T + bf
    p_ = jnp.exp(jax.nn.log_softmax(p_, axis=1))
    return p_, v_


if __name__ == "__main__":
    key = jax.random.PRNGKey(0)
    kx, kp = jax.random.split(key)
    torch_params, kernel_params = make_params(kp)

    # (B=2, tb=1024): single full-batch block, no padding.
    # (B=48, tb=16): multi-step grid (3 steps), divisor tile, no padding.
    # (B=20, tb=8):  exercises the rare padded-tail fallback path.
    for B, tb in ((2, 1024), (48, 16), (20, 8)):
        x = jax.random.normal(jax.random.fold_in(kx, B), (B, 128, 3, 3), jnp.float32)

        p_k, v_k = outblock_forward(x, kernel_params, tb=tb)
        jax.block_until_ready((p_k, v_k))

        p_ref, v_ref = reference_forward(x, torch_params)
        assert p_k.shape == (B, 9) and v_k.shape == (B, 1)
        # bf16 inputs on the conv matmul -> tolerance ~1e-2 (f32 accumulation).
        assert jnp.allclose(p_k, p_ref, atol=2e-2, rtol=2e-2), \
            f"policy mismatch at B={B}: {jnp.max(jnp.abs(p_k - p_ref))}"
        assert jnp.allclose(v_k, v_ref, atol=2e-2, rtol=2e-2), \
            f"value mismatch at B={B}: {jnp.max(jnp.abs(v_k - v_ref))}"

    print("KERNEL_OK")
</pallas_src>

<mosaic_0001>
module attributes {stable_mosaic.version = 11 : i64} {
  func.func @outblock_kernel(%arg0: i32, %arg1: memref<2x1152xbf16, #tpu.memory_space<vmem>>, %arg2: memref<1152x320xbf16, #tpu.memory_space<vmem>>, %arg3: memref<1x320xf32, #tpu.memory_space<vmem>>, %arg4: memref<32x32xf32, #tpu.memory_space<vmem>>, %arg5: memref<1x32xf32, #tpu.memory_space<vmem>>, %arg6: memref<320x16xf32, #tpu.memory_space<vmem>>, %arg7: memref<32x16xf32, #tpu.memory_space<vmem>>, %arg8: memref<1x16xf32, #tpu.memory_space<vmem>>, %arg9: memref<2x16xf32, #tpu.memory_space<vmem>>) attributes {dimension_semantics = [#tpu.dimension_semantics<parallel>], iteration_bounds = array<i64: 1>, scalar_prefetch = 0 : i64, scratch_operands = 0 : i64, tpu.core_type = #tpu.core_type<tc>, window_params = [{transform_indices = @transform_0, window_bounds = array<i64: 2, 1152>}, {pipeline_mode = #tpu.pipeline_mode<synchronous>, transform_indices = @transform_1, window_bounds = array<i64: 1152, 320>}, {pipeline_mode = #tpu.pipeline_mode<synchronous>, transform_indices = @transform_2, window_bounds = array<i64: 1, 320>}, {pipeline_mode = #tpu.pipeline_mode<synchronous>, transform_indices = @transform_3, window_bounds = array<i64: 32, 32>}, {pipeline_mode = #tpu.pipeline_mode<synchronous>, transform_indices = @transform_4, window_bounds = array<i64: 1, 32>}, {pipeline_mode = #tpu.pipeline_mode<synchronous>, transform_indices = @transform_5, window_bounds = array<i64: 320, 16>}, {pipeline_mode = #tpu.pipeline_mode<synchronous>, transform_indices = @transform_6, window_bounds = array<i64: 32, 16>}, {pipeline_mode = #tpu.pipeline_mode<synchronous>, transform_indices = @transform_7, window_bounds = array<i64: 1, 16>}, {transform_indices = @transform_8, window_bounds = array<i64: 2, 16>}]} {
    %c0 = arith.constant 0 : index
    %c0_0 = arith.constant 0 : index
    %0 = vector.load %arg1[%c0, %c0_0] : memref<2x1152xbf16, #tpu.memory_space<vmem>>, vector<2x1152xbf16>
    %c0_1 = arith.constant 0 : index
    %c0_2 = arith.constant 0 : index
    %1 = vector.load %arg2[%c0_1, %c0_2] : memref<1152x320xbf16, #tpu.memory_space<vmem>>, vector<1152x320xbf16>
    %cst = arith.constant dense<0.000000e+00> : vector<2x320xf32>
    %2 = tpu.matmul %0, %1, %cst {dimension_numbers = #tpu.dot_dimension_numbers<[1], [0], [0], [1], [0, 0, 1, 1], [], []>} : vector<2x1152xbf16>, vector<1152x320xbf16>, vector<2x320xf32> -> vector<2x320xf32>
    %c0_3 = arith.constant 0 : index
    %c0_4 = arith.constant 0 : index
    %3 = vector.load %arg3[%c0_3, %c0_4] : memref<1x320xf32, #tpu.memory_space<vmem>>, vector<1x320xf32>
    %4 = vector.broadcast %3 : vector<1x320xf32> to vector<2x320xf32>
    %5 = arith.addf %2, %4 : vector<2x320xf32>
    %cst_5 = arith.constant 0.000000e+00 : f32
    %6 = vector.broadcast %cst_5 : f32 to vector<2x320xf32>
    %7 = arith.maximumf %5, %6 : vector<2x320xf32>
    %8 = vector.extract_strided_slice %7 {offsets = [0, 0], sizes = [2, 32], strides = [1, 1]} : vector<2x320xf32> to vector<2x32xf32>
    %c0_6 = arith.constant 0 : index
    %c0_7 = arith.constant 0 : index
    %9 = vector.load %arg4[%c0_6, %c0_7] : memref<32x32xf32, #tpu.memory_space<vmem>>, vector<32x32xf32>
    %cst_8 = arith.constant dense<0.000000e+00> : vector<2x32xf32>
    %10 = tpu.matmul %8, %9, %cst_8 {dimension_numbers = #tpu.dot_dimension_numbers<[1], [0], [0], [1], [0, 0, 1, 1], [], []>} : vector<2x32xf32>, vector<32x32xf32>, vector<2x32xf32> -> vector<2x32xf32>
    %c0_9 = arith.constant 0 : index
    %c0_10 = arith.constant 0 : index
    %11 = vector.load %arg5[%c0_9, %c0_10] : memref<1x32xf32, #tpu.memory_space<vmem>>, vector<1x32xf32>
    %12 = vector.broadcast %11 : vector<1x32xf32> to vector<2x32xf32>
    %13 = arith.addf %10, %12 : vector<2x32xf32>
    %cst_11 = arith.constant 0.000000e+00 : f32
    %14 = vector.broadcast %cst_11 : f32 to vector<2x32xf32>
    %15 = arith.maximumf %13, %14 : vector<2x32xf32>
    %c0_12 = arith.constant 0 : index
    %c0_13 = arith.constant 0 : index
    %16 = vector.load %arg6[%c0_12, %c0_13] : memref<320x16xf32, #tpu.memory_space<vmem>>, vector<320x16xf32>
    %cst_14 = arith.constant dense<0.000000e+00> : vector<2x16xf32>
    %17 = tpu.matmul %7, %16, %cst_14 {dimension_numbers = #tpu.dot_dimension_numbers<[1], [0], [0], [1], [0, 0, 1, 1], [], []>} : vector<2x320xf32>, vector<320x16xf32>, vector<2x16xf32> -> vector<2x16xf32>
    %c0_15 = arith.constant 0 : index
    %c0_16 = arith.constant 0 : index
    %18 = vector.load %arg7[%c0_15, %c0_16] : memref<32x16xf32, #tpu.memory_space<vmem>>, vector<32x16xf32>
    %cst_17 = arith.constant dense<0.000000e+00> : vector<2x16xf32>
    %19 = tpu.matmul %15, %18, %cst_17 {dimension_numbers = #tpu.dot_dimension_numbers<[1], [0], [0], [1], [0, 0, 1, 1], [], []>} : vector<2x32xf32>, vector<32x16xf32>, vector<2x16xf32> -> vector<2x16xf32>
    %20 = arith.addf %17, %19 : vector<2x16xf32>
    %c0_18 = arith.constant 0 : index
    %c0_19 = arith.constant 0 : index
    %21 = vector.load %arg8[%c0_18, %c0_19] : memref<1x16xf32, #tpu.memory_space<vmem>>, vector<1x16xf32>
    %22 = vector.broadcast %21 : vector<1x16xf32> to vector<2x16xf32>
    %23 = arith.addf %20, %22 : vector<2x16xf32>
    %24 = tpu.iota {dimensions = array<i32: 1>} : vector<2x16xi32>
    %c9_i32 = arith.constant 9 : i32
    %25 = vector.broadcast %c9_i32 : i32 to vector<2x16xi32>
    %26 = arith.cmpi slt, %24, %25 : vector<2x16xi32>
    %cst_20 = arith.constant -1.000000e+30 : f32
    %27 = vector.broadcast %cst_20 : f32 to vector<2x16xf32>
    %28 = arith.select %26, %23, %27 : vector<2x16xi1>, vector<2x16xf32>
    %cst_21 = arith.constant dense<0xFF800000> : vector<2xf32>
    %29 = vector.multi_reduction <maximumf>, %28, %cst_21 [1] : vector<2x16xf32> to vector<2xf32>
    %30 = vector.shape_cast %29 : vector<2xf32> to vector<2x1xf32>
    %31 = vector.broadcast %30 : vector<2x1xf32> to vector<2x16xf32>
    %32 = arith.subf %28, %31 : vector<2x16xf32>
    %33 = math.exp %32 : vector<2x16xf32>
    %cst_22 = arith.constant 0.000000e+00 : f32
    %34 = vector.broadcast %cst_22 : f32 to vector<2x16xf32>
    %35 = arith.select %26, %33, %34 : vector<2x16xi1>, vector<2x16xf32>
    %cst_23 = arith.constant dense<0.000000e+00> : vector<2xf32>
    %36 = vector.multi_reduction <add>, %35, %cst_23 [1] : vector<2x16xf32> to vector<2xf32>
    %37 = vector.shape_cast %36 : vector<2xf32> to vector<2x1xf32>
    %38 = tpu.reciprocal %37 {approx = true} : vector<2x1xf32> -> vector<2x1xf32>
    %39 = arith.mulf %37, %38 : vector<2x1xf32>
    %cst_24 = arith.constant 2.000000e+00 : f32
    %40 = vector.broadcast %cst_24 : f32 to vector<2x1xf32>
    %41 = arith.subf %40, %39 : vector<2x1xf32>
    %42 = arith.mulf %38, %41 : vector<2x1xf32>
    %43 = vector.broadcast %42 : vector<2x1xf32> to vector<2x16xf32>
    %44 = arith.mulf %35, %43 : vector<2x16xf32>
    %45 = math.tanh %23 : vector<2x16xf32>
    %c9_i32_25 = arith.constant 9 : i32
    %46 = vector.broadcast %c9_i32_25 : i32 to vector<2x16xi32>
    %47 = arith.cmpi eq, %24, %46 : vector<2x16xi32>
    %cst_26 = arith.constant 0.000000e+00 : f32
    %48 = vector.broadcast %cst_26 : f32 to vector<2x16xf32>
    %49 = arith.select %47, %45, %48 : vector<2x16xi1>, vector<2x16xf32>
    %50 = arith.select %26, %44, %49 : vector<2x16xi1>, vector<2x16xf32>
    %c0_27 = arith.constant 0 : index
    %c0_28 = arith.constant 0 : index
    %51 = vector.load %arg9[%c0_27, %c0_28] : memref<2x16xf32, #tpu.memory_space<vmem>>, vector<2x16xf32>
    tpu.vector_store %arg9[%c0_27, %c0_28], %50 {strides = array<i32>} : memref<2x16xf32, #tpu.memory_space<vmem>>, vector<2x16xf32>,
    return
  }
  func.func @transform_0(%arg0: i32) -> (i32, i32) {
    %c0_i32 = arith.constant 0 : i32
    %c0_i32_0 = arith.constant 0 : i32
    return %arg0, %c0_i32 : i32, i32
  }
  func.func @transform_1(%arg0: i32) -> (i32, i32) {
    %c0_i32 = arith.constant 0 : i32
    %c0_i32_0 = arith.constant 0 : i32
    %c0_i32_1 = arith.constant 0 : i32
    return %c0_i32, %c0_i32_0 : i32, i32
  }
  func.func @transform_2(%arg0: i32) -> (i32, i32) {
    %c0_i32 = arith.constant 0 : i32
    %c0_i32_0 = arith.constant 0 : i32
    %c0_i32_1 = arith.constant 0 : i32
    return %c0_i32, %c0_i32_0 : i32, i32
  }
  func.func @transform_3(%arg0: i32) -> (i32, i32) {
    %c0_i32 = arith.constant 0 : i32
    %c0_i32_0 = arith.constant 0 : i32
    %c0_i32_1 = arith.constant 0 : i32
    return %c0_i32, %c0_i32_0 : i32, i32
  }
  func.func @transform_4(%arg0: i32) -> (i32, i32) {
    %c0_i32 = arith.constant 0 : i32
    %c0_i32_0 = arith.constant 0 : i32
    %c0_i32_1 = arith.constant 0 : i32
    return %c0_i32, %c0_i32_0 : i32, i32
  }
  func.func @transform_5(%arg0: i32) -> (i32, i32) {
    %c0_i32 = arith.constant 0 : i32
    %c0_i32_0 = arith.constant 0 : i32
    %c0_i32_1 = arith.constant 0 : i32
    return %c0_i32, %c0_i32_0 : i32, i32
  }
  func.func @transform_6(%arg0: i32) -> (i32, i32) {
    %c0_i32 = arith.constant 0 : i32
    %c0_i32_0 = arith.constant 0 : i32
    %c0_i32_1 = arith.constant 0 : i32
    return %c0_i32, %c0_i32_0 : i32, i32
  }
  func.func @transform_7(%arg0: i32) -> (i32, i32) {
    %c0_i32 = arith.constant 0 : i32
    %c0_i32_0 = arith.constant 0 : i32
    %c0_i32_1 = arith.constant 0 : i32
    return %c0_i32, %c0_i32_0 : i32, i32
  }
  func.func @transform_8(%arg0: i32) -> (i32, i32) {
    %c0_i32 = arith.constant 0 : i32
    %c0_i32_0 = arith.constant 0 : i32
    return %arg0, %c0_i32 : i32, i32
  }
}

module attributes {stable_mosaic.version = 11 : i64} {
  func.func @outblock_kernel(%arg0: i32, %arg1: memref<2x1152xbf16, #tpu.memory_space<vmem>>, %arg2: memref<1152x320xbf16, #tpu.memory_space<vmem>>, %arg3: memref<1x320xf32, #tpu.memory_space<vmem>>, %arg4: memref<32x32xf32, #tpu.memory_space<vmem>>, %arg5: memref<1x32xf32, #tpu.memory_space<vmem>>, %arg6: memref<320x16xf32, #tpu.memory_space<vmem>>, %arg7: memref<32x16xf32, #tpu.memory_space<vmem>>, %arg8: memref<1x16xf32, #tpu.memory_space<vmem>>, %arg9: memref<2x16xf32, #tpu.memory_space<vmem>>) attributes {dimension_semantics = [#tpu.dimension_semantics<parallel>], iteration_bounds = array<i64: 1>, scalar_prefetch = 0 : i64, scratch_operands = 0 : i64, tpu.core_type = #tpu.core_type<tc>, window_params = [{transform_indices = @transform_0, window_bounds = array<i64: 2, 1152>}, {pipeline_mode = #tpu.pipeline_mode<synchronous>, transform_indices = @transform_1, window_bounds = array<i64: 1152, 320>}, {pipeline_mode = #tpu.pipeline_mode<synchronous>, transform_indices = @transform_2, window_bounds = array<i64: 1, 320>}, {pipeline_mode = #tpu.pipeline_mode<synchronous>, transform_indices = @transform_3, window_bounds = array<i64: 32, 32>}, {pipeline_mode = #tpu.pipeline_mode<synchronous>, transform_indices = @transform_4, window_bounds = array<i64: 1, 32>}, {pipeline_mode = #tpu.pipeline_mode<synchronous>, transform_indices = @transform_5, window_bounds = array<i64: 320, 16>}, {pipeline_mode = #tpu.pipeline_mode<synchronous>, transform_indices = @transform_6, window_bounds = array<i64: 32, 16>}, {pipeline_mode = #tpu.pipeline_mode<synchronous>, transform_indices = @transform_7, window_bounds = array<i64: 1, 16>}, {transform_indices = @transform_8, window_bounds = array<i64: 2, 16>}]} {
    %c0 = arith.constant 0 : index
    %c0_0 = arith.constant 0 : index
    %0 = vector.load %arg1[%c0, %c0_0] : memref<2x1152xbf16, #tpu.memory_space<vmem>>, vector<2x1152xbf16>
    %c0_1 = arith.constant 0 : index
    %c0_2 = arith.constant 0 : index
    %1 = vector.load %arg2[%c0_1, %c0_2] : memref<1152x320xbf16, #tpu.memory_space<vmem>>, vector<1152x320xbf16>
    %cst = arith.constant dense<0.000000e+00> : vector<2x320xf32>
    %2 = tpu.matmul %0, %1, %cst {dimension_numbers = #tpu.dot_dimension_numbers<[1], [0], [0], [1], [0, 0, 1, 1], [], []>} : vector<2x1152xbf16>, vector<1152x320xbf16>, vector<2x320xf32> -> vector<2x320xf32>
    %c0_3 = arith.constant 0 : index
    %c0_4 = arith.constant 0 : index
    %3 = vector.load %arg3[%c0_3, %c0_4] : memref<1x320xf32, #tpu.memory_space<vmem>>, vector<1x320xf32>
    %4 = vector.broadcast %3 : vector<1x320xf32> to vector<2x320xf32>
    %5 = arith.addf %2, %4 : vector<2x320xf32>
    %cst_5 = arith.constant 0.000000e+00 : f32
    %6 = vector.broadcast %cst_5 : f32 to vector<2x320xf32>
    %7 = arith.maximumf %5, %6 : vector<2x320xf32>
    %8 = vector.extract_strided_slice %7 {offsets = [0, 0], sizes = [2, 32], strides = [1, 1]} : vector<2x320xf32> to vector<2x32xf32>
    %c0_6 = arith.constant 0 : index
    %c0_7 = arith.constant 0 : index
    %9 = vector.load %arg4[%c0_6, %c0_7] : memref<32x32xf32, #tpu.memory_space<vmem>>, vector<32x32xf32>
    %cst_8 = arith.constant dense<0.000000e+00> : vector<2x32xf32>
    %10 = tpu.matmul %8, %9, %cst_8 {dimension_numbers = #tpu.dot_dimension_numbers<[1], [0], [0], [1], [0, 0, 1, 1], [], []>} : vector<2x32xf32>, vector<32x32xf32>, vector<2x32xf32> -> vector<2x32xf32>
    %c0_9 = arith.constant 0 : index
    %c0_10 = arith.constant 0 : index
    %11 = vector.load %arg5[%c0_9, %c0_10] : memref<1x32xf32, #tpu.memory_space<vmem>>, vector<1x32xf32>
    %12 = vector.broadcast %11 : vector<1x32xf32> to vector<2x32xf32>
    %13 = arith.addf %10, %12 : vector<2x32xf32>
    %cst_11 = arith.constant 0.000000e+00 : f32
    %14 = vector.broadcast %cst_11 : f32 to vector<2x32xf32>
    %15 = arith.maximumf %13, %14 : vector<2x32xf32>
    %c0_12 = arith.constant 0 : index
    %c0_13 = arith.constant 0 : index
    %16 = vector.load %arg6[%c0_12, %c0_13] : memref<320x16xf32, #tpu.memory_space<vmem>>, vector<320x16xf32>
    %cst_14 = arith.constant dense<0.000000e+00> : vector<2x16xf32>
    %17 = tpu.matmul %7, %16, %cst_14 {dimension_numbers = #tpu.dot_dimension_numbers<[1], [0], [0], [1], [0, 0, 1, 1], [], []>} : vector<2x320xf32>, vector<320x16xf32>, vector<2x16xf32> -> vector<2x16xf32>
    %c0_15 = arith.constant 0 : index
    %c0_16 = arith.constant 0 : index
    %18 = vector.load %arg7[%c0_15, %c0_16] : memref<32x16xf32, #tpu.memory_space<vmem>>, vector<32x16xf32>
    %cst_17 = arith.constant dense<0.000000e+00> : vector<2x16xf32>
    %19 = tpu.matmul %15, %18, %cst_17 {dimension_numbers = #tpu.dot_dimension_numbers<[1], [0], [0], [1], [0, 0, 1, 1], [], []>} : vector<2x32xf32>, vector<32x16xf32>, vector<2x16xf32> -> vector<2x16xf32>
    %20 = arith.addf %17, %19 : vector<2x16xf32>
    %c0_18 = arith.constant 0 : index
    %c0_19 = arith.constant 0 : index
    %21 = vector.load %arg8[%c0_18, %c0_19] : memref<1x16xf32, #tpu.memory_space<vmem>>, vector<1x16xf32>
    %22 = vector.broadcast %21 : vector<1x16xf32> to vector<2x16xf32>
    %23 = arith.addf %20, %22 : vector<2x16xf32>
    %24 = tpu.iota {dimensions = array<i32: 1>} : vector<2x16xi32>
    %c9_i32 = arith.constant 9 : i32
    %25 = vector.broadcast %c9_i32 : i32 to vector<2x16xi32>
    %26 = arith.cmpi slt, %24, %25 : vector<2x16xi32>
    %cst_20 = arith.constant -1.000000e+30 : f32
    %27 = vector.broadcast %cst_20 : f32 to vector<2x16xf32>
    %28 = arith.select %26, %23, %27 : vector<2x16xi1>, vector<2x16xf32>
    %cst_21 = arith.constant dense<0xFF800000> : vector<2xf32>
    %29 = vector.multi_reduction <maximumf>, %28, %cst_21 [1] : vector<2x16xf32> to vector<2xf32>
    %30 = vector.shape_cast %29 : vector<2xf32> to vector<2x1xf32>
    %31 = vector.broadcast %30 : vector<2x1xf32> to vector<2x16xf32>
    %32 = arith.subf %28, %31 : vector<2x16xf32>
    %33 = math.exp %32 : vector<2x16xf32>
    %cst_22 = arith.constant 0.000000e+00 : f32
    %34 = vector.broadcast %cst_22 : f32 to vector<2x16xf32>
    %35 = arith.select %26, %33, %34 : vector<2x16xi1>, vector<2x16xf32>
    %cst_23 = arith.constant dense<0.000000e+00> : vector<2xf32>
    %36 = vector.multi_reduction <add>, %35, %cst_23 [1] : vector<2x16xf32> to vector<2xf32>
    %37 = vector.shape_cast %36 : vector<2xf32> to vector<2x1xf32>
    %38 = tpu.reciprocal %37 {approx = true} : vector<2x1xf32> -> vector<2x1xf32>
    %39 = arith.mulf %37, %38 : vector<2x1xf32>
    %cst_24 = arith.constant 2.000000e+00 : f32
    %40 = vector.broadcast %cst_24 : f32 to vector<2x1xf32>
    %41 = arith.subf %40, %39 : vector<2x1xf32>
    %42 = arith.mulf %38, %41 : vector<2x1xf32>
    %43 = vector.broadcast %42 : vector<2x1xf32> to vector<2x16xf32>
    %44 = arith.mulf %35, %43 : vector<2x16xf32>
    %45 = math.tanh %23 : vector<2x16xf32>
    %c9_i32_25 = arith.constant 9 : i32
    %46 = vector.broadcast %c9_i32_25 : i32 to vector<2x16xi32>
    %47 = arith.cmpi eq, %24, %46 : vector<2x16xi32>
    %cst_26 = arith.constant 0.000000e+00 : f32
    %48 = vector.broadcast %cst_26 : f32 to vector<2x16xf32>
    %49 = arith.select %47, %45, %48 : vector<2x16xi1>, vector<2x16xf32>
    %50 = arith.select %26, %44, %49 : vector<2x16xi1>, vector<2x16xf32>
    %c0_27 = arith.constant 0 : index
    %c0_28 = arith.constant 0 : index
    %51 = vector.load %arg9[%c0_27, %c0_28] : memref<2x16xf32, #tpu.memory_space<vmem>>, vector<2x16xf32>
    tpu.vector_store %arg9[%c0_27, %c0_28], %50 {strides = array<i32>} : memref<2x16xf32, #tpu.memory_space<vmem>>, vector<2x16xf32>,
    return
  }
  func.func @transform_0(%arg0: i32) -> (i32, i32) {
    %c0_i32 = arith.constant 0 : i32
    %c0_i32_0 = arith.constant 0 : i32
    return %arg0, %c0_i32 : i32, i32
  }
  func.func @transform_1(%arg0: i32) -> (i32, i32) {
    %c0_i32 = arith.constant 0 : i32
    %c0_i32_0 = arith.constant 0 : i32
    %c0_i32_1 = arith.constant 0 : i32
    return %c0_i32, %c0_i32_0 : i32, i32
  }
  func.func @transform_2(%arg0: i32) -> (i32, i32) {
    %c0_i32 = arith.constant 0 : i32
    %c0_i32_0 = arith.constant 0 : i32
    %c0_i32_1 = arith.constant 0 : i32
    return %c0_i32, %c0_i32_0 : i32, i32
  }
  func.func @transform_3(%arg0: i32) -> (i32, i32) {
    %c0_i32 = arith.constant 0 : i32
    %c0_i32_0 = arith.constant 0 : i32
    %c0_i32_1 = arith.constant 0 : i32
    return %c0_i32, %c0_i32_0 : i32, i32
  }
  func.func @transform_4(%arg0: i32) -> (i32, i32) {
    %c0_i32 = arith.constant 0 : i32
    %c0_i32_0 = arith.constant 0 : i32
    %c0_i32_1 = arith.constant 0 : i32
    return %c0_i32, %c0_i32_0 : i32, i32
  }
  func.func @transform_5(%arg0: i32) -> (i32, i32) {
    %c0_i32 = arith.constant 0 : i32
    %c0_i32_0 = arith.constant 0 : i32
    %c0_i32_1 = arith.constant 0 : i32
    return %c0_i32, %c0_i32_0 : i32, i32
  }
  func.func @transform_6(%arg0: i32) -> (i32, i32) {
    %c0_i32 = arith.constant 0 : i32
    %c0_i32_0 = arith.constant 0 : i32
    %c0_i32_1 = arith.constant 0 : i32
    return %c0_i32, %c0_i32_0 : i32, i32
  }
  func.func @transform_7(%arg0: i32) -> (i32, i32) {
    %c0_i32 = arith.constant 0 : i32
    %c0_i32_0 = arith.constant 0 : i32
    %c0_i32_1 = arith.constant 0 : i32
    return %c0_i32, %c0_i32_0 : i32, i32
  }
  func.func @transform_8(%arg0: i32) -> (i32, i32) {
    %c0_i32 = arith.constant 0 : i32
    %c0_i32_0 = arith.constant 0 : i32
    return %arg0, %c0_i32 : i32, i32
  }
}

</mosaic_0001>

<llo_original>
// kernel: tpu_custom_call.1
$region0: #{tpu_custom_call.1}
  #allocation0 [shape = 'u32[]', space=smem, size = 0x4, offset = 0x4, fixed_abs, tag = 'smem constant byte address 0x4 - core index']
  #allocation1 [shape = 'u32[144,128]{1,0:T(1,128)}', space=vmem, size = 0x12000, scoped, tag = 'internal scratch']
  %s0 = inlined_call_operand.vmem [shape: bf16[2,1152], index: 0, kind: input, shape index: {}]
  %s1 = inlined_call_operand.vmem [shape: bf16[1152,320], index: 1, kind: input, shape index: {}]
  %s2 = inlined_call_operand.vmem [shape: f32[1,320], index: 2, kind: input, shape index: {}]
  %s3 = inlined_call_operand.vmem [shape: f32[32,32], index: 3, kind: input, shape index: {}]
  %s4 = inlined_call_operand.vmem [shape: f32[1,32], index: 4, kind: input, shape index: {}]
  %s5 = inlined_call_operand.vmem [shape: f32[320,16], index: 5, kind: input, shape index: {}]
  %s6 = inlined_call_operand.vmem [shape: f32[32,16], index: 6, kind: input, shape index: {}]
  %s7 = inlined_call_operand.vmem [shape: f32[1,16], index: 7, kind: input, shape index: {}]
  %s8 = inlined_call_operand.hbm [shape: f32[2,16], index: 8, kind: output, shape index: {}]
  %s9 = sld [smem:[#allocation0]]
  $region42: #{tpu_custom_call.1} parent=0
    _
  %s11 = ssub.s32 1, %s9
  %s12 = scalar_select 0, %s11, %s9
  $region1: #{tpu_custom_call.1} parent=0
    #allocation2 [shape = 'u8[1024]{0}', space=vmem, size = 0x400, scoped, tag = 'output window, operand 0, single buffered']
    #allocation3 [shape = 's32[1]{0}', space=sflag, size = 0x4, scoped, tag = 'scoped memory for tpu_custom_call.1']
    %13 = vsyncpa [#allocation3], 0
    // Predicated region
    $region2: #{tpu_custom_call.1} parent=1 // pred_check
      _
    $region3: #{tpu_custom_call.1} parent=1 // pred_check_branch
      %15 = sbr.rel (0) target = $region5
    $region4: #{tpu_custom_call.1} parent=1 // pred_region
      _
    $region5: #{tpu_custom_call.1} parent=1 // pred_fallthru
      _
    // Predicated region
    $region6: #{tpu_custom_call.1} parent=1 // pred_check
      _
    $region7: #{tpu_custom_call.1} parent=1 // pred_check_branch
      %17 = sbr.rel (0) target = $region9
    $region8: #{tpu_custom_call.1} parent=1 // pred_region
      _
    $region9: #{tpu_custom_call.1} parent=1 // pred_fallthru
      _
    // Predicated region
    $region10: #{tpu_custom_call.1} parent=1 // pred_check
      _
    $region11: #{tpu_custom_call.1} parent=1 // pred_check_branch
      %19 = sbr.rel (0) target = $region13
    $region12: #{tpu_custom_call.1} parent=1 // pred_region
      _
    $region13: #{tpu_custom_call.1} parent=1 // pred_fallthru
      _
    // Predicated region
    $region14: #{tpu_custom_call.1} parent=1 // pred_check
      _
    $region15: #{tpu_custom_call.1} parent=1 // pred_check_branch
      %21 = sbr.rel (0) target = $region17
    $region16: #{tpu_custom_call.1} parent=1 // pred_region
      _
    $region17: #{tpu_custom_call.1} parent=1 // pred_fallthru
      _
    // Predicated region
    $region18: #{tpu_custom_call.1} parent=1 // pred_check
      _
    $region19: #{tpu_custom_call.1} parent=1 // pred_check_branch
      %23 = sbr.rel (0) target = $region21
    $region20: #{tpu_custom_call.1} parent=1 // pred_region
      _
    $region21: #{tpu_custom_call.1} parent=1 // pred_fallthru
      _
    // Predicated region
    $region22: #{tpu_custom_call.1} parent=1 // pred_check
      _
    $region23: #{tpu_custom_call.1} parent=1 // pred_check_branch
      %25 = sbr.rel (0) target = $region25
    $region24: #{tpu_custom_call.1} parent=1 // pred_region
      _
    $region25: #{tpu_custom_call.1} parent=1 // pred_fallthru
      _
    // Predicated region
    $region26: #{tpu_custom_call.1} parent=1 // pred_check
      _
    $region27: #{tpu_custom_call.1} parent=1 // pred_check_branch
      %27 = sbr.rel (0) target = $region29
    $region28: #{tpu_custom_call.1} parent=1 // pred_region
      _
    $region29: #{tpu_custom_call.1} parent=1 // pred_fallthru
      _
    // Predicated region
    $region30: #{tpu_custom_call.1} parent=1 // pred_check
      _
    $region31: #{tpu_custom_call.1} parent=1 // pred_check_branch
      %29 = sbr.rel (0) target = $region33
    $region32: #{tpu_custom_call.1} parent=1 // pred_region
      _
    $region33: #{tpu_custom_call.1} parent=1 // pred_fallthru
      _
    %v31 = vld [vmem:[%s0] sm:$0xff]
    %v32 = vld [vmem:[%s0 + $0x8] sm:$0x1]
    %v33 = vld [vmem:[%s1] sm:$0xff]
    %v34 = vld [vmem:[%s1 + $0x8] sm:$0xf]
    %v35 = vld [vmem:[%s1 + $0xc] sm:$0xff]
    %v36 = vld [vmem:[%s1 + $0x14] sm:$0xf]
    %v37 = vld [vmem:[%s1 + $0x18] sm:$0xff]
    %v38 = vld [vmem:[%s1 + $0x20] sm:$0xf]
    %v39 = vld [vmem:[%s1 + $0x24] sm:$0xff]
    %v40 = vld [vmem:[%s1 + $0x2c] sm:$0xf]
    %v41 = vld [vmem:[%s1 + $0x30] sm:$0xff]
    %v42 = vld [vmem:[%s1 + $0x38] sm:$0xf]
    %v43 = vld [vmem:[%s1 + $0x3c] sm:$0xff]
    %v44 = vld [vmem:[%s1 + $0x44] sm:$0xf]
    %v45 = vld [vmem:[%s1 + $0x48] sm:$0xff]
    %v46 = vld [vmem:[%s1 + $0x50] sm:$0xf]
    %v47 = vld [vmem:[%s1 + $0x54] sm:$0xff]
    %v48 = vld [vmem:[%s1 + $0x5c] sm:$0xf]
    %v49 = vld [vmem:[%s1 + $0x60] sm:$0xff]
    %v50 = vld [vmem:[%s1 + $0x68] sm:$0xf]
    %v51 = vld [vmem:[%s1 + $0x6c] sm:$0xff]
    %v52 = vld [vmem:[%s1 + $0x74] sm:$0xf]
    %v53 = vld [vmem:[%s1 + $0x78] sm:$0xff]
    %v54 = vld [vmem:[%s1 + $0x80] sm:$0xf]
    %v55 = vld [vmem:[%s1 + $0x84] sm:$0xff]
    %v56 = vld [vmem:[%s1 + $0x8c] sm:$0xf]
    %v57 = vld [vmem:[%s1 + $0x90] sm:$0xff]
    %v58 = vld [vmem:[%s1 + $0x98] sm:$0xf]
    %v59 = vld [vmem:[%s1 + $0x9c] sm:$0xff]
    %v60 = vld [vmem:[%s1 + $0xa4] sm:$0xf]
    %v61 = vld [vmem:[%s1 + $0xa8] sm:$0xff]
    %v62 = vld [vmem:[%s1 + $0xb0] sm:$0xf]
    %v63 = vld [vmem:[%s1 + $0xb4] sm:$0xff]
    %v64 = vld [vmem:[%s1 + $0xbc] sm:$0xf]
    %v65 = vld [vmem:[%s1 + $0xc0] sm:$0xff]
    %v66 = vld [vmem:[%s1 + $0xc8] sm:$0xf]
    %v67 = vld [vmem:[%s1 + $0xcc] sm:$0xff]
    %v68 = vld [vmem:[%s1 + $0xd4] sm:$0xf]
    %v69 = vld [vmem:[%s1 + $0xd8] sm:$0xff]
    %v70 = vld [vmem:[%s1 + $0xe0] sm:$0xf]
    %v71 = vld [vmem:[%s1 + $0xe4] sm:$0xff]
    %v72 = vld [vmem:[%s1 + $0xec] sm:$0xf]
    %v73 = vld [vmem:[%s1 + $0xf0] sm:$0xff]
    %v74 = vld [vmem:[%s1 + $0xf8] sm:$0xf]
    %v75 = vld [vmem:[%s1 + $0xfc] sm:$0xff]
    %v76 = vld [vmem:[%s1 + $0x104] sm:$0xf]
    %v77 = vld [vmem:[%s1 + $0x108] sm:$0xff]
    %v78 = vld [vmem:[%s1 + $0x110] sm:$0xf]
    %v79 = vld [vmem:[%s1 + $0x114] sm:$0xff]
    %v80 = vld [vmem:[%s1 + $0x11c] sm:$0xf]
    %v81 = vld [vmem:[%s1 + $0x120] sm:$0xff]
    %v82 = vld [vmem:[%s1 + $0x128] sm:$0xf]
    %v83 = vld [vmem:[%s1 + $0x12c] sm:$0xff]
    %v84 = vld [vmem:[%s1 + $0x134] sm:$0xf]
    %v85 = vld [vmem:[%s1 + $0x138] sm:$0xff]
    %v86 = vld [vmem:[%s1 + $0x140] sm:$0xf]
    %v87 = vld [vmem:[%s1 + $0x144] sm:$0xff]
    %v88 = vld [vmem:[%s1 + $0x14c] sm:$0xf]
    %v89 = vld [vmem:[%s1 + $0x150] sm:$0xff]
    %v90 = vld [vmem:[%s1 + $0x158] sm:$0xf]
    %v91 = vld [vmem:[%s1 + $0x15c] sm:$0xff]
    %v92 = vld [vmem:[%s1 + $0x164] sm:$0xf]
    %v93 = vld [vmem:[%s1 + $0x168] sm:$0xff]
    %v94 = vld [vmem:[%s1 + $0x170] sm:$0xf]
    %v95 = vld [vmem:[%s1 + $0x174] sm:$0xff]
    %v96 = vld [vmem:[%s1 + $0x17c] sm:$0xf]
    %v97 = vld [vmem:[%s1 + $0x180] sm:$0xff]
    %v98 = vld [vmem:[%s1 + $0x188] sm:$0xf]
    %v99 = vld [vmem:[%s1 + $0x18c] sm:$0xff]
    %v100 = vld [vmem:[%s1 + $0x194] sm:$0xf]
    %v101 = vld [vmem:[%s1 + $0x198] sm:$0xff]
    %v102 = vld [vmem:[%s1 + $0x1a0] sm:$0xf]
    %v103 = vld [vmem:[%s1 + $0x1a4] sm:$0xff]
    %v104 = vld [vmem:[%s1 + $0x1ac] sm:$0xf]
    %v105 = vld [vmem:[%s1 + $0x1b0] sm:$0xff]
    %v106 = vld [vmem:[%s1 + $0x1b8] sm:$0xf]
    %v107 = vld [vmem:[%s1 + $0x1bc] sm:$0xff]
    %v108 = vld [vmem:[%s1 + $0x1c4] sm:$0xf]
    %v109 = vld [vmem:[%s1 + $0x1c8] sm:$0xff]
    %v110 = vld [vmem:[%s1 + $0x1d0] sm:$0xf]
    %v111 = vld [vmem:[%s1 + $0x1d4] sm:$0xff]
    %v112 = vld [vmem:[%s1 + $0x1dc] sm:$0xf]
    %v113 = vld [vmem:[%s1 + $0x1e0] sm:$0xff]
    %v114 = vld [vmem:[%s1 + $0x1e8] sm:$0xf]
    %v115 = vld [vmem:[%s1 + $0x1ec] sm:$0xff]
    %v116 = vld [vmem:[%s1 + $0x1f4] sm:$0xf]
    %v117 = vld [vmem:[%s1 + $0x1f8] sm:$0xff]
    %v118 = vld [vmem:[%s1 + $0x200] sm:$0xf]
    %v119 = vld [vmem:[%s1 + $0x204] sm:$0xff]
    %v120 = vld [vmem:[%s1 + $0x20c] sm:$0xf]
    %v121 = vld [vmem:[%s1 + $0x210] sm:$0xff]
    %v122 = vld [vmem:[%s1 + $0x218] sm:$0xf]
    %v123 = vld [vmem:[%s1 + $0x21c] sm:$0xff]
    %v124 = vld [vmem:[%s1 + $0x224] sm:$0xf]
    %v125 = vld [vmem:[%s1 + $0x228] sm:$0xff]
    %v126 = vld [vmem:[%s1 + $0x230] sm:$0xf]
    %v127 = vld [vmem:[%s1 + $0x234] sm:$0xff]
    %v128 = vld [vmem:[%s1 + $0x23c] sm:$0xf]
    %v129 = vld [vmem:[%s1 + $0x240] sm:$0xff]
    %v130 = vld [vmem:[%s1 + $0x248] sm:$0xf]
    %v131 = vld [vmem:[%s1 + $0x24c] sm:$0xff]
    %v132 = vld [vmem:[%s1 + $0x254] sm:$0xf]
    %v133 = vld [vmem:[%s1 + $0x258] sm:$0xff]
    %v134 = vld [vmem:[%s1 + $0x260] sm:$0xf]
    %v135 = vld [vmem:[%s1 + $0x264] sm:$0xff]
    %v136 = vld [vmem:[%s1 + $0x26c] sm:$0xf]
    %v137 = vld [vmem:[%s1 + $0x270] sm:$0xff]
    %v138 = vld [vmem:[%s1 + $0x278] sm:$0xf]
    %v139 = vld [vmem:[%s1 + $0x27c] sm:$0xff]
    %v140 = vld [vmem:[%s1 + $0x284] sm:$0xf]
    %v141 = vld [vmem:[%s1 + $0x288] sm:$0xff]
    %v142 = vld [vmem:[%s1 + $0x290] sm:$0xf]
    %v143 = vld [vmem:[%s1 + $0x294] sm:$0xff]
    %v144 = vld [vmem:[%s1 + $0x29c] sm:$0xf]
    %v145 = vld [vmem:[%s1 + $0x2a0] sm:$0xff]
    %v146 = vld [vmem:[%s1 + $0x2a8] sm:$0xf]
    %v147 = vld [vmem:[%s1 + $0x2ac] sm:$0xff]
    %v148 = vld [vmem:[%s1 + $0x2b4] sm:$0xf]
    %v149 = vld [vmem:[%s1 + $0x2b8] sm:$0xff]
    %v150 = vld [vmem:[%s1 + $0x2c0] sm:$0xf]
    %v151 = vld [vmem:[%s1 + $0x2c4] sm:$0xff]
    %v152 = vld [vmem:[%s1 + $0x2cc] sm:$0xf]
    %v153 = vld [vmem:[%s1 + $0x2d0] sm:$0xff]
    %v154 = vld [vmem:[%s1 + $0x2d8] sm:$0xf]
    %v155 = vld [vmem:[%s1 + $0x2dc] sm:$0xff]
    %v156 = vld [vmem:[%s1 + $0x2e4] sm:$0xf]
    %v157 = vld [vmem:[%s1 + $0x2e8] sm:$0xff]
    %v158 = vld [vmem:[%s1 + $0x2f0] sm:$0xf]
    %v159 = vld [vmem:[%s1 + $0x2f4] sm:$0xff]
    %v160 = vld [vmem:[%s1 + $0x2fc] sm:$0xf]
    %v161 = vld [vmem:[%s1 + $0x300] sm:$0xff]
    %v162 = vld [vmem:[%s1 + $0x308] sm:$0xf]
    %v163 = vld [vmem:[%s1 + $0x30c] sm:$0xff]
    %v164 = vld [vmem:[%s1 + $0x314] sm:$0xf]
    %v165 = vld [vmem:[%s1 + $0x318] sm:$0xff]
    %v166 = vld [vmem:[%s1 + $0x320] sm:$0xf]
    %v167 = vld [vmem:[%s1 + $0x324] sm:$0xff]
    %v168 = vld [vmem:[%s1 + $0x32c] sm:$0xf]
    %v169 = vld [vmem:[%s1 + $0x330] sm:$0xff]
    %v170 = vld [vmem:[%s1 + $0x338] sm:$0xf]
    %v171 = vld [vmem:[%s1 + $0x33c] sm:$0xff]
    %v172 = vld [vmem:[%s1 + $0x344] sm:$0xf]
    %v173 = vld [vmem:[%s1 + $0x348] sm:$0xff]
    %v174 = vld [vmem:[%s1 + $0x350] sm:$0xf]
    %v175 = vld [vmem:[%s1 + $0x354] sm:$0xff]
    %v176 = vld [vmem:[%s1 + $0x35c] sm:$0xf]
    %v177 = vld [vmem:[%s1 + $0x360] sm:$0xff]
    %v178 = vld [vmem:[%s1 + $0x368] sm:$0xf]
    %v179 = vld [vmem:[%s1 + $0x36c] sm:$0xff]
    %v180 = vld [vmem:[%s1 + $0x374] sm:$0xf]
    %v181 = vld [vmem:[%s1 + $0x378] sm:$0xff]
    %v182 = vld [vmem:[%s1 + $0x380] sm:$0xf]
    %v183 = vld [vmem:[%s1 + $0x384] sm:$0xff]
    %v184 = vld [vmem:[%s1 + $0x38c] sm:$0xf]
    %v185 = vld [vmem:[%s1 + $0x390] sm:$0xff]
    %v186 = vld [vmem:[%s1 + $0x398] sm:$0xf]
    %v187 = vld [vmem:[%s1 + $0x39c] sm:$0xff]
    %v188 = vld [vmem:[%s1 + $0x3a4] sm:$0xf]
    %v189 = vld [vmem:[%s1 + $0x3a8] sm:$0xff]
    %v190 = vld [vmem:[%s1 + $0x3b0] sm:$0xf]
    %v191 = vld [vmem:[%s1 + $0x3b4] sm:$0xff]
    %v192 = vld [vmem:[%s1 + $0x3bc] sm:$0xf]
    %v193 = vld [vmem:[%s1 + $0x3c0] sm:$0xff]
    %v194 = vld [vmem:[%s1 + $0x3c8] sm:$0xf]
    %v195 = vld [vmem:[%s1 + $0x3cc] sm:$0xff]
    %v196 = vld [vmem:[%s1 + $0x3d4] sm:$0xf]
    %v197 = vld [vmem:[%s1 + $0x3d8] sm:$0xff]
    %v198 = vld [vmem:[%s1 + $0x3e0] sm:$0xf]
    %v199 = vld [vmem:[%s1 + $0x3e4] sm:$0xff]
    %v200 = vld [vmem:[%s1 + $0x3ec] sm:$0xf]
    %v201 = vld [vmem:[%s1 + $0x3f0] sm:$0xff]
    %v202 = vld [vmem:[%s1 + $0x3f8] sm:$0xf]
    %v203 = vld [vmem:[%s1 + $0x3fc] sm:$0xff]
    %v204 = vld [vmem:[%s1 + $0x404] sm:$0xf]
    %v205 = vld [vmem:[%s1 + $0x408] sm:$0xff]
    %v206 = vld [vmem:[%s1 + $0x410] sm:$0xf]
    %v207 = vld [vmem:[%s1 + $0x414] sm:$0xff]
    %v208 = vld [vmem:[%s1 + $0x41c] sm:$0xf]
    %v209 = vld [vmem:[%s1 + $0x420] sm:$0xff]
    %v210 = vld [vmem:[%s1 + $0x428] sm:$0xf]
    %v211 = vld [vmem:[%s1 + $0x42c] sm:$0xff]
    %v212 = vld [vmem:[%s1 + $0x434] sm:$0xf]
    %v213 = vld [vmem:[%s1 + $0x438] sm:$0xff]
    %v214 = vld [vmem:[%s1 + $0x440] sm:$0xf]
    %v215 = vld [vmem:[%s1 + $0x444] sm:$0xff]
    %v216 = vld [vmem:[%s1 + $0x44c] sm:$0xf]
    %v217 = vld [vmem:[%s1 + $0x450] sm:$0xff]
    %v218 = vld [vmem:[%s1 + $0x458] sm:$0xf]
    %v219 = vld [vmem:[%s1 + $0x45c] sm:$0xff]
    %v220 = vld [vmem:[%s1 + $0x464] sm:$0xf]
    %v221 = vld [vmem:[%s1 + $0x468] sm:$0xff]
    %v222 = vld [vmem:[%s1 + $0x470] sm:$0xf]
    %v223 = vld [vmem:[%s1 + $0x474] sm:$0xff]
    %v224 = vld [vmem:[%s1 + $0x47c] sm:$0xf]
    %v225 = vld [vmem:[%s1 + $0x480] sm:$0xff]
    %v226 = vld [vmem:[%s1 + $0x488] sm:$0xf]
    %v227 = vld [vmem:[%s1 + $0x48c] sm:$0xff]
    %v228 = vld [vmem:[%s1 + $0x494] sm:$0xf]
    %v229 = vld [vmem:[%s1 + $0x498] sm:$0xff]
    %v230 = vld [vmem:[%s1 + $0x4a0] sm:$0xf]
    %v231 = vld [vmem:[%s1 + $0x4a4] sm:$0xff]
    %v232 = vld [vmem:[%s1 + $0x4ac] sm:$0xf]
    %v233 = vld [vmem:[%s1 + $0x4b0] sm:$0xff]
    %v234 = vld [vmem:[%s1 + $0x4b8] sm:$0xf]
    %v235 = vld [vmem:[%s1 + $0x4bc] sm:$0xff]
    %v236 = vld [vmem:[%s1 + $0x4c4] sm:$0xf]
    %v237 = vld [vmem:[%s1 + $0x4c8] sm:$0xff]
    %v238 = vld [vmem:[%s1 + $0x4d0] sm:$0xf]
    %v239 = vld [vmem:[%s1 + $0x4d4] sm:$0xff]
    %v240 = vld [vmem:[%s1 + $0x4dc] sm:$0xf]
    %v241 = vld [vmem:[%s1 + $0x4e0] sm:$0xff]
    %v242 = vld [vmem:[%s1 + $0x4e8] sm:$0xf]
    %v243 = vld [vmem:[%s1 + $0x4ec] sm:$0xff]
    %v244 = vld [vmem:[%s1 + $0x4f4] sm:$0xf]
    %v245 = vld [vmem:[%s1 + $0x4f8] sm:$0xff]
    %v246 = vld [vmem:[%s1 + $0x500] sm:$0xf]
    %v247 = vld [vmem:[%s1 + $0x504] sm:$0xff]
    %v248 = vld [vmem:[%s1 + $0x50c] sm:$0xf]
    %v249 = vld [vmem:[%s1 + $0x510] sm:$0xff]
    %v250 = vld [vmem:[%s1 + $0x518] sm:$0xf]
    %v251 = vld [vmem:[%s1 + $0x51c] sm:$0xff]
    %v252 = vld [vmem:[%s1 + $0x524] sm:$0xf]
    %v253 = vld [vmem:[%s1 + $0x528] sm:$0xff]
    %v254 = vld [vmem:[%s1 + $0x530] sm:$0xf]
    %v255 = vld [vmem:[%s1 + $0x534] sm:$0xff]
    %v256 = vld [vmem:[%s1 + $0x53c] sm:$0xf]
    %v257 = vld [vmem:[%s1 + $0x540] sm:$0xff]
    %v258 = vld [vmem:[%s1 + $0x548] sm:$0xf]
    %v259 = vld [vmem:[%s1 + $0x54c] sm:$0xff]
    %v260 = vld [vmem:[%s1 + $0x554] sm:$0xf]
    %v261 = vld [vmem:[%s1 + $0x558] sm:$0xff]
    %v262 = vld [vmem:[%s1 + $0x560] sm:$0xf]
    %v263 = vld [vmem:[%s1 + $0x564] sm:$0xff]
    %v264 = vld [vmem:[%s1 + $0x56c] sm:$0xf]
    %v265 = vld [vmem:[%s1 + $0x570] sm:$0xff]
    %v266 = vld [vmem:[%s1 + $0x578] sm:$0xf]
    %v267 = vld [vmem:[%s1 + $0x57c] sm:$0xff]
    %v268 = vld [vmem:[%s1 + $0x584] sm:$0xf]
    %v269 = vld [vmem:[%s1 + $0x588] sm:$0xff]
    %v270 = vld [vmem:[%s1 + $0x590] sm:$0xf]
    %v271 = vld [vmem:[%s1 + $0x594] sm:$0xff]
    %v272 = vld [vmem:[%s1 + $0x59c] sm:$0xf]
    %v273 = vld [vmem:[%s1 + $0x5a0] sm:$0xff]
    %v274 = vld [vmem:[%s1 + $0x5a8] sm:$0xf]
    %v275 = vld [vmem:[%s1 + $0x5ac] sm:$0xff]
    %v276 = vld [vmem:[%s1 + $0x5b4] sm:$0xf]
    %v277 = vld [vmem:[%s1 + $0x5b8] sm:$0xff]
    %v278 = vld [vmem:[%s1 + $0x5c0] sm:$0xf]
    %v279 = vld [vmem:[%s1 + $0x5c4] sm:$0xff]
    %v280 = vld [vmem:[%s1 + $0x5cc] sm:$0xf]
    %v281 = vld [vmem:[%s1 + $0x5d0] sm:$0xff]
    %v282 = vld [vmem:[%s1 + $0x5d8] sm:$0xf]
    %v283 = vld [vmem:[%s1 + $0x5dc] sm:$0xff]
    %v284 = vld [vmem:[%s1 + $0x5e4] sm:$0xf]
    %v285 = vld [vmem:[%s1 + $0x5e8] sm:$0xff]
    %v286 = vld [vmem:[%s1 + $0x5f0] sm:$0xf]
    %v287 = vld [vmem:[%s1 + $0x5f4] sm:$0xff]
    %v288 = vld [vmem:[%s1 + $0x5fc] sm:$0xf]
    %v289 = vld [vmem:[%s1 + $0x600] sm:$0xff]
    %v290 = vld [vmem:[%s1 + $0x608] sm:$0xf]
    %v291 = vld [vmem:[%s1 + $0x60c] sm:$0xff]
    %v292 = vld [vmem:[%s1 + $0x614] sm:$0xf]
    %v293 = vld [vmem:[%s1 + $0x618] sm:$0xff]
    %v294 = vld [vmem:[%s1 + $0x620] sm:$0xf]
    %v295 = vld [vmem:[%s1 + $0x624] sm:$0xff]
    %v296 = vld [vmem:[%s1 + $0x62c] sm:$0xf]
    %v297 = vld [vmem:[%s1 + $0x630] sm:$0xff]
    %v298 = vld [vmem:[%s1 + $0x638] sm:$0xf]
    %v299 = vld [vmem:[%s1 + $0x63c] sm:$0xff]
    %v300 = vld [vmem:[%s1 + $0x644] sm:$0xf]
    %v301 = vld [vmem:[%s1 + $0x648] sm:$0xff]
    %v302 = vld [vmem:[%s1 + $0x650] sm:$0xf]
    %v303 = vld [vmem:[%s1 + $0x654] sm:$0xff]
    %v304 = vld [vmem:[%s1 + $0x65c] sm:$0xf]
    %v305 = vld [vmem:[%s1 + $0x660] sm:$0xff]
    %v306 = vld [vmem:[%s1 + $0x668] sm:$0xf]
    %v307 = vld [vmem:[%s1 + $0x66c] sm:$0xff]
    %v308 = vld [vmem:[%s1 + $0x674] sm:$0xf]
    %v309 = vld [vmem:[%s1 + $0x678] sm:$0xff]
    %v310 = vld [vmem:[%s1 + $0x680] sm:$0xf]
    %v311 = vld [vmem:[%s1 + $0x684] sm:$0xff]
    %v312 = vld [vmem:[%s1 + $0x68c] sm:$0xf]
    %v313 = vld [vmem:[%s1 + $0x690] sm:$0xff]
    %v314 = vld [vmem:[%s1 + $0x698] sm:$0xf]
    %v315 = vld [vmem:[%s1 + $0x69c] sm:$0xff]
    %v316 = vld [vmem:[%s1 + $0x6a4] sm:$0xf]
    %v317 = vld [vmem:[%s1 + $0x6a8] sm:$0xff]
    %v318 = vld [vmem:[%s1 + $0x6b0] sm:$0xf]
    %v319 = vld [vmem:[%s1 + $0x6b4] sm:$0xff]
    %v320 = vld [vmem:[%s1 + $0x6bc] sm:$0xf]
    %v321 = vld [vmem:[%s2] sm:$0x7]
    %v323 = vlaneseq
    %v324 = vshrl.u32 %v323, 7
    %v325 = vsub.s32 0, %v324
    %v326 = vrot.slane %v321, %v325
    %v327 = vlaneseq
    %v328 = vshrl.u32 %v327, 7
    %v329 = vsub.s32 1, %v328
    %v330 = vrot.slane %v321, %v329
    %v331 = vlaneseq
    %v332 = vshrl.u32 %v331, 7
    %v333 = vsub.s32 2, %v332
    %v334 = vrot.slane %v321, %v333
    %v340 = vcombine.high %v31, %v31
    %v342 = vunpack.c.l.s4 1966171168
    %v343 = vunpack.c.0.s8 %v342
    %v344 = vlaneseq
    %v345 = vshrl.u32 %v344, 7
    %v346 = vsub.s32 %v343, %v345
    %v347 = vrot.slane %v31, %v346
    %v349 = vunpack.c.l.s4 1966171168
    %v350 = vunpack.c.0.s8 %v349
    %v351 = vlaneseq
    %v352 = vshrl.u32 %v351, 7
    %v353 = vsub.s32 %v350, %v352
    %v354 = vrot.slane %v340, %v353
    %v355 = vcombine.high %v347, %v347
    %v356 = vcombine.high %v354, %v354
    %v358 = vunpack.c.l.s4 1966171168
    %v359 = vunpack.c.0.s8 %v358
    %v360 = vlaneseq
    %v361 = vshrl.u32 %v360, 7
    %v362 = vsub.s32 %v359, %v361
    %v363 = vrot.slane %v347, %v362
    %v365 = vunpack.c.l.s4 1966171168
    %v366 = vunpack.c.0.s8 %v365
    %v367 = vlaneseq
    %v368 = vshrl.u32 %v367, 7
    %v369 = vsub.s32 %v366, %v368
    %v370 = vrot.slane %v354, %v369
    %v372 = vunpack.c.l.s4 1966171168
    %v373 = vunpack.c.0.s8 %v372
    %v374 = vlaneseq
    %v375 = vshrl.u32 %v374, 7
    %v376 = vsub.s32 %v373, %v375
    %v377 = vrot.slane %v355, %v376
    %v379 = vunpack.c.l.s4 1966171168
    %v380 = vunpack.c.0.s8 %v379
    %v381 = vlaneseq
    %v382 = vshrl.u32 %v381, 7
    %v383 = vsub.s32 %v380, %v382
    %v384 = vrot.slane %v356, %v383
    %v385 = vcombine.high %v363, %v363
    %v386 = vcombine.high %v370, %v370
    %v387 = vcombine.high %v377, %v377
    %v388 = vcombine.high %v384, %v384
    %v390 = vunpack.c.l.s4 1966171168
    %v391 = vunpack.c.0.s8 %v390
    %v392 = vlaneseq
    %v393 = vshrl.u32 %v392, 7
    %v394 = vsub.s32 %v391, %v393
    %v395 = vrot.slane %v32, %v394
    %v397 = vunpack.c.l.s4 1966171168
    %v398 = vunpack.c.0.s8 %v397
    %v399 = vlaneseq
    %v400 = vshrl.u32 %v399, 7
    %v401 = vsub.s32 %v398, %v400
    %v402 = vrot.slane %v395, %v401
    %v700 = vunpack.c.l.b16 %v33
    %v701 = vunpack.c.h.b16 %v33
    %v702 = vunpack.c.l.b16 %v34
    %v703 = vunpack.c.l.b16 %v35
    %v704 = vunpack.c.h.b16 %v35
    %v705 = vunpack.c.l.b16 %v36
    %v706 = vunpack.c.l.b16 %v37
    %v707 = vunpack.c.h.b16 %v37
    %v708 = vunpack.c.l.b16 %v38
    %v709 = vunpack.c.l.b16 %v39
    %v710 = vunpack.c.h.b16 %v39
    %v711 = vunpack.c.l.b16 %v40
    %v712 = vunpack.c.l.b16 %v41
    %v713 = vunpack.c.h.b16 %v41
    %v714 = vunpack.c.l.b16 %v42
    %v715 = vunpack.c.l.b16 %v43
    %v716 = vunpack.c.h.b16 %v43
    %v717 = vunpack.c.l.b16 %v44
    %v718 = vunpack.c.l.b16 %v45
    %v719 = vunpack.c.h.b16 %v45
    %v720 = vunpack.c.l.b16 %v46
    %v721 = vunpack.c.l.b16 %v47
    %v722 = vunpack.c.h.b16 %v47
    %v723 = vunpack.c.l.b16 %v48
    %v724 = vunpack.c.l.b16 %v49
    %v725 = vunpack.c.h.b16 %v49
    %v726 = vunpack.c.l.b16 %v50
    %v727 = vunpack.c.l.b16 %v51
    %v728 = vunpack.c.h.b16 %v51
    %v729 = vunpack.c.l.b16 %v52
    %v730 = vunpack.c.l.b16 %v53
    %v731 = vunpack.c.h.b16 %v53
    %v732 = vunpack.c.l.b16 %v54
    %v733 = vunpack.c.l.b16 %v55
    %v734 = vunpack.c.h.b16 %v55
    %v735 = vunpack.c.l.b16 %v56
    %v736 = vunpack.c.l.b16 %v57
    %v737 = vunpack.c.h.b16 %v57
    %v738 = vunpack.c.l.b16 %v58
    %v739 = vunpack.c.l.b16 %v59
    %v740 = vunpack.c.h.b16 %v59
    %v741 = vunpack.c.l.b16 %v60
    %v742 = vunpack.c.l.b16 %v61
    %v743 = vunpack.c.h.b16 %v61
    %v744 = vunpack.c.l.b16 %v62
    %v745 = vunpack.c.l.b16 %v63
    %v746 = vunpack.c.h.b16 %v63
    %v747 = vunpack.c.l.b16 %v64
    %v748 = vunpack.c.l.b16 %v65
    %v749 = vunpack.c.h.b16 %v65
    %v750 = vunpack.c.l.b16 %v66
    %v751 = vunpack.c.l.b16 %v67
    %v752 = vunpack.c.h.b16 %v67
    %v753 = vunpack.c.l.b16 %v68
    %v754 = vunpack.c.l.b16 %v69
    %v755 = vunpack.c.h.b16 %v69
    %v756 = vunpack.c.l.b16 %v70
    %v757 = vunpack.c.l.b16 %v71
    %v758 = vunpack.c.h.b16 %v71
    %v759 = vunpack.c.l.b16 %v72
    %v760 = vunpack.c.l.b16 %v73
    %v761 = vunpack.c.h.b16 %v73
    %v762 = vunpack.c.l.b16 %v74
    %v763 = vunpack.c.l.b16 %v75
    %v764 = vunpack.c.h.b16 %v75
    %v765 = vunpack.c.l.b16 %v76
    %v766 = vunpack.c.l.b16 %v77
    %v767 = vunpack.c.h.b16 %v77
    %v768 = vunpack.c.l.b16 %v78
    %v769 = vunpack.c.l.b16 %v79
    %v770 = vunpack.c.h.b16 %v79
    %v771 = vunpack.c.l.b16 %v80
    %v772 = vunpack.c.l.b16 %v81
    %v773 = vunpack.c.h.b16 %v81
    %v774 = vunpack.c.l.b16 %v82
    %v775 = vunpack.c.l.b16 %v83
    %v776 = vunpack.c.h.b16 %v83
    %v777 = vunpack.c.l.b16 %v84
    %v778 = vunpack.c.l.b16 %v85
    %v779 = vunpack.c.h.b16 %v85
    %v780 = vunpack.c.l.b16 %v86
    %v781 = vunpack.c.l.b16 %v87
    %v782 = vunpack.c.h.b16 %v87
    %v783 = vunpack.c.l.b16 %v88
    %v784 = vunpack.c.l.b16 %v89
    %v785 = vunpack.c.h.b16 %v89
    %v786 = vunpack.c.l.b16 %v90
    %v787 = vunpack.c.l.b16 %v91
    %v788 = vunpack.c.h.b16 %v91
    %v789 = vunpack.c.l.b16 %v92
    %v790 = vunpack.c.l.b16 %v93
    %v791 = vunpack.c.h.b16 %v93
    %v792 = vunpack.c.l.b16 %v94
    %v793 = vunpack.c.l.b16 %v95
    %v794 = vunpack.c.h.b16 %v95
    %v795 = vunpack.c.l.b16 %v96
    %v796 = vunpack.c.l.b16 %v97
    %v797 = vunpack.c.h.b16 %v97
    %v798 = vunpack.c.l.b16 %v98
    %v799 = vunpack.c.l.b16 %v99
    %v800 = vunpack.c.h.b16 %v99
    %v801 = vunpack.c.l.b16 %v100
    %v802 = vunpack.c.l.b16 %v101
    %v803 = vunpack.c.h.b16 %v101
    %v804 = vunpack.c.l.b16 %v102
    %v805 = vunpack.c.l.b16 %v103
    %v806 = vunpack.c.h.b16 %v103
    %v807 = vunpack.c.l.b16 %v104
    %v808 = vunpack.c.l.b16 %v105
    %v809 = vunpack.c.h.b16 %v105
    %v810 = vunpack.c.l.b16 %v106
    %v811 = vunpack.c.l.b16 %v107
    %v812 = vunpack.c.h.b16 %v107
    %v813 = vunpack.c.l.b16 %v108
    %v814 = vunpack.c.l.b16 %v109
    %v815 = vunpack.c.h.b16 %v109
    %v816 = vunpack.c.l.b16 %v110
    %v817 = vunpack.c.l.b16 %v111
    %v818 = vunpack.c.h.b16 %v111
    %v819 = vunpack.c.l.b16 %v112
    %v820 = vunpack.c.l.b16 %v113
    %v821 = vunpack.c.h.b16 %v113
    %v822 = vunpack.c.l.b16 %v114
    %v823 = vunpack.c.l.b16 %v115
    %v824 = vunpack.c.h.b16 %v115
    %v825 = vunpack.c.l.b16 %v116
    %v826 = vunpack.c.l.b16 %v117
    %v827 = vunpack.c.h.b16 %v117
    %v828 = vunpack.c.l.b16 %v118
    %v829 = vunpack.c.l.b16 %v119
    %v830 = vunpack.c.h.b16 %v119
    %v831 = vunpack.c.l.b16 %v120
    %v832 = vunpack.c.l.b16 %v121
    %v833 = vunpack.c.h.b16 %v121
    %v834 = vunpack.c.l.b16 %v122
    %v835 = vunpack.c.l.b16 %v123
    %v836 = vunpack.c.h.b16 %v123
    %v837 = vunpack.c.l.b16 %v124
    %v838 = vunpack.c.l.b16 %v125
    %v839 = vunpack.c.h.b16 %v125
    %v840 = vunpack.c.l.b16 %v126
    %v841 = vunpack.c.l.b16 %v127
    %v842 = vunpack.c.h.b16 %v127
    %v843 = vunpack.c.l.b16 %v128
    %v844 = vunpack.c.l.b16 %v129
    %v845 = vunpack.c.h.b16 %v129
    %v846 = vunpack.c.l.b16 %v130
    %v847 = vunpack.c.l.b16 %v131
    %v848 = vunpack.c.h.b16 %v131
    %v849 = vunpack.c.l.b16 %v132
    %v850 = vunpack.c.l.b16 %v133
    %v851 = vunpack.c.h.b16 %v133
    %v852 = vunpack.c.l.b16 %v134
    %v853 = vunpack.c.l.b16 %v135
    %v854 = vunpack.c.h.b16 %v135
    %v855 = vunpack.c.l.b16 %v136
    %v856 = vunpack.c.l.b16 %v137
    %v857 = vunpack.c.h.b16 %v137
    %v858 = vunpack.c.l.b16 %v138
    %v859 = vunpack.c.l.b16 %v139
    %v860 = vunpack.c.h.b16 %v139
    %v861 = vunpack.c.l.b16 %v140
    %v862 = vunpack.c.l.b16 %v141
    %v863 = vunpack.c.h.b16 %v141
    %v864 = vunpack.c.l.b16 %v142
    %v865 = vunpack.c.l.b16 %v143
    %v866 = vunpack.c.h.b16 %v143
    %v867 = vunpack.c.l.b16 %v144
    %v868 = vunpack.c.l.b16 %v145
    %v869 = vunpack.c.h.b16 %v145
    %v870 = vunpack.c.l.b16 %v146
    %v871 = vunpack.c.l.b16 %v147
    %v872 = vunpack.c.h.b16 %v147
    %v873 = vunpack.c.l.b16 %v148
    %v874 = vunpack.c.l.b16 %v149
    %v875 = vunpack.c.h.b16 %v149
    %v876 = vunpack.c.l.b16 %v150
    %v877 = vunpack.c.l.b16 %v151
    %v878 = vunpack.c.h.b16 %v151
    %v879 = vunpack.c.l.b16 %v152
    %v880 = vunpack.c.l.b16 %v153
    %v881 = vunpack.c.h.b16 %v153
    %v882 = vunpack.c.l.b16 %v154
    %v883 = vunpack.c.l.b16 %v155
    %v884 = vunpack.c.h.b16 %v155
    %v885 = vunpack.c.l.b16 %v156
    %v886 = vunpack.c.l.b16 %v157
    %v887 = vunpack.c.h.b16 %v157
    %v888 = vunpack.c.l.b16 %v158
    %v889 = vunpack.c.l.b16 %v159
    %v890 = vunpack.c.h.b16 %v159
    %v891 = vunpack.c.l.b16 %v160
    %v892 = vunpack.c.l.b16 %v161
    %v893 = vunpack.c.h.b16 %v161
    %v894 = vunpack.c.l.b16 %v162
    %v895 = vunpack.c.l.b16 %v163
    %v896 = vunpack.c.h.b16 %v163
    %v897 = vunpack.c.l.b16 %v164
    %v898 = vunpack.c.l.b16 %v165
    %v899 = vunpack.c.h.b16 %v165
    %v900 = vunpack.c.l.b16 %v166
    %v901 = vunpack.c.l.b16 %v167
    %v902 = vunpack.c.h.b16 %v167
    %v903 = vunpack.c.l.b16 %v168
    %v904 = vunpack.c.l.b16 %v169
    %v905 = vunpack.c.h.b16 %v169
    %v906 = vunpack.c.l.b16 %v170
    %v907 = vunpack.c.l.b16 %v171
    %v908 = vunpack.c.h.b16 %v171
    %v909 = vunpack.c.l.b16 %v172
    %v910 = vunpack.c.l.b16 %v173
    %v911 = vunpack.c.h.b16 %v173
    %v912 = vunpack.c.l.b16 %v174
    %v913 = vunpack.c.l.b16 %v175
    %v914 = vunpack.c.h.b16 %v175
    %v915 = vunpack.c.l.b16 %v176
    %v916 = vunpack.c.l.b16 %v177
    %v917 = vunpack.c.h.b16 %v177
    %v918 = vunpack.c.l.b16 %v178
    %v919 = vunpack.c.l.b16 %v179
    %v920 = vunpack.c.h.b16 %v179
    %v921 = vunpack.c.l.b16 %v180
    %v922 = vunpack.c.l.b16 %v181
    %v923 = vunpack.c.h.b16 %v181
    %v924 = vunpack.c.l.b16 %v182
    %v925 = vunpack.c.l.b16 %v183
    %v926 = vunpack.c.h.b16 %v183
    %v927 = vunpack.c.l.b16 %v184
    %v928 = vunpack.c.l.b16 %v185
    %v929 = vunpack.c.h.b16 %v185
    %v930 = vunpack.c.l.b16 %v186
    %v931 = vunpack.c.l.b16 %v187
    %v932 = vunpack.c.h.b16 %v187
    %v933 = vunpack.c.l.b16 %v188
    %v934 = vunpack.c.l.b16 %v189
    %v935 = vunpack.c.h.b16 %v189
    %v936 = vunpack.c.l.b16 %v190
    %v937 = vunpack.c.l.b16 %v191
    %v938 = vunpack.c.h.b16 %v191
    %v939 = vunpack.c.l.b16 %v192
    %v940 = vunpack.c.l.b16 %v193
    %v941 = vunpack.c.h.b16 %v193
    %v942 = vunpack.c.l.b16 %v194
    %v943 = vunpack.c.l.b16 %v195
    %v944 = vunpack.c.h.b16 %v195
    %v945 = vunpack.c.l.b16 %v196
    %v946 = vunpack.c.l.b16 %v197
    %v947 = vunpack.c.h.b16 %v197
    %v948 = vunpack.c.l.b16 %v198
    %v949 = vunpack.c.l.b16 %v199
    %v950 = vunpack.c.h.b16 %v199
    %v951 = vunpack.c.l.b16 %v200
    %v952 = vunpack.c.l.b16 %v201
    %v953 = vunpack.c.h.b16 %v201
    %v954 = vunpack.c.l.b16 %v202
    %v955 = vunpack.c.l.b16 %v203
    %v956 = vunpack.c.h.b16 %v203
    %v957 = vunpack.c.l.b16 %v204
    %v958 = vunpack.c.l.b16 %v205
    %v959 = vunpack.c.h.b16 %v205
    %v960 = vunpack.c.l.b16 %v206
    %v961 = vunpack.c.l.b16 %v207
    %v962 = vunpack.c.h.b16 %v207
    %v963 = vunpack.c.l.b16 %v208
    %v964 = vunpack.c.l.b16 %v209
    %v965 = vunpack.c.h.b16 %v209
    %v966 = vunpack.c.l.b16 %v210
    %v967 = vunpack.c.l.b16 %v211
    %v968 = vunpack.c.h.b16 %v211
    %v969 = vunpack.c.l.b16 %v212
    %v970 = vunpack.c.l.b16 %v213
    %v971 = vunpack.c.h.b16 %v213
    %v972 = vunpack.c.l.b16 %v214
    %v973 = vunpack.c.l.b16 %v215
    %v974 = vunpack.c.h.b16 %v215
    %v975 = vunpack.c.l.b16 %v216
    %v976 = vunpack.c.l.b16 %v217
    %v977 = vunpack.c.h.b16 %v217
    %v978 = vunpack.c.l.b16 %v218
    %v979 = vunpack.c.l.b16 %v219
    %v980 = vunpack.c.h.b16 %v219
    %v981 = vunpack.c.l.b16 %v220
    %v982 = vunpack.c.l.b16 %v221
    %v983 = vunpack.c.h.b16 %v221
    %v984 = vunpack.c.l.b16 %v222
    %v985 = vunpack.c.l.b16 %v223
    %v986 = vunpack.c.h.b16 %v223
    %v987 = vunpack.c.l.b16 %v224
    %v988 = vunpack.c.l.b16 %v225
    %v989 = vunpack.c.h.b16 %v225
    %v990 = vunpack.c.l.b16 %v226
    %v991 = vunpack.c.l.b16 %v227
    %v992 = vunpack.c.h.b16 %v227
    %v993 = vunpack.c.l.b16 %v228
    %v994 = vunpack.c.l.b16 %v229
    %v995 = vunpack.c.h.b16 %v229
    %v996 = vunpack.c.l.b16 %v230
    %v997 = vunpack.c.l.b16 %v231
    %v998 = vunpack.c.h.b16 %v231
    %v999 = vunpack.c.l.b16 %v232
    %v1000 = vunpack.c.l.b16 %v233
    %v1001 = vunpack.c.h.b16 %v233
    %v1002 = vunpack.c.l.b16 %v234
    %v1003 = vunpack.c.l.b16 %v235
    %v1004 = vunpack.c.h.b16 %v235
    %v1005 = vunpack.c.l.b16 %v236
    %v1006 = vunpack.c.l.b16 %v237
    %v1007 = vunpack.c.h.b16 %v237
    %v1008 = vunpack.c.l.b16 %v238
    %v1009 = vunpack.c.l.b16 %v239
    %v1010 = vunpack.c.h.b16 %v239
    %v1011 = vunpack.c.l.b16 %v240
    %v1012 = vunpack.c.l.b16 %v241
    %v1013 = vunpack.c.h.b16 %v241
    %v1014 = vunpack.c.l.b16 %v242
    %v1015 = vunpack.c.l.b16 %v243
    %v1016 = vunpack.c.h.b16 %v243
    %v1017 = vunpack.c.l.b16 %v244
    %v1018 = vunpack.c.l.b16 %v245
    %v1019 = vunpack.c.h.b16 %v245
    %v1020 = vunpack.c.l.b16 %v246
    %v1021 = vunpack.c.l.b16 %v247
    %v1022 = vunpack.c.h.b16 %v247
    %v1023 = vunpack.c.l.b16 %v248
    %v1024 = vunpack.c.l.b16 %v249
    %v1025 = vunpack.c.h.b16 %v249
    %v1026 = vunpack.c.l.b16 %v250
    %v1027 = vunpack.c.l.b16 %v251
    %v1028 = vunpack.c.h.b16 %v251
    %v1029 = vunpack.c.l.b16 %v252
    %v1030 = vunpack.c.l.b16 %v253
    %v1031 = vunpack.c.h.b16 %v253
    %v1032 = vunpack.c.l.b16 %v254
    %v1033 = vunpack.c.l.b16 %v255
    %v1034 = vunpack.c.h.b16 %v255
    %v1035 = vunpack.c.l.b16 %v256
    %v1036 = vunpack.c.l.b16 %v257
    %v1037 = vunpack.c.h.b16 %v257
    %v1038 = vunpack.c.l.b16 %v258
    %v1039 = vunpack.c.l.b16 %v259
    %v1040 = vunpack.c.h.b16 %v259
    %v1041 = vunpack.c.l.b16 %v260
    %v1042 = vunpack.c.l.b16 %v261
    %v1043 = vunpack.c.h.b16 %v261
    %v1044 = vunpack.c.l.b16 %v262
    %v1045 = vunpack.c.l.b16 %v263
    %v1046 = vunpack.c.h.b16 %v263
    %v1047 = vunpack.c.l.b16 %v264
    %v1048 = vunpack.c.l.b16 %v265
    %v1049 = vunpack.c.h.b16 %v265
    %v1050 = vunpack.c.l.b16 %v266
    %v1051 = vunpack.c.l.b16 %v267
    %v1052 = vunpack.c.h.b16 %v267
    %v1053 = vunpack.c.l.b16 %v268
    %v1054 = vunpack.c.l.b16 %v269
    %v1055 = vunpack.c.h.b16 %v269
    %v1056 = vunpack.c.l.b16 %v270
    %v1057 = vunpack.c.l.b16 %v271
    %v1058 = vunpack.c.h.b16 %v271
    %v1059 = vunpack.c.l.b16 %v272
    %v1060 = vunpack.c.l.b16 %v273
    %v1061 = vunpack.c.h.b16 %v273
    %v1062 = vunpack.c.l.b16 %v274
    %v1063 = vunpack.c.l.b16 %v275
    %v1064 = vunpack.c.h.b16 %v275
    %v1065 = vunpack.c.l.b16 %v276
    %v1066 = vunpack.c.l.b16 %v277
    %v1067 = vunpack.c.h.b16 %v277
    %v1068 = vunpack.c.l.b16 %v278
    %v1069 = vunpack.c.l.b16 %v279
    %v1070 = vunpack.c.h.b16 %v279
    %v1071 = vunpack.c.l.b16 %v280
    %v1072 = vunpack.c.l.b16 %v281
    %v1073 = vunpack.c.h.b16 %v281
    %v1074 = vunpack.c.l.b16 %v282
    %v1075 = vunpack.c.l.b16 %v283
    %v1076 = vunpack.c.h.b16 %v283
    %v1077 = vunpack.c.l.b16 %v284
    %v1078 = vunpack.c.l.b16 %v285
    %v1079 = vunpack.c.h.b16 %v285
    %v1080 = vunpack.c.l.b16 %v286
    %v1081 = vunpack.c.l.b16 %v287
    %v1082 = vunpack.c.h.b16 %v287
    %v1083 = vunpack.c.l.b16 %v288
    %v1084 = vunpack.c.l.b16 %v289
    %v1085 = vunpack.c.h.b16 %v289
    %v1086 = vunpack.c.l.b16 %v290
    %v1087 = vunpack.c.l.b16 %v291
    %v1088 = vunpack.c.h.b16 %v291
    %v1089 = vunpack.c.l.b16 %v292
    %v1090 = vunpack.c.l.b16 %v293
    %v1091 = vunpack.c.h.b16 %v293
    %v1092 = vunpack.c.l.b16 %v294
    %v1093 = vunpack.c.l.b16 %v295
    %v1094 = vunpack.c.h.b16 %v295
    %v1095 = vunpack.c.l.b16 %v296
    %v1096 = vunpack.c.l.b16 %v297
    %v1097 = vunpack.c.h.b16 %v297
    %v1098 = vunpack.c.l.b16 %v298
    %v1099 = vunpack.c.l.b16 %v299
    %v1100 = vunpack.c.h.b16 %v299
    %v1101 = vunpack.c.l.b16 %v300
    %v1102 = vunpack.c.l.b16 %v301
    %v1103 = vunpack.c.h.b16 %v301
    %v1104 = vunpack.c.l.b16 %v302
    %v1105 = vunpack.c.l.b16 %v303
    %v1106 = vunpack.c.h.b16 %v303
    %v1107 = vunpack.c.l.b16 %v304
    %v1108 = vunpack.c.l.b16 %v305
    %v1109 = vunpack.c.h.b16 %v305
    %v1110 = vunpack.c.l.b16 %v306
    %v1111 = vunpack.c.l.b16 %v307
    %v1112 = vunpack.c.h.b16 %v307
    %v1113 = vunpack.c.l.b16 %v308
    %v1114 = vunpack.c.l.b16 %v309
    %v1115 = vunpack.c.h.b16 %v309
    %v1116 = vunpack.c.l.b16 %v310
    %v1117 = vunpack.c.l.b16 %v311
    %v1118 = vunpack.c.h.b16 %v311
    %v1119 = vunpack.c.l.b16 %v312
    %v1120 = vunpack.c.l.b16 %v313
    %v1121 = vunpack.c.h.b16 %v313
    %v1122 = vunpack.c.l.b16 %v314
    %v1123 = vunpack.c.l.b16 %v315
    %v1124 = vunpack.c.h.b16 %v315
    %v1125 = vunpack.c.l.b16 %v316
    %v1126 = vunpack.c.l.b16 %v317
    %v1127 = vunpack.c.h.b16 %v317
    %v1128 = vunpack.c.l.b16 %v318
    %v1129 = vunpack.c.l.b16 %v319
    %v1130 = vunpack.c.h.b16 %v319
    %v1131 = vunpack.c.l.b16 %v320
    %v1132 = vpack.c.b16 %v703, %v700
    %v1133 = vpack.c.b16 %v704, %v701
    %v1134 = vpack.c.b16 %v705, %v702
    %v1135 = vpack.c.b16 %v709, %v706
    %v1136 = vpack.c.b16 %v710, %v707
    %v1137 = vpack.c.b16 %v711, %v708
    %v1138 = vpack.c.b16 %v715, %v712
    %v1139 = vpack.c.b16 %v716, %v713
    %v1140 = vpack.c.b16 %v717, %v714
    %v1141 = vpack.c.b16 %v721, %v718
    %v1142 = vpack.c.b16 %v722, %v719
    %v1143 = vpack.c.b16 %v723, %v720
    %v1144 = vpack.c.b16 %v727, %v724
    %v1145 = vpack.c.b16 %v728, %v725
    %v1146 = vpack.c.b16 %v729, %v726
    %v1147 = vpack.c.b16 %v733, %v730
    %v1148 = vpack.c.b16 %v734, %v731
    %v1149 = vpack.c.b16 %v735, %v732
    %v1150 = vpack.c.b16 %v739, %v736
    %v1151 = vpack.c.b16 %v740, %v737
    %v1152 = vpack.c.b16 %v741, %v738
    %v1153 = vpack.c.b16 %v745, %v742
    %v1154 = vpack.c.b16 %v746, %v743
    %v1155 = vpack.c.b16 %v747, %v744
    %v1156 = vpack.c.b16 %v751, %v748
    %v1157 = vpack.c.b16 %v752, %v749
    %v1158 = vpack.c.b16 %v753, %v750
    %v1159 = vpack.c.b16 %v757, %v754
    %v1160 = vpack.c.b16 %v758, %v755
    %v1161 = vpack.c.b16 %v759, %v756
    %v1162 = vpack.c.b16 %v763, %v760
    %v1163 = vpack.c.b16 %v764, %v761
    %v1164 = vpack.c.b16 %v765, %v762
    %v1165 = vpack.c.b16 %v769, %v766
    %v1166 = vpack.c.b16 %v770, %v767
    %v1167 = vpack.c.b16 %v771, %v768
    %v1168 = vpack.c.b16 %v775, %v772
    %v1169 = vpack.c.b16 %v776, %v773
    %v1170 = vpack.c.b16 %v777, %v774
    %v1171 = vpack.c.b16 %v781, %v778
    %v1172 = vpack.c.b16 %v782, %v779
    %v1173 = vpack.c.b16 %v783, %v780
    %v1174 = vpack.c.b16 %v787, %v784
    %v1175 = vpack.c.b16 %v788, %v785
    %v1176 = vpack.c.b16 %v789, %v786
    %v1177 = vpack.c.b16 %v793, %v790
    %v1178 = vpack.c.b16 %v794, %v791
    %v1179 = vpack.c.b16 %v795, %v792
    %v1180 = vpack.c.b16 %v799, %v796
    %v1181 = vpack.c.b16 %v800, %v797
    %v1182 = vpack.c.b16 %v801, %v798
    %v1183 = vpack.c.b16 %v805, %v802
    %v1184 = vpack.c.b16 %v806, %v803
    %v1185 = vpack.c.b16 %v807, %v804
    %v1186 = vpack.c.b16 %v811, %v808
    %v1187 = vpack.c.b16 %v812, %v809
    %v1188 = vpack.c.b16 %v813, %v810
    %v1189 = vpack.c.b16 %v817, %v814
    %v1190 = vpack.c.b16 %v818, %v815
    %v1191 = vpack.c.b16 %v819, %v816
    %v1192 = vpack.c.b16 %v823, %v820
    %v1193 = vpack.c.b16 %v824, %v821
    %v1194 = vpack.c.b16 %v825, %v822
    %v1195 = vpack.c.b16 %v829, %v826
    %v1196 = vpack.c.b16 %v830, %v827
    %v1197 = vpack.c.b16 %v831, %v828
    %v1198 = vpack.c.b16 %v835, %v832
    %v1199 = vpack.c.b16 %v836, %v833
    %v1200 = vpack.c.b16 %v837, %v834
    %v1201 = vpack.c.b16 %v841, %v838
    %v1202 = vpack.c.b16 %v842, %v839
    %v1203 = vpack.c.b16 %v843, %v840
    %v1204 = vpack.c.b16 %v847, %v844
    %v1205 = vpack.c.b16 %v848, %v845
    %v1206 = vpack.c.b16 %v849, %v846
    %v1207 = vpack.c.b16 %v853, %v850
    %v1208 = vpack.c.b16 %v854, %v851
    %v1209 = vpack.c.b16 %v855, %v852
    %v1210 = vpack.c.b16 %v859, %v856
    %v1211 = vpack.c.b16 %v860, %v857
    %v1212 = vpack.c.b16 %v861, %v858
    %v1213 = vpack.c.b16 %v865, %v862
    %v1214 = vpack.c.b16 %v866, %v863
    %v1215 = vpack.c.b16 %v867, %v864
    %v1216 = vpack.c.b16 %v871, %v868
    %v1217 = vpack.c.b16 %v872, %v869
    %v1218 = vpack.c.b16 %v873, %v870
    %v1219 = vpack.c.b16 %v877, %v874
    %v1220 = vpack.c.b16 %v878, %v875
    %v1221 = vpack.c.b16 %v879, %v876
    %v1222 = vpack.c.b16 %v883, %v880
    %v1223 = vpack.c.b16 %v884, %v881
    %v1224 = vpack.c.b16 %v885, %v882
    %v1225 = vpack.c.b16 %v889, %v886
    %v1226 = vpack.c.b16 %v890, %v887
    %v1227 = vpack.c.b16 %v891, %v888
    %v1228 = vpack.c.b16 %v895, %v892
    %v1229 = vpack.c.b16 %v896, %v893
    %v1230 = vpack.c.b16 %v897, %v894
    %v1231 = vpack.c.b16 %v901, %v898
    %v1232 = vpack.c.b16 %v902, %v899
    %v1233 = vpack.c.b16 %v903, %v900
    %v1234 = vpack.c.b16 %v907, %v904
    %v1235 = vpack.c.b16 %v908, %v905
    %v1236 = vpack.c.b16 %v909, %v906
    %v1237 = vpack.c.b16 %v913, %v910
    %v1238 = vpack.c.b16 %v914, %v911
    %v1239 = vpack.c.b16 %v915, %v912
    %v1240 = vpack.c.b16 %v919, %v916
    %v1241 = vpack.c.b16 %v920, %v917
    %v1242 = vpack.c.b16 %v921, %v918
    %v1243 = vpack.c.b16 %v925, %v922
    %v1244 = vpack.c.b16 %v926, %v923
    %v1245 = vpack.c.b16 %v927, %v924
    %v1246 = vpack.c.b16 %v931, %v928
    %v1247 = vpack.c.b16 %v932, %v929
    %v1248 = vpack.c.b16 %v933, %v930
    %v1249 = vpack.c.b16 %v937, %v934
    %v1250 = vpack.c.b16 %v938, %v935
    %v1251 = vpack.c.b16 %v939, %v936
    %v1252 = vpack.c.b16 %v943, %v940
    %v1253 = vpack.c.b16 %v944, %v941
    %v1254 = vpack.c.b16 %v945, %v942
    %v1255 = vpack.c.b16 %v949, %v946
    %v1256 = vpack.c.b16 %v950, %v947
    %v1257 = vpack.c.b16 %v951, %v948
    %v1258 = vpack.c.b16 %v955, %v952
    %v1259 = vpack.c.b16 %v956, %v953
    %v1260 = vpack.c.b16 %v957, %v954
    %v1261 = vpack.c.b16 %v961, %v958
    %v1262 = vpack.c.b16 %v962, %v959
    %v1263 = vpack.c.b16 %v963, %v960
    %v1264 = vpack.c.b16 %v967, %v964
    %v1265 = vpack.c.b16 %v968, %v965
    %v1266 = vpack.c.b16 %v969, %v966
    %v1267 = vpack.c.b16 %v973, %v970
    %v1268 = vpack.c.b16 %v974, %v971
    %v1269 = vpack.c.b16 %v975, %v972
    %v1270 = vpack.c.b16 %v979, %v976
    %v1271 = vpack.c.b16 %v980, %v977
    %v1272 = vpack.c.b16 %v981, %v978
    %v1273 = vpack.c.b16 %v985, %v982
    %v1274 = vpack.c.b16 %v986, %v983
    %v1275 = vpack.c.b16 %v987, %v984
    %v1276 = vpack.c.b16 %v991, %v988
    %v1277 = vpack.c.b16 %v992, %v989
    %v1278 = vpack.c.b16 %v993, %v990
    %v1279 = vpack.c.b16 %v997, %v994
    %v1280 = vpack.c.b16 %v998, %v995
    %v1281 = vpack.c.b16 %v999, %v996
    %v1282 = vpack.c.b16 %v1003, %v1000
    %v1283 = vpack.c.b16 %v1004, %v1001
    %v1284 = vpack.c.b16 %v1005, %v1002
    %v1285 = vpack.c.b16 %v1009, %v1006
    %v1286 = vpack.c.b16 %v1010, %v1007
    %v1287 = vpack.c.b16 %v1011, %v1008
    %v1288 = vpack.c.b16 %v1015, %v1012
    %v1289 = vpack.c.b16 %v1016, %v1013
    %v1290 = vpack.c.b16 %v1017, %v1014
    %v1291 = vpack.c.b16 %v1021, %v1018
    %v1292 = vpack.c.b16 %v1022, %v1019
    %v1293 = vpack.c.b16 %v1023, %v1020
    %v1294 = vpack.c.b16 %v1027, %v1024
    %v1295 = vpack.c.b16 %v1028, %v1025
    %v1296 = vpack.c.b16 %v1029, %v1026
    %v1297 = vpack.c.b16 %v1033, %v1030
    %v1298 = vpack.c.b16 %v1034, %v1031
    %v1299 = vpack.c.b16 %v1035, %v1032
    %v1300 = vpack.c.b16 %v1039, %v1036
    %v1301 = vpack.c.b16 %v1040, %v1037
    %v1302 = vpack.c.b16 %v1041, %v1038
    %v1303 = vpack.c.b16 %v1045, %v1042
    %v1304 = vpack.c.b16 %v1046, %v1043
    %v1305 = vpack.c.b16 %v1047, %v1044
    %v1306 = vpack.c.b16 %v1051, %v1048
    %v1307 = vpack.c.b16 %v1052, %v1049
    %v1308 = vpack.c.b16 %v1053, %v1050
    %v1309 = vpack.c.b16 %v1057, %v1054
    %v1310 = vpack.c.b16 %v1058, %v1055
    %v1311 = vpack.c.b16 %v1059, %v1056
    %v1312 = vpack.c.b16 %v1063, %v1060
    %v1313 = vpack.c.b16 %v1064, %v1061
    %v1314 = vpack.c.b16 %v1065, %v1062
    %v1315 = vpack.c.b16 %v1069, %v1066
    %v1316 = vpack.c.b16 %v1070, %v1067
    %v1317 = vpack.c.b16 %v1071, %v1068
    %v1318 = vpack.c.b16 %v1075, %v1072
    %v1319 = vpack.c.b16 %v1076, %v1073
    %v1320 = vpack.c.b16 %v1077, %v1074
    %v1321 = vpack.c.b16 %v1081, %v1078
    %v1322 = vpack.c.b16 %v1082, %v1079
    %v1323 = vpack.c.b16 %v1083, %v1080
    %v1324 = vpack.c.b16 %v1087, %v1084
    %v1325 = vpack.c.b16 %v1088, %v1085
    %v1326 = vpack.c.b16 %v1089, %v1086
    %v1327 = vpack.c.b16 %v1093, %v1090
    %v1328 = vpack.c.b16 %v1094, %v1091
    %v1329 = vpack.c.b16 %v1095, %v1092
    %v1330 = vpack.c.b16 %v1099, %v1096
    %v1331 = vpack.c.b16 %v1100, %v1097
    %v1332 = vpack.c.b16 %v1101, %v1098
    %v1333 = vpack.c.b16 %v1105, %v1102
    %v1334 = vpack.c.b16 %v1106, %v1103
    %v1335 = vpack.c.b16 %v1107, %v1104
    %v1336 = vpack.c.b16 %v1111, %v1108
    %v1337 = vpack.c.b16 %v1112, %v1109
    %v1338 = vpack.c.b16 %v1113, %v1110
    %v1339 = vpack.c.b16 %v1117, %v1114
    %v1340 = vpack.c.b16 %v1118, %v1115
    %v1341 = vpack.c.b16 %v1119, %v1116
    %v1342 = vpack.c.b16 %v1123, %v1120
    %v1343 = vpack.c.b16 %v1124, %v1121
    %v1344 = vpack.c.b16 %v1125, %v1122
    %v1345 = vpack.c.b16 %v1129, %v1126
    %v1346 = vpack.c.b16 %v1130, %v1127
    %v1347 = vpack.c.b16 %v1131, %v1128
    %1564 = vmatprep.subr.bf16.mxu0 %v1154
    %1565 = vmatpush1.bf16.msra.mxu0 %v1153
    %1566 = vmatprep.subr.bf16.mxu0 %v1151
    %1567 = vmatpush1.bf16.msra.mxu0 %v1150
    %1568 = vmatprep.subr.bf16.mxu0 %v1148
    %1569 = vmatpush1.bf16.msra.mxu0 %v1147
    %1570 = vmatprep.subr.bf16.mxu0 %v1145
    %1571 = vmatpush1.bf16.msra.mxu0 %v1144
    %1572 = vmatprep.subr.bf16.mxu0 %v1142
    %1573 = vmatpush1.bf16.msra.mxu0 %v1141
    %1574 = vmatprep.subr.bf16.mxu0 %v1139
    %1575 = vmatpush1.bf16.msra.mxu0 %v1138
    %1576 = vmatprep.subr.bf16.mxu0 %v1136
    %1577 = vmatpush1.bf16.msra.mxu0 %v1135
    %1578 = vmatprep.subr.bf16.mxu0 %v1133
    %1579 = vmatpush1.bf16.msra.mxu0 %v1132
    %1580 = vmatprep.subr.bf16.mxu0 %v1178
    %1581 = vmatpush2.bf16.msra.mxu0 %v1177
    %1582 = vmatprep.subr.bf16.mxu0 %v1175
    %1583 = vmatpush2.bf16.msra.mxu0 %v1174
    %1584 = vmatprep.subr.bf16.mxu0 %v1172
    %1585 = vmatpush2.bf16.msra.mxu0 %v1171
    %1586 = vmatprep.subr.bf16.mxu0 %v1169
    %1587 = vmatpush2.bf16.msra.mxu0 %v1168
    %1588 = vmatprep.subr.bf16.mxu0 %v1166
    %1589 = vmatpush2.bf16.msra.mxu0 %v1165
    %1590 = vmatprep.subr.bf16.mxu0 %v1163
    %1591 = vmatpush2.bf16.msra.mxu0 %v1162
    %1592 = vmatprep.subr.bf16.mxu0 %v1160
    %1593 = vmatpush2.bf16.msra.mxu0 %v1159
    %1594 = vmatprep.subr.bf16.mxu0 %v1157
    %1595 = vmatpush2.bf16.msra.mxu0 %v1156
    %1596 = vmatprep.mubr.bf16.mxu0 %v377
    %1597 = vmatmul.mubr.bf16.gmra.mxu0 %v363
    %v1598 = vpop.f32.mrf.mxu0
    %v1599 = vadd.f32 %v326, %v1598
    %v1600 = vpop.f32.mrf.mxu0
    %v1601 = vadd.f32 %v330, %v1600
    %v1602 = vpop.f32.mrf.mxu0
    %v1603 = vpop.f32.mrf.mxu0
    %1604 = vdwg.mxu0
    %1605 = vmatprep.subr.bf16.mxu0 %v1202
    %1606 = vmatpush1.bf16.msra.mxu0 %v1201
    %1607 = vmatprep.subr.bf16.mxu0 %v1199
    %1608 = vmatpush1.bf16.msra.mxu0 %v1198
    %1609 = vmatprep.subr.bf16.mxu0 %v1196
    %1610 = vmatpush1.bf16.msra.mxu0 %v1195
    %1611 = vmatprep.subr.bf16.mxu0 %v1193
    %1612 = vmatpush1.bf16.msra.mxu0 %v1192
    %1613 = vmatprep.subr.bf16.mxu0 %v1190
    %1614 = vmatpush1.bf16.msra.mxu0 %v1189
    %1615 = vmatprep.subr.bf16.mxu0 %v1187
    %1616 = vmatpush1.bf16.msra.mxu0 %v1186
    %1617 = vmatprep.subr.bf16.mxu0 %v1184
    %1618 = vmatpush1.bf16.msra.mxu0 %v1183
    %1619 = vmatprep.subr.bf16.mxu0 %v1181
    %1620 = vmatpush1.bf16.msra.mxu0 %v1180
    %1621 = vmatprep.subr.bf16.mxu0 %v1226
    %1622 = vmatpush2.bf16.msra.mxu0 %v1225
    %1623 = vmatprep.subr.bf16.mxu0 %v1223
    %1624 = vmatpush2.bf16.msra.mxu0 %v1222
    %1625 = vmatprep.subr.bf16.mxu0 %v1220
    %1626 = vmatpush2.bf16.msra.mxu0 %v1219
    %1627 = vmatprep.subr.bf16.mxu0 %v1217
    %1628 = vmatpush2.bf16.msra.mxu0 %v1216
    %1629 = vmatprep.subr.bf16.mxu0 %v1214
    %1630 = vmatpush2.bf16.msra.mxu0 %v1213
    %1631 = vmatprep.subr.bf16.mxu0 %v1211
    %1632 = vmatpush2.bf16.msra.mxu0 %v1210
    %1633 = vmatprep.subr.bf16.mxu0 %v1208
    %1634 = vmatpush2.bf16.msra.mxu0 %v1207
    %1635 = vmatprep.subr.bf16.mxu0 %v1205
    %1636 = vmatpush2.bf16.msra.mxu0 %v1204
    %1637 = vmatprep.mubr.bf16.mxu0 %v387
    %1638 = vmatmul.mubr.bf16.gmra.mxu0 %v385
    %v1639 = vpop.f32.mrf.mxu0
    %v1640 = vadd.f32 %v1599, %v1639
    %v1641 = vpop.f32.mrf.mxu0
    %v1642 = vadd.f32 %v1601, %v1641
    %v1643 = vpop.f32.mrf.mxu0
    %v1644 = vpop.f32.mrf.mxu0
    %1645 = vdwg.mxu0
    %1646 = vmatprep.subr.bf16.mxu0 %v1250
    %1647 = vmatpush1.bf16.msra.mxu0 %v1249
    %1648 = vmatprep.subr.bf16.mxu0 %v1247
    %1649 = vmatpush1.bf16.msra.mxu0 %v1246
    %1650 = vmatprep.subr.bf16.mxu0 %v1244
    %1651 = vmatpush1.bf16.msra.mxu0 %v1243
    %1652 = vmatprep.subr.bf16.mxu0 %v1241
    %1653 = vmatpush1.bf16.msra.mxu0 %v1240
    %1654 = vmatprep.subr.bf16.mxu0 %v1238
    %1655 = vmatpush1.bf16.msra.mxu0 %v1237
    %1656 = vmatprep.subr.bf16.mxu0 %v1235
    %1657 = vmatpush1.bf16.msra.mxu0 %v1234
    %1658 = vmatprep.subr.bf16.mxu0 %v1232
    %1659 = vmatpush1.bf16.msra.mxu0 %v1231
    %1660 = vmatprep.subr.bf16.mxu0 %v1229
    %1661 = vmatpush1.bf16.msra.mxu0 %v1228
    %1662 = vmatprep.subr.bf16.mxu0 %v1274
    %1663 = vmatpush2.bf16.msra.mxu0 %v1273
    %1664 = vmatprep.subr.bf16.mxu0 %v1271
    %1665 = vmatpush2.bf16.msra.mxu0 %v1270
    %1666 = vmatprep.subr.bf16.mxu0 %v1268
    %1667 = vmatpush2.bf16.msra.mxu0 %v1267
    %1668 = vmatprep.subr.bf16.mxu0 %v1265
    %1669 = vmatpush2.bf16.msra.mxu0 %v1264
    %1670 = vmatprep.subr.bf16.mxu0 %v1262
    %1671 = vmatpush2.bf16.msra.mxu0 %v1261
    %1672 = vmatprep.subr.bf16.mxu0 %v1259
    %1673 = vmatpush2.bf16.msra.mxu0 %v1258
    %1674 = vmatprep.subr.bf16.mxu0 %v1256
    %1675 = vmatpush2.bf16.msra.mxu0 %v1255
    %1676 = vmatprep.subr.bf16.mxu0 %v1253
    %1677 = vmatpush2.bf16.msra.mxu0 %v1252
    %1678 = vmatprep.mubr.bf16.mxu0 %v384
    %1679 = vmatmul.mubr.bf16.gmra.mxu0 %v370
    %v1680 = vpop.f32.mrf.mxu0
    %v1681 = vadd.f32 %v1640, %v1680
    %v1682 = vpop.f32.mrf.mxu0
    %v1683 = vadd.f32 %v1642, %v1682
    %v1684 = vpop.f32.mrf.mxu0
    %v1685 = vpop.f32.mrf.mxu0
    %1686 = vdwg.mxu0
    %1687 = vmatprep.subr.bf16.mxu0 %v1298
    %1688 = vmatpush1.bf16.msra.mxu0 %v1297
    %1689 = vmatprep.subr.bf16.mxu0 %v1295
    %1690 = vmatpush1.bf16.msra.mxu0 %v1294
    %1691 = vmatprep.subr.bf16.mxu0 %v1292
    %1692 = vmatpush1.bf16.msra.mxu0 %v1291
    %1693 = vmatprep.subr.bf16.mxu0 %v1289
    %1694 = vmatpush1.bf16.msra.mxu0 %v1288
    %1695 = vmatprep.subr.bf16.mxu0 %v1286
    %1696 = vmatpush1.bf16.msra.mxu0 %v1285
    %1697 = vmatprep.subr.bf16.mxu0 %v1283
    %1698 = vmatpush1.bf16.msra.mxu0 %v1282
    %1699 = vmatprep.subr.bf16.mxu0 %v1280
    %1700 = vmatpush1.bf16.msra.mxu0 %v1279
    %1701 = vmatprep.subr.bf16.mxu0 %v1277
    %1702 = vmatpush1.bf16.msra.mxu0 %v1276
    %1703 = vmatprep.subr.bf16.mxu0 %v1322
    %1704 = vmatpush2.bf16.msra.mxu0 %v1321
    %1705 = vmatprep.subr.bf16.mxu0 %v1319
    %1706 = vmatpush2.bf16.msra.mxu0 %v1318
    %1707 = vmatprep.subr.bf16.mxu0 %v1316
    %1708 = vmatpush2.bf16.msra.mxu0 %v1315
    %1709 = vmatprep.subr.bf16.mxu0 %v1313
    %1710 = vmatpush2.bf16.msra.mxu0 %v1312
    %1711 = vmatprep.subr.bf16.mxu0 %v1310
    %1712 = vmatpush2.bf16.msra.mxu0 %v1309
    %1713 = vmatprep.subr.bf16.mxu0 %v1307
    %1714 = vmatpush2.bf16.msra.mxu0 %v1306
    %1715 = vmatprep.subr.bf16.mxu0 %v1304
    %1716 = vmatpush2.bf16.msra.mxu0 %v1303
    %1717 = vmatprep.subr.bf16.mxu0 %v1301
    %1718 = vmatpush2.bf16.msra.mxu0 %v1300
    %1719 = vmatprep.mubr.bf16.mxu0 %v388
    %1720 = vmatmul.mubr.bf16.gmra.mxu0 %v386
    %v1721 = vpop.f32.mrf.mxu0
    %v1722 = vadd.f32 %v1681, %v1721
    %v1723 = vpop.f32.mrf.mxu0
    %v1724 = vadd.f32 %v1683, %v1723
    %v1725 = vpop.f32.mrf.mxu0
    %v1726 = vpop.f32.mrf.mxu0
    %1727 = vdwg.mxu0
    %1728 = vmatprep.subr.bf16.mxu0 %v1346
    %1729 = vmatpush1.bf16.msra.mxu0 %v1345
    %1730 = vmatprep.subr.bf16.mxu0 %v1343
    %1731 = vmatpush1.bf16.msra.mxu0 %v1342
    %1732 = vmatprep.subr.bf16.mxu0 %v1340
    %1733 = vmatpush1.bf16.msra.mxu0 %v1339
    %1734 = vmatprep.subr.bf16.mxu0 %v1337
    %1735 = vmatpush1.bf16.msra.mxu0 %v1336
    %1736 = vmatprep.subr.bf16.mxu0 %v1334
    %1737 = vmatpush1.bf16.msra.mxu0 %v1333
    %1738 = vmatprep.subr.bf16.mxu0 %v1331
    %1739 = vmatpush1.bf16.msra.mxu0 %v1330
    %1740 = vmatprep.subr.bf16.mxu0 %v1328
    %1741 = vmatpush1.bf16.msra.mxu0 %v1327
    %1742 = vmatprep.subr.bf16.mxu0 %v1325
    %1743 = vmatpush1.bf16.msra.mxu0 %v1324
    %1744 = vmatprep.subr.bf16.mxu0 0
    %1745 = vmatpush2.bf16.msra.mxu0 0
    %1746 = vmatprep.subr.bf16.mxu0 0
    %1747 = vmatpush2.bf16.msra.mxu0 0
    %1748 = vmatprep.subr.bf16.mxu0 0
    %1749 = vmatpush2.bf16.msra.mxu0 0
    %1750 = vmatprep.subr.bf16.mxu0 0
    %1751 = vmatpush2.bf16.msra.mxu0 0
    %1752 = vmatprep.subr.bf16.mxu0 0
    %1753 = vmatpush2.bf16.msra.mxu0 0
    %1754 = vmatprep.subr.bf16.mxu0 0
    %1755 = vmatpush2.bf16.msra.mxu0 0
    %1756 = vmatprep.subr.bf16.mxu0 0
    %1757 = vmatpush2.bf16.msra.mxu0 0
    %1758 = vmatprep.subr.bf16.mxu0 0
    %1759 = vmatpush2.bf16.msra.mxu0 0
    %1760 = vmatprep.mubr.bf16.mxu0 0
    %1761 = vmatmul.mubr.bf16.gmra.mxu0 %v402
    %v1762 = vpop.f32.mrf.mxu0
    %v1763 = vadd.f32 %v1722, %v1762
    %v1764 = vpop.f32.mrf.mxu0
    %v1765 = vadd.f32 %v1724, %v1764
    %v1766 = vpop.f32.mrf.mxu0
    %v1767 = vpop.f32.mrf.mxu0
    %1768 = vdwg.mxu0
    %1769 = vmatprep.subr.bf16.mxu0 0
    %1770 = vmatpush1.bf16.msra.mxu0 %v1155
    %1771 = vmatprep.subr.bf16.mxu0 0
    %1772 = vmatpush1.bf16.msra.mxu0 %v1152
    %1773 = vmatprep.subr.bf16.mxu0 0
    %1774 = vmatpush1.bf16.msra.mxu0 %v1149
    %1775 = vmatprep.subr.bf16.mxu0 0
    %1776 = vmatpush1.bf16.msra.mxu0 %v1146
    %1777 = vmatprep.subr.bf16.mxu0 0
    %1778 = vmatpush1.bf16.msra.mxu0 %v1143
    %1779 = vmatprep.subr.bf16.mxu0 0
    %1780 = vmatpush1.bf16.msra.mxu0 %v1140
    %1781 = vmatprep.subr.bf16.mxu0 0
    %1782 = vmatpush1.bf16.msra.mxu0 %v1137
    %1783 = vmatprep.subr.bf16.mxu0 0
    %1784 = vmatpush1.bf16.msra.mxu0 %v1134
    %1785 = vmatprep.subr.bf16.mxu0 0
    %1786 = vmatpush2.bf16.msra.mxu0 %v1179
    %1787 = vmatprep.subr.bf16.mxu0 0
    %1788 = vmatpush2.bf16.msra.mxu0 %v1176
    %1789 = vmatprep.subr.bf16.mxu0 0
    %1790 = vmatpush2.bf16.msra.mxu0 %v1173
    %1791 = vmatprep.subr.bf16.mxu0 0
    %1792 = vmatpush2.bf16.msra.mxu0 %v1170
    %1793 = vmatprep.subr.bf16.mxu0 0
    %1794 = vmatpush2.bf16.msra.mxu0 %v1167
    %1795 = vmatprep.subr.bf16.mxu0 0
    %1796 = vmatpush2.bf16.msra.mxu0 %v1164
    %1797 = vmatprep.subr.bf16.mxu0 0
    %1798 = vmatpush2.bf16.msra.mxu0 %v1161
    %1799 = vmatprep.subr.bf16.mxu0 0
    %1800 = vmatpush2.bf16.msra.mxu0 %v1158
    %1801 = vmatprep.mubr.bf16.mxu0 %v377
    %1802 = vmatmul.mubr.bf16.gmra.mxu0 %v363
    %v1803 = vpop.f32.mrf.mxu0
    %v1804 = vadd.f32 %v334, %v1803
    %v1805 = vpop.f32.mrf.mxu0
    %v1806 = vpop.f32.mrf.mxu0
    %v1807 = vpop.f32.mrf.mxu0
    %1808 = vdwg.mxu0
    %1809 = vmatprep.subr.bf16.mxu0 0
    %1810 = vmatpush1.bf16.msra.mxu0 %v1203
    %1811 = vmatprep.subr.bf16.mxu0 0
    %1812 = vmatpush1.bf16.msra.mxu0 %v1200
    %1813 = vmatprep.subr.bf16.mxu0 0
    %1814 = vmatpush1.bf16.msra.mxu0 %v1197
    %1815 = vmatprep.subr.bf16.mxu0 0
    %1816 = vmatpush1.bf16.msra.mxu0 %v1194
    %1817 = vmatprep.subr.bf16.mxu0 0
    %1818 = vmatpush1.bf16.msra.mxu0 %v1191
    %1819 = vmatprep.subr.bf16.mxu0 0
    %1820 = vmatpush1.bf16.msra.mxu0 %v1188
    %1821 = vmatprep.subr.bf16.mxu0 0
    %1822 = vmatpush1.bf16.msra.mxu0 %v1185
    %1823 = vmatprep.subr.bf16.mxu0 0
    %1824 = vmatpush1.bf16.msra.mxu0 %v1182
    %1825 = vmatprep.subr.bf16.mxu0 0
    %1826 = vmatpush2.bf16.msra.mxu0 %v1227
    %1827 = vmatprep.subr.bf16.mxu0 0
    %1828 = vmatpush2.bf16.msra.mxu0 %v1224
    %1829 = vmatprep.subr.bf16.mxu0 0
    %1830 = vmatpush2.bf16.msra.mxu0 %v1221
    %1831 = vmatprep.subr.bf16.mxu0 0
    %1832 = vmatpush2.bf16.msra.mxu0 %v1218
    %1833 = vmatprep.subr.bf16.mxu0 0
    %1834 = vmatpush2.bf16.msra.mxu0 %v1215
    %1835 = vmatprep.subr.bf16.mxu0 0
    %1836 = vmatpush2.bf16.msra.mxu0 %v1212
    %1837 = vmatprep.subr.bf16.mxu0 0
    %1838 = vmatpush2.bf16.msra.mxu0 %v1209
    %1839 = vmatprep.subr.bf16.mxu0 0
    %1840 = vmatpush2.bf16.msra.mxu0 %v1206
    %1841 = vmatprep.mubr.bf16.mxu0 %v387
    %1842 = vmatmul.mubr.bf16.gmra.mxu0 %v385
    %v1843 = vpop.f32.mrf.mxu0
    %v1844 = vadd.f32 %v1804, %v1843
    %v1845 = vpop.f32.mrf.mxu0
    %v1846 = vpop.f32.mrf.mxu0
    %v1847 = vpop.f32.mrf.mxu0
    %1848 = vdwg.mxu0
    %1849 = vmatprep.subr.bf16.mxu0 0
    %1850 = vmatpush1.bf16.msra.mxu0 %v1251
    %1851 = vmatprep.subr.bf16.mxu0 0
    %1852 = vmatpush1.bf16.msra.mxu0 %v1248
    %1853 = vmatprep.subr.bf16.mxu0 0
    %1854 = vmatpush1.bf16.msra.mxu0 %v1245
    %1855 = vmatprep.subr.bf16.mxu0 0
    %1856 = vmatpush1.bf16.msra.mxu0 %v1242
    %1857 = vmatprep.subr.bf16.mxu0 0
    %1858 = vmatpush1.bf16.msra.mxu0 %v1239
    %1859 = vmatprep.subr.bf16.mxu0 0
    %1860 = vmatpush1.bf16.msra.mxu0 %v1236
    %1861 = vmatprep.subr.bf16.mxu0 0
    %1862 = vmatpush1.bf16.msra.mxu0 %v1233
    %1863 = vmatprep.subr.bf16.mxu0 0
    %1864 = vmatpush1.bf16.msra.mxu0 %v1230
    %1865 = vmatprep.subr.bf16.mxu0 0
    %1866 = vmatpush2.bf16.msra.mxu0 %v1275
    %1867 = vmatprep.subr.bf16.mxu0 0
    %1868 = vmatpush2.bf16.msra.mxu0 %v1272
    %1869 = vmatprep.subr.bf16.mxu0 0
    %1870 = vmatpush2.bf16.msra.mxu0 %v1269
    %1871 = vmatprep.subr.bf16.mxu0 0
    %1872 = vmatpush2.bf16.msra.mxu0 %v1266
    %1873 = vmatprep.subr.bf16.mxu0 0
    %1874 = vmatpush2.bf16.msra.mxu0 %v1263
    %1875 = vmatprep.subr.bf16.mxu0 0
    %1876 = vmatpush2.bf16.msra.mxu0 %v1260
    %1877 = vmatprep.subr.bf16.mxu0 0
    %1878 = vmatpush2.bf16.msra.mxu0 %v1257
    %1879 = vmatprep.subr.bf16.mxu0 0
    %1880 = vmatpush2.bf16.msra.mxu0 %v1254
    %1881 = vmatprep.mubr.bf16.mxu0 %v384
    %1882 = vmatmul.mubr.bf16.gmra.mxu0 %v370
    %v1883 = vpop.f32.mrf.mxu0
    %v1884 = vadd.f32 %v1844, %v1883
    %v1885 = vpop.f32.mrf.mxu0
    %v1886 = vpop.f32.mrf.mxu0
    %v1887 = vpop.f32.mrf.mxu0
    %1888 = vdwg.mxu0
    %1889 = vmatprep.subr.bf16.mxu0 0
    %1890 = vmatpush1.bf16.msra.mxu0 %v1299
    %1891 = vmatprep.subr.bf16.mxu0 0
    %1892 = vmatpush1.bf16.msra.mxu0 %v1296
    %1893 = vmatprep.subr.bf16.mxu0 0
    %1894 = vmatpush1.bf16.msra.mxu0 %v1293
    %1895 = vmatprep.subr.bf16.mxu0 0
    %1896 = vmatpush1.bf16.msra.mxu0 %v1290
    %1897 = vmatprep.subr.bf16.mxu0 0
    %1898 = vmatpush1.bf16.msra.mxu0 %v1287
    %1899 = vmatprep.subr.bf16.mxu0 0
    %1900 = vmatpush1.bf16.msra.mxu0 %v1284
    %1901 = vmatprep.subr.bf16.mxu0 0
    %1902 = vmatpush1.bf16.msra.mxu0 %v1281
    %1903 = vmatprep.subr.bf16.mxu0 0
    %1904 = vmatpush1.bf16.msra.mxu0 %v1278
    %1905 = vmatprep.subr.bf16.mxu0 0
    %1906 = vmatpush2.bf16.msra.mxu0 %v1323
    %1907 = vmatprep.subr.bf16.mxu0 0
    %1908 = vmatpush2.bf16.msra.mxu0 %v1320
    %1909 = vmatprep.subr.bf16.mxu0 0
    %1910 = vmatpush2.bf16.msra.mxu0 %v1317
    %1911 = vmatprep.subr.bf16.mxu0 0
    %1912 = vmatpush2.bf16.msra.mxu0 %v1314
    %1913 = vmatprep.subr.bf16.mxu0 0
    %1914 = vmatpush2.bf16.msra.mxu0 %v1311
    %1915 = vmatprep.subr.bf16.mxu0 0
    %1916 = vmatpush2.bf16.msra.mxu0 %v1308
    %1917 = vmatprep.subr.bf16.mxu0 0
    %1918 = vmatpush2.bf16.msra.mxu0 %v1305
    %1919 = vmatprep.subr.bf16.mxu0 0
    %1920 = vmatpush2.bf16.msra.mxu0 %v1302
    %1921 = vmatprep.mubr.bf16.mxu0 %v388
    %1922 = vmatmul.mubr.bf16.gmra.mxu0 %v386
    %v1923 = vpop.f32.mrf.mxu0
    %v1924 = vadd.f32 %v1884, %v1923
    %v1925 = vpop.f32.mrf.mxu0
    %v1926 = vpop.f32.mrf.mxu0
    %v1927 = vpop.f32.mrf.mxu0
    %1928 = vdwg.mxu0
    %1929 = vmatprep.subr.bf16.mxu0 0
    %1930 = vmatpush1.bf16.msra.mxu0 %v1347
    %1931 = vmatprep.subr.bf16.mxu0 0
    %1932 = vmatpush1.bf16.msra.mxu0 %v1344
    %1933 = vmatprep.subr.bf16.mxu0 0
    %1934 = vmatpush1.bf16.msra.mxu0 %v1341
    %1935 = vmatprep.subr.bf16.mxu0 0
    %1936 = vmatpush1.bf16.msra.mxu0 %v1338
    %1937 = vmatprep.subr.bf16.mxu0 0
    %1938 = vmatpush1.bf16.msra.mxu0 %v1335
    %1939 = vmatprep.subr.bf16.mxu0 0
    %1940 = vmatpush1.bf16.msra.mxu0 %v1332
    %1941 = vmatprep.subr.bf16.mxu0 0
    %1942 = vmatpush1.bf16.msra.mxu0 %v1329
    %1943 = vmatprep.subr.bf16.mxu0 0
    %1944 = vmatpush1.bf16.msra.mxu0 %v1326
    %1945 = vmatprep.subr.bf16.mxu0 0
    %1946 = vmatpush2.bf16.msra.mxu0 0
    %1947 = vmatprep.subr.bf16.mxu0 0
    %1948 = vmatpush2.bf16.msra.mxu0 0
    %1949 = vmatprep.subr.bf16.mxu0 0
    %1950 = vmatpush2.bf16.msra.mxu0 0
    %1951 = vmatprep.subr.bf16.mxu0 0
    %1952 = vmatpush2.bf16.msra.mxu0 0
    %1953 = vmatprep.subr.bf16.mxu0 0
    %1954 = vmatpush2.bf16.msra.mxu0 0
    %1955 = vmatprep.subr.bf16.mxu0 0
    %1956 = vmatpush2.bf16.msra.mxu0 0
    %1957 = vmatprep.subr.bf16.mxu0 0
    %1958 = vmatpush2.bf16.msra.mxu0 0
    %1959 = vmatprep.subr.bf16.mxu0 0
    %1960 = vmatpush2.bf16.msra.mxu0 0
    %1961 = vmatprep.mubr.bf16.mxu0 0
    %1962 = vmatmul.mubr.bf16.gmra.mxu0 %v402
    %v1963 = vpop.f32.mrf.mxu0
    %v1964 = vadd.f32 %v1924, %v1963
    %v1965 = vpop.f32.mrf.mxu0
    %v1966 = vpop.f32.mrf.mxu0
    %v1967 = vpop.f32.mrf.mxu0
    %1968 = vdwg.mxu0
    %v1969 = vmax.f32 %v1763, 0.0
    %v1970 = vmax.f32 %v1765, 0.0
    %v1971 = vmax.f32 %v1964, 0.0
    %v1972 = vld [vmem:[%s3] sm:$0xff]
    %v1973 = vld [vmem:[%s3 + $0x8] sm:$0xff]
    %v1974 = vld [vmem:[%s3 + $0x10] sm:$0xff]
    %v1975 = vld [vmem:[%s3 + $0x18] sm:$0xff]
    %v1976 = vld [vmem:[%s4] sm:$0x1]
    %v1978 = vlaneseq
    %v1979 = vshrl.u32 %v1978, 7
    %v1980 = vsub.s32 0, %v1979
    %v1981 = vrot.slane %v1976, %v1980
    %vm1983 = vcmask 261120
    %v1985 = vsel %vm1983, %v1969, 0
    %1987 = vmatprep.subr.mxu0 0.0
    %1988 = vmatpush1.msra.mxu0 0.0
    %1989 = vmatprep.subr.mxu0 0.0
    %1990 = vmatpush1.msra.mxu0 0.0
    %1991 = vmatprep.subr.mxu0 0.0
    %1992 = vmatpush1.msra.mxu0 0.0
    %1993 = vmatprep.subr.mxu0 0.0
    %1994 = vmatpush1.msra.mxu0 0.0
    %1995 = vmatprep.subr.mxu0 0.0
    %1996 = vmatpush1.msra.mxu0 0.0
    %1997 = vmatprep.subr.mxu0 0.0
    %1998 = vmatpush1.msra.mxu0 0.0
    %1999 = vmatprep.subr.mxu0 0.0
    %2000 = vmatpush1.msra.mxu0 0.0
    %2001 = vmatprep.subr.mxu0 0.0
    %2002 = vmatpush1.msra.mxu0 0.0
    %2003 = vmatprep.subr.mxu0 0.0
    %2004 = vmatpush1.msra.mxu0 0.0
    %2005 = vmatprep.subr.mxu0 0.0
    %2006 = vmatpush1.msra.mxu0 0.0
    %2007 = vmatprep.subr.mxu0 0.0
    %2008 = vmatpush1.msra.mxu0 0.0
    %2009 = vmatprep.subr.mxu0 0.0
    %2010 = vmatpush1.msra.mxu0 0.0
    %2011 = vmatprep.subr.mxu0 0.0
    %2012 = vmatpush1.msra.mxu0 %v1975
    %2013 = vmatprep.subr.mxu0 0.0
    %2014 = vmatpush1.msra.mxu0 %v1974
    %2015 = vmatprep.subr.mxu0 0.0
    %2016 = vmatpush1.msra.mxu0 %v1973
    %2017 = vmatprep.subr.mxu0 0.0
    %2018 = vmatpush1.msra.mxu0 %v1972
    %2019 = vmatprep.subr.mxu0 0.0
    %2020 = vmatpush2.msra.mxu0 0.0
    %2021 = vmatprep.subr.mxu0 0.0
    %2022 = vmatpush2.msra.mxu0 0.0
    %2023 = vmatprep.subr.mxu0 0.0
    %2024 = vmatpush2.msra.mxu0 0.0
    %2025 = vmatprep.subr.mxu0 0.0
    %2026 = vmatpush2.msra.mxu0 0.0
    %2027 = vmatprep.subr.mxu0 0.0
    %2028 = vmatpush2.msra.mxu0 0.0
    %2029 = vmatprep.subr.mxu0 0.0
    %2030 = vmatpush2.msra.mxu0 0.0
    %2031 = vmatprep.subr.mxu0 0.0
    %2032 = vmatpush2.msra.mxu0 0.0
    %2033 = vmatprep.subr.mxu0 0.0
    %2034 = vmatpush2.msra.mxu0 0.0
    %2035 = vmatprep.subr.mxu0 0.0
    %2036 = vmatpush2.msra.mxu0 0.0
    %2037 = vmatprep.subr.mxu0 0.0
    %2038 = vmatpush2.msra.mxu0 0.0
    %2039 = vmatprep.subr.mxu0 0.0
    %2040 = vmatpush2.msra.mxu0 0.0
    %2041 = vmatprep.subr.mxu0 0.0
    %2042 = vmatpush2.msra.mxu0 0.0
    %2043 = vmatprep.subr.mxu0 0.0
    %2044 = vmatpush2.msra.mxu0 0.0
    %2045 = vmatprep.subr.mxu0 0.0
    %2046 = vmatpush2.msra.mxu0 0.0
    %2047 = vmatprep.subr.mxu0 0.0
    %2048 = vmatpush2.msra.mxu0 0.0
    %2049 = vmatprep.subr.mxu0 0.0
    %2050 = vmatpush2.msra.mxu0 0.0
    %2051 = vmatprep.mubr.f32.mxu0 0.0
    %2052 = vmatmul.mubr.f32.gmra.mxu0 %v1985
    %v2053 = vpop.f32.mrf.mxu0
    %v2054 = vadd.f32 %v1981, %v2053
    %v2055 = vpop.f32.mrf.mxu0
    %2056 = vdwg.mxu0
    %v2057 = vmax.f32 %v2054, 0.0
    %v2058 = vld [vmem:[%s5] sm:$0xff]
    %v2059 = vld [vmem:[%s5 + $0x8] sm:$0xff]
    %v2060 = vld [vmem:[%s5 + $0x10] sm:$0xff]
    %v2061 = vld [vmem:[%s5 + $0x18] sm:$0xff]
    %v2062 = vld [vmem:[%s5 + $0x20] sm:$0xff]
    %v2063 = vld [vmem:[%s5 + $0x28] sm:$0xff]
    %v2064 = vld [vmem:[%s5 + $0x30] sm:$0xff]
    %v2065 = vld [vmem:[%s5 + $0x38] sm:$0xff]
    %v2066 = vld [vmem:[%s5 + $0x40] sm:$0xff]
    %v2067 = vld [vmem:[%s5 + $0x48] sm:$0xff]
    %v2068 = vld [vmem:[%s5 + $0x50] sm:$0xff]
    %v2069 = vld [vmem:[%s5 + $0x58] sm:$0xff]
    %v2070 = vld [vmem:[%s5 + $0x60] sm:$0xff]
    %v2071 = vld [vmem:[%s5 + $0x68] sm:$0xff]
    %v2072 = vld [vmem:[%s5 + $0x70] sm:$0xff]
    %v2073 = vld [vmem:[%s5 + $0x78] sm:$0xff]
    %v2074 = vld [vmem:[%s5 + $0x80] sm:$0xff]
    %v2075 = vld [vmem:[%s5 + $0x88] sm:$0xff]
    %v2076 = vld [vmem:[%s5 + $0x90] sm:$0xff]
    %v2077 = vld [vmem:[%s5 + $0x98] sm:$0xff]
    %v2078 = vld [vmem:[%s5 + $0xa0] sm:$0xff]
    %v2079 = vld [vmem:[%s5 + $0xa8] sm:$0xff]
    %v2080 = vld [vmem:[%s5 + $0xb0] sm:$0xff]
    %v2081 = vld [vmem:[%s5 + $0xb8] sm:$0xff]
    %v2082 = vld [vmem:[%s5 + $0xc0] sm:$0xff]
    %v2083 = vld [vmem:[%s5 + $0xc8] sm:$0xff]
    %v2084 = vld [vmem:[%s5 + $0xd0] sm:$0xff]
    %v2085 = vld [vmem:[%s5 + $0xd8] sm:$0xff]
    %v2086 = vld [vmem:[%s5 + $0xe0] sm:$0xff]
    %v2087 = vld [vmem:[%s5 + $0xe8] sm:$0xff]
    %v2088 = vld [vmem:[%s5 + $0xf0] sm:$0xff]
    %v2089 = vld [vmem:[%s5 + $0xf8] sm:$0xff]
    %v2090 = vld [vmem:[%s5 + $0x100] sm:$0xff]
    %v2091 = vld [vmem:[%s5 + $0x108] sm:$0xff]
    %v2092 = vld [vmem:[%s5 + $0x110] sm:$0xff]
    %v2093 = vld [vmem:[%s5 + $0x118] sm:$0xff]
    %v2094 = vld [vmem:[%s5 + $0x120] sm:$0xff]
    %v2095 = vld [vmem:[%s5 + $0x128] sm:$0xff]
    %v2096 = vld [vmem:[%s5 + $0x130] sm:$0xff]
    %v2097 = vld [vmem:[%s5 + $0x138] sm:$0xff]
    %v2098 = vld [vmem:[%s6] sm:$0xff]
    %v2099 = vld [vmem:[%s6 + $0x8] sm:$0xff]
    %v2100 = vld [vmem:[%s6 + $0x10] sm:$0xff]
    %v2101 = vld [vmem:[%s6 + $0x18] sm:$0xff]
    %v2103 = vsel %vm1983, %v2057, 0
    %2105 = vmatprep.subr.mxu0 0.0
    %2106 = vmatpush1.msra.mxu0 0.0
    %2107 = vmatprep.subr.mxu0 0.0
    %2108 = vmatpush1.msra.mxu0 0.0
    %2109 = vmatprep.subr.mxu0 0.0
    %2110 = vmatpush1.msra.mxu0 0.0
    %2111 = vmatprep.subr.mxu0 0.0
    %2112 = vmatpush1.msra.mxu0 0.0
    %2113 = vmatprep.subr.mxu0 0.0
    %2114 = vmatpush1.msra.mxu0 0.0
    %2115 = vmatprep.subr.mxu0 0.0
    %2116 = vmatpush1.msra.mxu0 0.0
    %2117 = vmatprep.subr.mxu0 0.0
    %2118 = vmatpush1.msra.mxu0 0.0
    %2119 = vmatprep.subr.mxu0 0.0
    %2120 = vmatpush1.msra.mxu0 0.0
    %2121 = vmatprep.subr.mxu0 0.0
    %2122 = vmatpush1.msra.mxu0 0.0
    %2123 = vmatprep.subr.mxu0 0.0
    %2124 = vmatpush1.msra.mxu0 0.0
    %2125 = vmatprep.subr.mxu0 0.0
    %2126 = vmatpush1.msra.mxu0 0.0
    %2127 = vmatprep.subr.mxu0 0.0
    %2128 = vmatpush1.msra.mxu0 0.0
    %2129 = vmatprep.subr.mxu0 0.0
    %2130 = vmatpush1.msra.mxu0 %v2101
    %2131 = vmatprep.subr.mxu0 0.0
    %2132 = vmatpush1.msra.mxu0 %v2100
    %2133 = vmatprep.subr.mxu0 0.0
    %2134 = vmatpush1.msra.mxu0 %v2099
    %2135 = vmatprep.subr.mxu0 0.0
    %2136 = vmatpush1.msra.mxu0 %v2098
    %2137 = vmatprep.subr.mxu0 0.0
    %2138 = vmatpush2.msra.mxu0 0.0
    %2139 = vmatprep.subr.mxu0 0.0
    %2140 = vmatpush2.msra.mxu0 0.0
    %2141 = vmatprep.subr.mxu0 0.0
    %2142 = vmatpush2.msra.mxu0 0.0
    %2143 = vmatprep.subr.mxu0 0.0
    %2144 = vmatpush2.msra.mxu0 0.0
    %2145 = vmatprep.subr.mxu0 0.0
    %2146 = vmatpush2.msra.mxu0 0.0
    %2147 = vmatprep.subr.mxu0 0.0
    %2148 = vmatpush2.msra.mxu0 0.0
    %2149 = vmatprep.subr.mxu0 0.0
    %2150 = vmatpush2.msra.mxu0 0.0
    %2151 = vmatprep.subr.mxu0 0.0
    %2152 = vmatpush2.msra.mxu0 0.0
    %2153 = vmatprep.subr.mxu0 0.0
    %2154 = vmatpush2.msra.mxu0 0.0
    %2155 = vmatprep.subr.mxu0 0.0
    %2156 = vmatpush2.msra.mxu0 0.0
    %2157 = vmatprep.subr.mxu0 0.0
    %2158 = vmatpush2.msra.mxu0 0.0
    %2159 = vmatprep.subr.mxu0 0.0
    %2160 = vmatpush2.msra.mxu0 0.0
    %2161 = vmatprep.subr.mxu0 0.0
    %2162 = vmatpush2.msra.mxu0 0.0
    %2163 = vmatprep.subr.mxu0 0.0
    %2164 = vmatpush2.msra.mxu0 0.0
    %2165 = vmatprep.subr.mxu0 0.0
    %2166 = vmatpush2.msra.mxu0 0.0
    %2167 = vmatprep.subr.mxu0 0.0
    %2168 = vmatpush2.msra.mxu0 0.0
    %2169 = vmatprep.mubr.f32.mxu0 0.0
    %2170 = vmatmul.mubr.f32.gmra.mxu0 %v2103
    %v2171 = vpop.f32.mrf.mxu0
    %v2172 = vadd.f32 0.0, %v2171
    %v2173 = vpop.f32.mrf.mxu0
    %2174 = vdwg.mxu0
    %vm2175 = vcmask 523264
    %v2177 = vsel %vm2175, %v1971, 0
    %2179 = vmatprep.subr.mxu0 0.0
    %2180 = vmatpush1.msra.mxu0 %v2073
    %2181 = vmatprep.subr.mxu0 0.0
    %2182 = vmatpush1.msra.mxu0 %v2072
    %2183 = vmatprep.subr.mxu0 0.0
    %2184 = vmatpush1.msra.mxu0 %v2071
    %2185 = vmatprep.subr.mxu0 0.0
    %2186 = vmatpush1.msra.mxu0 %v2070
    %2187 = vmatprep.subr.mxu0 0.0
    %2188 = vmatpush1.msra.mxu0 %v2069
    %2189 = vmatprep.subr.mxu0 0.0
    %2190 = vmatpush1.msra.mxu0 %v2068
    %2191 = vmatprep.subr.mxu0 0.0
    %2192 = vmatpush1.msra.mxu0 %v2067
    %2193 = vmatprep.subr.mxu0 0.0
    %2194 = vmatpush1.msra.mxu0 %v2066
    %2195 = vmatprep.subr.mxu0 0.0
    %2196 = vmatpush1.msra.mxu0 %v2065
    %2197 = vmatprep.subr.mxu0 0.0
    %2198 = vmatpush1.msra.mxu0 %v2064
    %2199 = vmatprep.subr.mxu0 0.0
    %2200 = vmatpush1.msra.mxu0 %v2063
    %2201 = vmatprep.subr.mxu0 0.0
    %2202 = vmatpush1.msra.mxu0 %v2062
    %2203 = vmatprep.subr.mxu0 0.0
    %2204 = vmatpush1.msra.mxu0 %v2061
    %2205 = vmatprep.subr.mxu0 0.0
    %2206 = vmatpush1.msra.mxu0 %v2060
    %2207 = vmatprep.subr.mxu0 0.0
    %2208 = vmatpush1.msra.mxu0 %v2059
    %2209 = vmatprep.subr.mxu0 0.0
    %2210 = vmatpush1.msra.mxu0 %v2058
    %2211 = vmatprep.subr.mxu0 0.0
    %2212 = vmatpush2.msra.mxu0 %v2089
    %2213 = vmatprep.subr.mxu0 0.0
    %2214 = vmatpush2.msra.mxu0 %v2088
    %2215 = vmatprep.subr.mxu0 0.0
    %2216 = vmatpush2.msra.mxu0 %v2087
    %2217 = vmatprep.subr.mxu0 0.0
    %2218 = vmatpush2.msra.mxu0 %v2086
    %2219 = vmatprep.subr.mxu0 0.0
    %2220 = vmatpush2.msra.mxu0 %v2085
    %2221 = vmatprep.subr.mxu0 0.0
    %2222 = vmatpush2.msra.mxu0 %v2084
    %2223 = vmatprep.subr.mxu0 0.0
    %2224 = vmatpush2.msra.mxu0 %v2083
    %2225 = vmatprep.subr.mxu0 0.0
    %2226 = vmatpush2.msra.mxu0 %v2082
    %2227 = vmatprep.subr.mxu0 0.0
    %2228 = vmatpush2.msra.mxu0 %v2081
    %2229 = vmatprep.subr.mxu0 0.0
    %2230 = vmatpush2.msra.mxu0 %v2080
    %2231 = vmatprep.subr.mxu0 0.0
    %2232 = vmatpush2.msra.mxu0 %v2079
    %2233 = vmatprep.subr.mxu0 0.0
    %2234 = vmatpush2.msra.mxu0 %v2078
    %2235 = vmatprep.subr.mxu0 0.0
    %2236 = vmatpush2.msra.mxu0 %v2077
    %2237 = vmatprep.subr.mxu0 0.0
    %2238 = vmatpush2.msra.mxu0 %v2076
    %2239 = vmatprep.subr.mxu0 0.0
    %2240 = vmatpush2.msra.mxu0 %v2075
    %2241 = vmatprep.subr.mxu0 0.0
    %2242 = vmatpush2.msra.mxu0 %v2074
    %2243 = vmatprep.mubr.f32.mxu0 %v1970
    %2244 = vmatmul.mubr.f32.gmra.mxu0 %v1969
    %v2245 = vpop.f32.mrf.mxu0
    %v2246 = vadd.f32 %v2172, %v2245
    %v2247 = vpop.f32.mrf.mxu0
    %2248 = vdwg.mxu0
    %2249 = vmatprep.subr.mxu0 0.0
    %2250 = vmatpush1.msra.mxu0 0.0
    %2251 = vmatprep.subr.mxu0 0.0
    %2252 = vmatpush1.msra.mxu0 0.0
    %2253 = vmatprep.subr.mxu0 0.0
    %2254 = vmatpush1.msra.mxu0 0.0
    %2255 = vmatprep.subr.mxu0 0.0
    %2256 = vmatpush1.msra.mxu0 0.0
    %2257 = vmatprep.subr.mxu0 0.0
    %2258 = vmatpush1.msra.mxu0 0.0
    %2259 = vmatprep.subr.mxu0 0.0
    %2260 = vmatpush1.msra.mxu0 0.0
    %2261 = vmatprep.subr.mxu0 0.0
    %2262 = vmatpush1.msra.mxu0 0.0
    %2263 = vmatprep.subr.mxu0 0.0
    %2264 = vmatpush1.msra.mxu0 0.0
    %2265 = vmatprep.subr.mxu0 0.0
    %2266 = vmatpush1.msra.mxu0 %v2097
    %2267 = vmatprep.subr.mxu0 0.0
    %2268 = vmatpush1.msra.mxu0 %v2096
    %2269 = vmatprep.subr.mxu0 0.0
    %2270 = vmatpush1.msra.mxu0 %v2095
    %2271 = vmatprep.subr.mxu0 0.0
    %2272 = vmatpush1.msra.mxu0 %v2094
    %2273 = vmatprep.subr.mxu0 0.0
    %2274 = vmatpush1.msra.mxu0 %v2093
    %2275 = vmatprep.subr.mxu0 0.0
    %2276 = vmatpush1.msra.mxu0 %v2092
    %2277 = vmatprep.subr.mxu0 0.0
    %2278 = vmatpush1.msra.mxu0 %v2091
    %2279 = vmatprep.subr.mxu0 0.0
    %2280 = vmatpush1.msra.mxu0 %v2090
    %2281 = vmatprep.subr.mxu0 0.0
    %2282 = vmatpush2.msra.mxu0 0.0
    %2283 = vmatprep.subr.mxu0 0.0
    %2284 = vmatpush2.msra.mxu0 0.0
    %2285 = vmatprep.subr.mxu0 0.0
    %2286 = vmatpush2.msra.mxu0 0.0
    %2287 = vmatprep.subr.mxu0 0.0
    %2288 = vmatpush2.msra.mxu0 0.0
    %2289 = vmatprep.subr.mxu0 0.0
    %2290 = vmatpush2.msra.mxu0 0.0
    %2291 = vmatprep.subr.mxu0 0.0
    %2292 = vmatpush2.msra.mxu0 0.0
    %2293 = vmatprep.subr.mxu0 0.0
    %2294 = vmatpush2.msra.mxu0 0.0
    %2295 = vmatprep.subr.mxu0 0.0
    %2296 = vmatpush2.msra.mxu0 0.0
    %2297 = vmatprep.subr.mxu0 0.0
    %2298 = vmatpush2.msra.mxu0 0.0
    %2299 = vmatprep.subr.mxu0 0.0
    %2300 = vmatpush2.msra.mxu0 0.0
    %2301 = vmatprep.subr.mxu0 0.0
    %2302 = vmatpush2.msra.mxu0 0.0
    %2303 = vmatprep.subr.mxu0 0.0
    %2304 = vmatpush2.msra.mxu0 0.0
    %2305 = vmatprep.subr.mxu0 0.0
    %2306 = vmatpush2.msra.mxu0 0.0
    %2307 = vmatprep.subr.mxu0 0.0
    %2308 = vmatpush2.msra.mxu0 0.0
    %2309 = vmatprep.subr.mxu0 0.0
    %2310 = vmatpush2.msra.mxu0 0.0
    %2311 = vmatprep.subr.mxu0 0.0
    %2312 = vmatpush2.msra.mxu0 0.0
    %2313 = vmatprep.mubr.f32.mxu0 0.0
    %2314 = vmatmul.mubr.f32.gmra.mxu0 %v2177
    %v2315 = vpop.f32.mrf.mxu0
    %v2316 = vadd.f32 %v2246, %v2315
    %v2317 = vpop.f32.mrf.mxu0
    %2318 = vdwg.mxu0
    %v2319 = vld [vmem:[%s7] sm:$0x1]
    %v2321 = vlaneseq
    %v2322 = vshrl.u32 %v2321, 7
    %v2323 = vsub.s32 0, %v2322
    %v2324 = vrot.slane %v2319, %v2323
    %v2326 = vadd.f32 %v2316, %v2324
    %v2327 = vlaneseq
    %v2328 = vand.u32 %v2327, 127
    %vm2329 = vcmp.lt.s32.totalorder %v2328, 9
    %v2330 = vsel %vm2329, %v2326, -1e+30
    %vm2331 = vcmask 123904
    %v2332 = vsel %vm2331, %v2330, -inf
    %2333 = vmax.xlane.f32.xlu0 %v2332
    %v2334 = vpop.xlane.xlu0 %2333
    %v2335 = vsub.f32 %v2330, %v2334
    %v2336 = vmul.f32 %v2335, 1.442695
    %v2337 = vpow.pop %v2336
    %v2338 = vsel %vm2329, %v2337, 0.0
    %v2339 = vsel %vm2331, %v2338, 0.0
    %2340 = vadd.xlane.f32.xlu0 %v2339
    %v2341 = vpop.xlane.xlu0 %2340
    %v2342 = vrcp.pop %v2341
    %v2343 = vmul.f32 %v2341, %v2342
    %v2344 = vsub.f32 2.0, %v2343
    %v2345 = vmul.f32 %v2342, %v2344
    %v2346 = vmul.f32 %v2338, %v2345
    %v2347 = vtanh.pop %v2326
    %vm2348 = vcmp.eq.s32.totalorder %v2328, 9
    %v2349 = vsel %vm2348, %v2347, 0.0
    %v2350 = vsel %vm2329, %v2346, %v2349
    %2351 = vst.msk [vmem:[#allocation2] sm:$0x3] %vm2331, %v2350
    // Predicated region
    $region34: #{tpu_custom_call.1} parent=1 // pred_check
      _
    $region35: #{tpu_custom_call.1} parent=1 // pred_check_branch
      %2353 = sbr.rel (0) target = $region37
    $region36: #{tpu_custom_call.1} parent=1 // pred_region
      %s2355 = ssub.s32 32, 32
      %2356 = vsyncadd [#allocation3], %s2355
      %s2358 = sshll.u32 [#allocation2], 4
      %s2359 = int_to_ptr.vmem [resolvable:$true] %s2358
      %2361 = dma.vmem_to_hbm [thread:$0]  %s2359, 32, %s8, [#allocation3]
    $region37: #{tpu_custom_call.1} parent=1 // pred_fallthru
      _
    // Predicated region
    $region38: #{tpu_custom_call.1} parent=1 // pred_check
      _
    $region39: #{tpu_custom_call.1} parent=1 // pred_check_branch
      %2363 = sbr.rel (0) target = $region41
    $region40: #{tpu_custom_call.1} parent=1 // pred_region
      %2364 = dma.done [#allocation3], 32
    $region41: #{tpu_custom_call.1} parent=1 // pred_fallthru
      _
    %2365 = vsyncpa [#allocation3], 1

// kernel: tpu_custom_call.1
$region0: #{tpu_custom_call.1}
  #allocation0 [shape = 'u32[]', space=smem, size = 0x4, offset = 0x4, fixed_abs, tag = 'smem constant byte address 0x4 - core index']
  #allocation1 [shape = 'u32[144,128]{1,0:T(1,128)}', space=vmem, size = 0x12000, scoped, tag = 'internal scratch']
  %s0 = inlined_call_operand.vmem [shape: bf16[2,1152], index: 0, kind: input, shape index: {}]
  %s1 = inlined_call_operand.vmem [shape: bf16[1152,320], index: 1, kind: input, shape index: {}]
  %s2 = inlined_call_operand.vmem [shape: f32[1,320], index: 2, kind: input, shape index: {}]
  %s3 = inlined_call_operand.vmem [shape: f32[32,32], index: 3, kind: input, shape index: {}]
  %s4 = inlined_call_operand.vmem [shape: f32[1,32], index: 4, kind: input, shape index: {}]
  %s5 = inlined_call_operand.vmem [shape: f32[320,16], index: 5, kind: input, shape index: {}]
  %s6 = inlined_call_operand.vmem [shape: f32[32,16], index: 6, kind: input, shape index: {}]
  %s7 = inlined_call_operand.vmem [shape: f32[1,16], index: 7, kind: input, shape index: {}]
  %s8 = inlined_call_operand.hbm [shape: f32[2,16], index: 8, kind: output, shape index: {}]
  %s9 = sld [smem:[#allocation0]]
  $region42: #{tpu_custom_call.1} parent=0
    _
  %s11 = ssub.s32 1, %s9
  %s12 = scalar_select 0, %s11, %s9
  $region1: #{tpu_custom_call.1} parent=0
    #allocation2 [shape = 'u8[1024]{0}', space=vmem, size = 0x400, scoped, tag = 'output window, operand 0, single buffered']
    #allocation3 [shape = 's32[1]{0}', space=sflag, size = 0x4, scoped, tag = 'scoped memory for tpu_custom_call.1']
    %13 = vsyncpa [#allocation3], 0
    // Predicated region
    $region2: #{tpu_custom_call.1} parent=1 // pred_check
      _
    $region3: #{tpu_custom_call.1} parent=1 // pred_check_branch
      %15 = sbr.rel (0) target = $region5
    $region4: #{tpu_custom_call.1} parent=1 // pred_region
      _
    $region5: #{tpu_custom_call.1} parent=1 // pred_fallthru
      _
    // Predicated region
    $region6: #{tpu_custom_call.1} parent=1 // pred_check
      _
    $region7: #{tpu_custom_call.1} parent=1 // pred_check_branch
      %17 = sbr.rel (0) target = $region9
    $region8: #{tpu_custom_call.1} parent=1 // pred_region
      _
    $region9: #{tpu_custom_call.1} parent=1 // pred_fallthru
      _
    // Predicated region
    $region10: #{tpu_custom_call.1} parent=1 // pred_check
      _
    $region11: #{tpu_custom_call.1} parent=1 // pred_check_branch
      %19 = sbr.rel (0) target = $region13
    $region12: #{tpu_custom_call.1} parent=1 // pred_region
      _
    $region13: #{tpu_custom_call.1} parent=1 // pred_fallthru
      _
    // Predicated region
    $region14: #{tpu_custom_call.1} parent=1 // pred_check
      _
    $region15: #{tpu_custom_call.1} parent=1 // pred_check_branch
      %21 = sbr.rel (0) target = $region17
    $region16: #{tpu_custom_call.1} parent=1 // pred_region
      _
    $region17: #{tpu_custom_call.1} parent=1 // pred_fallthru
      _
    // Predicated region
    $region18: #{tpu_custom_call.1} parent=1 // pred_check
      _
    $region19: #{tpu_custom_call.1} parent=1 // pred_check_branch
      %23 = sbr.rel (0) target = $region21
    $region20: #{tpu_custom_call.1} parent=1 // pred_region
      _
    $region21: #{tpu_custom_call.1} parent=1 // pred_fallthru
      _
    // Predicated region
    $region22: #{tpu_custom_call.1} parent=1 // pred_check
      _
    $region23: #{tpu_custom_call.1} parent=1 // pred_check_branch
      %25 = sbr.rel (0) target = $region25
    $region24: #{tpu_custom_call.1} parent=1 // pred_region
      _
    $region25: #{tpu_custom_call.1} parent=1 // pred_fallthru
      _
    // Predicated region
    $region26: #{tpu_custom_call.1} parent=1 // pred_check
      _
    $region27: #{tpu_custom_call.1} parent=1 // pred_check_branch
      %27 = sbr.rel (0) target = $region29
    $region28: #{tpu_custom_call.1} parent=1 // pred_region
      _
    $region29: #{tpu_custom_call.1} parent=1 // pred_fallthru
      _
    // Predicated region
    $region30: #{tpu_custom_call.1} parent=1 // pred_check
      _
    $region31: #{tpu_custom_call.1} parent=1 // pred_check_branch
      %29 = sbr.rel (0) target = $region33
    $region32: #{tpu_custom_call.1} parent=1 // pred_region
      _
    $region33: #{tpu_custom_call.1} parent=1 // pred_fallthru
      _
    %v31 = vld [vmem:[%s0] sm:$0xff]
    %v32 = vld [vmem:[%s0 + $0x8] sm:$0x1]
    %v33 = vld [vmem:[%s1] sm:$0xff]
    %v34 = vld [vmem:[%s1 + $0x8] sm:$0xf]
    %v35 = vld [vmem:[%s1 + $0xc] sm:$0xff]
    %v36 = vld [vmem:[%s1 + $0x14] sm:$0xf]
    %v37 = vld [vmem:[%s1 + $0x18] sm:$0xff]
    %v38 = vld [vmem:[%s1 + $0x20] sm:$0xf]
    %v39 = vld [vmem:[%s1 + $0x24] sm:$0xff]
    %v40 = vld [vmem:[%s1 + $0x2c] sm:$0xf]
    %v41 = vld [vmem:[%s1 + $0x30] sm:$0xff]
    %v42 = vld [vmem:[%s1 + $0x38] sm:$0xf]
    %v43 = vld [vmem:[%s1 + $0x3c] sm:$0xff]
    %v44 = vld [vmem:[%s1 + $0x44] sm:$0xf]
    %v45 = vld [vmem:[%s1 + $0x48] sm:$0xff]
    %v46 = vld [vmem:[%s1 + $0x50] sm:$0xf]
    %v47 = vld [vmem:[%s1 + $0x54] sm:$0xff]
    %v48 = vld [vmem:[%s1 + $0x5c] sm:$0xf]
    %v49 = vld [vmem:[%s1 + $0x60] sm:$0xff]
    %v50 = vld [vmem:[%s1 + $0x68] sm:$0xf]
    %v51 = vld [vmem:[%s1 + $0x6c] sm:$0xff]
    %v52 = vld [vmem:[%s1 + $0x74] sm:$0xf]
    %v53 = vld [vmem:[%s1 + $0x78] sm:$0xff]
    %v54 = vld [vmem:[%s1 + $0x80] sm:$0xf]
    %v55 = vld [vmem:[%s1 + $0x84] sm:$0xff]
    %v56 = vld [vmem:[%s1 + $0x8c] sm:$0xf]
    %v57 = vld [vmem:[%s1 + $0x90] sm:$0xff]
    %v58 = vld [vmem:[%s1 + $0x98] sm:$0xf]
    %v59 = vld [vmem:[%s1 + $0x9c] sm:$0xff]
    %v60 = vld [vmem:[%s1 + $0xa4] sm:$0xf]
    %v61 = vld [vmem:[%s1 + $0xa8] sm:$0xff]
    %v62 = vld [vmem:[%s1 + $0xb0] sm:$0xf]
    %v63 = vld [vmem:[%s1 + $0xb4] sm:$0xff]
    %v64 = vld [vmem:[%s1 + $0xbc] sm:$0xf]
    %v65 = vld [vmem:[%s1 + $0xc0] sm:$0xff]
    %v66 = vld [vmem:[%s1 + $0xc8] sm:$0xf]
    %v67 = vld [vmem:[%s1 + $0xcc] sm:$0xff]
    %v68 = vld [vmem:[%s1 + $0xd4] sm:$0xf]
    %v69 = vld [vmem:[%s1 + $0xd8] sm:$0xff]
    %v70 = vld [vmem:[%s1 + $0xe0] sm:$0xf]
    %v71 = vld [vmem:[%s1 + $0xe4] sm:$0xff]
    %v72 = vld [vmem:[%s1 + $0xec] sm:$0xf]
    %v73 = vld [vmem:[%s1 + $0xf0] sm:$0xff]
    %v74 = vld [vmem:[%s1 + $0xf8] sm:$0xf]
    %v75 = vld [vmem:[%s1 + $0xfc] sm:$0xff]
    %v76 = vld [vmem:[%s1 + $0x104] sm:$0xf]
    %v77 = vld [vmem:[%s1 + $0x108] sm:$0xff]
    %v78 = vld [vmem:[%s1 + $0x110] sm:$0xf]
    %v79 = vld [vmem:[%s1 + $0x114] sm:$0xff]
    %v80 = vld [vmem:[%s1 + $0x11c] sm:$0xf]
    %v81 = vld [vmem:[%s1 + $0x120] sm:$0xff]
    %v82 = vld [vmem:[%s1 + $0x128] sm:$0xf]
    %v83 = vld [vmem:[%s1 + $0x12c] sm:$0xff]
    %v84 = vld [vmem:[%s1 + $0x134] sm:$0xf]
    %v85 = vld [vmem:[%s1 + $0x138] sm:$0xff]
    %v86 = vld [vmem:[%s1 + $0x140] sm:$0xf]
    %v87 = vld [vmem:[%s1 + $0x144] sm:$0xff]
    %v88 = vld [vmem:[%s1 + $0x14c] sm:$0xf]
    %v89 = vld [vmem:[%s1 + $0x150] sm:$0xff]
    %v90 = vld [vmem:[%s1 + $0x158] sm:$0xf]
    %v91 = vld [vmem:[%s1 + $0x15c] sm:$0xff]
    %v92 = vld [vmem:[%s1 + $0x164] sm:$0xf]
    %v93 = vld [vmem:[%s1 + $0x168] sm:$0xff]
    %v94 = vld [vmem:[%s1 + $0x170] sm:$0xf]
    %v95 = vld [vmem:[%s1 + $0x174] sm:$0xff]
    %v96 = vld [vmem:[%s1 + $0x17c] sm:$0xf]
    %v97 = vld [vmem:[%s1 + $0x180] sm:$0xff]
    %v98 = vld [vmem:[%s1 + $0x188] sm:$0xf]
    %v99 = vld [vmem:[%s1 + $0x18c] sm:$0xff]
    %v100 = vld [vmem:[%s1 + $0x194] sm:$0xf]
    %v101 = vld [vmem:[%s1 + $0x198] sm:$0xff]
    %v102 = vld [vmem:[%s1 + $0x1a0] sm:$0xf]
    %v103 = vld [vmem:[%s1 + $0x1a4] sm:$0xff]
    %v104 = vld [vmem:[%s1 + $0x1ac] sm:$0xf]
    %v105 = vld [vmem:[%s1 + $0x1b0] sm:$0xff]
    %v106 = vld [vmem:[%s1 + $0x1b8] sm:$0xf]
    %v107 = vld [vmem:[%s1 + $0x1bc] sm:$0xff]
    %v108 = vld [vmem:[%s1 + $0x1c4] sm:$0xf]
    %v109 = vld [vmem:[%s1 + $0x1c8] sm:$0xff]
    %v110 = vld [vmem:[%s1 + $0x1d0] sm:$0xf]
    %v111 = vld [vmem:[%s1 + $0x1d4] sm:$0xff]
    %v112 = vld [vmem:[%s1 + $0x1dc] sm:$0xf]
    %v113 = vld [vmem:[%s1 + $0x1e0] sm:$0xff]
    %v114 = vld [vmem:[%s1 + $0x1e8] sm:$0xf]
    %v115 = vld [vmem:[%s1 + $0x1ec] sm:$0xff]
    %v116 = vld [vmem:[%s1 + $0x1f4] sm:$0xf]
    %v117 = vld [vmem:[%s1 + $0x1f8] sm:$0xff]
    %v118 = vld [vmem:[%s1 + $0x200] sm:$0xf]
    %v119 = vld [vmem:[%s1 + $0x204] sm:$0xff]
    %v120 = vld [vmem:[%s1 + $0x20c] sm:$0xf]
    %v121 = vld [vmem:[%s1 + $0x210] sm:$0xff]
    %v122 = vld [vmem:[%s1 + $0x218] sm:$0xf]
    %v123 = vld [vmem:[%s1 + $0x21c] sm:$0xff]
    %v124 = vld [vmem:[%s1 + $0x224] sm:$0xf]
    %v125 = vld [vmem:[%s1 + $0x228] sm:$0xff]
    %v126 = vld [vmem:[%s1 + $0x230] sm:$0xf]
    %v127 = vld [vmem:[%s1 + $0x234] sm:$0xff]
    %v128 = vld [vmem:[%s1 + $0x23c] sm:$0xf]
    %v129 = vld [vmem:[%s1 + $0x240] sm:$0xff]
    %v130 = vld [vmem:[%s1 + $0x248] sm:$0xf]
    %v131 = vld [vmem:[%s1 + $0x24c] sm:$0xff]
    %v132 = vld [vmem:[%s1 + $0x254] sm:$0xf]
    %v133 = vld [vmem:[%s1 + $0x258] sm:$0xff]
    %v134 = vld [vmem:[%s1 + $0x260] sm:$0xf]
    %v135 = vld [vmem:[%s1 + $0x264] sm:$0xff]
    %v136 = vld [vmem:[%s1 + $0x26c] sm:$0xf]
    %v137 = vld [vmem:[%s1 + $0x270] sm:$0xff]
    %v138 = vld [vmem:[%s1 + $0x278] sm:$0xf]
    %v139 = vld [vmem:[%s1 + $0x27c] sm:$0xff]
    %v140 = vld [vmem:[%s1 + $0x284] sm:$0xf]
    %v141 = vld [vmem:[%s1 + $0x288] sm:$0xff]
    %v142 = vld [vmem:[%s1 + $0x290] sm:$0xf]
    %v143 = vld [vmem:[%s1 + $0x294] sm:$0xff]
    %v144 = vld [vmem:[%s1 + $0x29c] sm:$0xf]
    %v145 = vld [vmem:[%s1 + $0x2a0] sm:$0xff]
    %v146 = vld [vmem:[%s1 + $0x2a8] sm:$0xf]
    %v147 = vld [vmem:[%s1 + $0x2ac] sm:$0xff]
    %v148 = vld [vmem:[%s1 + $0x2b4] sm:$0xf]
    %v149 = vld [vmem:[%s1 + $0x2b8] sm:$0xff]
    %v150 = vld [vmem:[%s1 + $0x2c0] sm:$0xf]
    %v151 = vld [vmem:[%s1 + $0x2c4] sm:$0xff]
    %v152 = vld [vmem:[%s1 + $0x2cc] sm:$0xf]
    %v153 = vld [vmem:[%s1 + $0x2d0] sm:$0xff]
    %v154 = vld [vmem:[%s1 + $0x2d8] sm:$0xf]
    %v155 = vld [vmem:[%s1 + $0x2dc] sm:$0xff]
    %v156 = vld [vmem:[%s1 + $0x2e4] sm:$0xf]
    %v157 = vld [vmem:[%s1 + $0x2e8] sm:$0xff]
    %v158 = vld [vmem:[%s1 + $0x2f0] sm:$0xf]
    %v159 = vld [vmem:[%s1 + $0x2f4] sm:$0xff]
    %v160 = vld [vmem:[%s1 + $0x2fc] sm:$0xf]
    %v161 = vld [vmem:[%s1 + $0x300] sm:$0xff]
    %v162 = vld [vmem:[%s1 + $0x308] sm:$0xf]
    %v163 = vld [vmem:[%s1 + $0x30c] sm:$0xff]
    %v164 = vld [vmem:[%s1 + $0x314] sm:$0xf]
    %v165 = vld [vmem:[%s1 + $0x318] sm:$0xff]
    %v166 = vld [vmem:[%s1 + $0x320] sm:$0xf]
    %v167 = vld [vmem:[%s1 + $0x324] sm:$0xff]
    %v168 = vld [vmem:[%s1 + $0x32c] sm:$0xf]
    %v169 = vld [vmem:[%s1 + $0x330] sm:$0xff]
    %v170 = vld [vmem:[%s1 + $0x338] sm:$0xf]
    %v171 = vld [vmem:[%s1 + $0x33c] sm:$0xff]
    %v172 = vld [vmem:[%s1 + $0x344] sm:$0xf]
    %v173 = vld [vmem:[%s1 + $0x348] sm:$0xff]
    %v174 = vld [vmem:[%s1 + $0x350] sm:$0xf]
    %v175 = vld [vmem:[%s1 + $0x354] sm:$0xff]
    %v176 = vld [vmem:[%s1 + $0x35c] sm:$0xf]
    %v177 = vld [vmem:[%s1 + $0x360] sm:$0xff]
    %v178 = vld [vmem:[%s1 + $0x368] sm:$0xf]
    %v179 = vld [vmem:[%s1 + $0x36c] sm:$0xff]
    %v180 = vld [vmem:[%s1 + $0x374] sm:$0xf]
    %v181 = vld [vmem:[%s1 + $0x378] sm:$0xff]
    %v182 = vld [vmem:[%s1 + $0x380] sm:$0xf]
    %v183 = vld [vmem:[%s1 + $0x384] sm:$0xff]
    %v184 = vld [vmem:[%s1 + $0x38c] sm:$0xf]
    %v185 = vld [vmem:[%s1 + $0x390] sm:$0xff]
    %v186 = vld [vmem:[%s1 + $0x398] sm:$0xf]
    %v187 = vld [vmem:[%s1 + $0x39c] sm:$0xff]
    %v188 = vld [vmem:[%s1 + $0x3a4] sm:$0xf]
    %v189 = vld [vmem:[%s1 + $0x3a8] sm:$0xff]
    %v190 = vld [vmem:[%s1 + $0x3b0] sm:$0xf]
    %v191 = vld [vmem:[%s1 + $0x3b4] sm:$0xff]
    %v192 = vld [vmem:[%s1 + $0x3bc] sm:$0xf]
    %v193 = vld [vmem:[%s1 + $0x3c0] sm:$0xff]
    %v194 = vld [vmem:[%s1 + $0x3c8] sm:$0xf]
    %v195 = vld [vmem:[%s1 + $0x3cc] sm:$0xff]
    %v196 = vld [vmem:[%s1 + $0x3d4] sm:$0xf]
    %v197 = vld [vmem:[%s1 + $0x3d8] sm:$0xff]
    %v198 = vld [vmem:[%s1 + $0x3e0] sm:$0xf]
    %v199 = vld [vmem:[%s1 + $0x3e4] sm:$0xff]
    %v200 = vld [vmem:[%s1 + $0x3ec] sm:$0xf]
    %v201 = vld [vmem:[%s1 + $0x3f0] sm:$0xff]
    %v202 = vld [vmem:[%s1 + $0x3f8] sm:$0xf]
    %v203 = vld [vmem:[%s1 + $0x3fc] sm:$0xff]
    %v204 = vld [vmem:[%s1 + $0x404] sm:$0xf]
    %v205 = vld [vmem:[%s1 + $0x408] sm:$0xff]
    %v206 = vld [vmem:[%s1 + $0x410] sm:$0xf]
    %v207 = vld [vmem:[%s1 + $0x414] sm:$0xff]
    %v208 = vld [vmem:[%s1 + $0x41c] sm:$0xf]
    %v209 = vld [vmem:[%s1 + $0x420] sm:$0xff]
    %v210 = vld [vmem:[%s1 + $0x428] sm:$0xf]
    %v211 = vld [vmem:[%s1 + $0x42c] sm:$0xff]
    %v212 = vld [vmem:[%s1 + $0x434] sm:$0xf]
    %v213 = vld [vmem:[%s1 + $0x438] sm:$0xff]
    %v214 = vld [vmem:[%s1 + $0x440] sm:$0xf]
    %v215 = vld [vmem:[%s1 + $0x444] sm:$0xff]
    %v216 = vld [vmem:[%s1 + $0x44c] sm:$0xf]
    %v217 = vld [vmem:[%s1 + $0x450] sm:$0xff]
    %v218 = vld [vmem:[%s1 + $0x458] sm:$0xf]
    %v219 = vld [vmem:[%s1 + $0x45c] sm:$0xff]
    %v220 = vld [vmem:[%s1 + $0x464] sm:$0xf]
    %v221 = vld [vmem:[%s1 + $0x468] sm:$0xff]
    %v222 = vld [vmem:[%s1 + $0x470] sm:$0xf]
    %v223 = vld [vmem:[%s1 + $0x474] sm:$0xff]
    %v224 = vld [vmem:[%s1 + $0x47c] sm:$0xf]
    %v225 = vld [vmem:[%s1 + $0x480] sm:$0xff]
    %v226 = vld [vmem:[%s1 + $0x488] sm:$0xf]
    %v227 = vld [vmem:[%s1 + $0x48c] sm:$0xff]
    %v228 = vld [vmem:[%s1 + $0x494] sm:$0xf]
    %v229 = vld [vmem:[%s1 + $0x498] sm:$0xff]
    %v230 = vld [vmem:[%s1 + $0x4a0] sm:$0xf]
    %v231 = vld [vmem:[%s1 + $0x4a4] sm:$0xff]
    %v232 = vld [vmem:[%s1 + $0x4ac] sm:$0xf]
    %v233 = vld [vmem:[%s1 + $0x4b0] sm:$0xff]
    %v234 = vld [vmem:[%s1 + $0x4b8] sm:$0xf]
    %v235 = vld [vmem:[%s1 + $0x4bc] sm:$0xff]
    %v236 = vld [vmem:[%s1 + $0x4c4] sm:$0xf]
    %v237 = vld [vmem:[%s1 + $0x4c8] sm:$0xff]
    %v238 = vld [vmem:[%s1 + $0x4d0] sm:$0xf]
    %v239 = vld [vmem:[%s1 + $0x4d4] sm:$0xff]
    %v240 = vld [vmem:[%s1 + $0x4dc] sm:$0xf]
    %v241 = vld [vmem:[%s1 + $0x4e0] sm:$0xff]
    %v242 = vld [vmem:[%s1 + $0x4e8] sm:$0xf]
    %v243 = vld [vmem:[%s1 + $0x4ec] sm:$0xff]
    %v244 = vld [vmem:[%s1 + $0x4f4] sm:$0xf]
    %v245 = vld [vmem:[%s1 + $0x4f8] sm:$0xff]
    %v246 = vld [vmem:[%s1 + $0x500] sm:$0xf]
    %v247 = vld [vmem:[%s1 + $0x504] sm:$0xff]
    %v248 = vld [vmem:[%s1 + $0x50c] sm:$0xf]
    %v249 = vld [vmem:[%s1 + $0x510] sm:$0xff]
    %v250 = vld [vmem:[%s1 + $0x518] sm:$0xf]
    %v251 = vld [vmem:[%s1 + $0x51c] sm:$0xff]
    %v252 = vld [vmem:[%s1 + $0x524] sm:$0xf]
    %v253 = vld [vmem:[%s1 + $0x528] sm:$0xff]
    %v254 = vld [vmem:[%s1 + $0x530] sm:$0xf]
    %v255 = vld [vmem:[%s1 + $0x534] sm:$0xff]
    %v256 = vld [vmem:[%s1 + $0x53c] sm:$0xf]
    %v257 = vld [vmem:[%s1 + $0x540] sm:$0xff]
    %v258 = vld [vmem:[%s1 + $0x548] sm:$0xf]
    %v259 = vld [vmem:[%s1 + $0x54c] sm:$0xff]
    %v260 = vld [vmem:[%s1 + $0x554] sm:$0xf]
    %v261 = vld [vmem:[%s1 + $0x558] sm:$0xff]
    %v262 = vld [vmem:[%s1 + $0x560] sm:$0xf]
    %v263 = vld [vmem:[%s1 + $0x564] sm:$0xff]
    %v264 = vld [vmem:[%s1 + $0x56c] sm:$0xf]
    %v265 = vld [vmem:[%s1 + $0x570] sm:$0xff]
    %v266 = vld [vmem:[%s1 + $0x578] sm:$0xf]
    %v267 = vld [vmem:[%s1 + $0x57c] sm:$0xff]
    %v268 = vld [vmem:[%s1 + $0x584] sm:$0xf]
    %v269 = vld [vmem:[%s1 + $0x588] sm:$0xff]
    %v270 = vld [vmem:[%s1 + $0x590] sm:$0xf]
    %v271 = vld [vmem:[%s1 + $0x594] sm:$0xff]
    %v272 = vld [vmem:[%s1 + $0x59c] sm:$0xf]
    %v273 = vld [vmem:[%s1 + $0x5a0] sm:$0xff]
    %v274 = vld [vmem:[%s1 + $0x5a8] sm:$0xf]
    %v275 = vld [vmem:[%s1 + $0x5ac] sm:$0xff]
    %v276 = vld [vmem:[%s1 + $0x5b4] sm:$0xf]
    %v277 = vld [vmem:[%s1 + $0x5b8] sm:$0xff]
    %v278 = vld [vmem:[%s1 + $0x5c0] sm:$0xf]
    %v279 = vld [vmem:[%s1 + $0x5c4] sm:$0xff]
    %v280 = vld [vmem:[%s1 + $0x5cc] sm:$0xf]
    %v281 = vld [vmem:[%s1 + $0x5d0] sm:$0xff]
    %v282 = vld [vmem:[%s1 + $0x5d8] sm:$0xf]
    %v283 = vld [vmem:[%s1 + $0x5dc] sm:$0xff]
    %v284 = vld [vmem:[%s1 + $0x5e4] sm:$0xf]
    %v285 = vld [vmem:[%s1 + $0x5e8] sm:$0xff]
    %v286 = vld [vmem:[%s1 + $0x5f0] sm:$0xf]
    %v287 = vld [vmem:[%s1 + $0x5f4] sm:$0xff]
    %v288 = vld [vmem:[%s1 + $0x5fc] sm:$0xf]
    %v289 = vld [vmem:[%s1 + $0x600] sm:$0xff]
    %v290 = vld [vmem:[%s1 + $0x608] sm:$0xf]
    %v291 = vld [vmem:[%s1 + $0x60c] sm:$0xff]
    %v292 = vld [vmem:[%s1 + $0x614] sm:$0xf]
    %v293 = vld [vmem:[%s1 + $0x618] sm:$0xff]
    %v294 = vld [vmem:[%s1 + $0x620] sm:$0xf]
    %v295 = vld [vmem:[%s1 + $0x624] sm:$0xff]
    %v296 = vld [vmem:[%s1 + $0x62c] sm:$0xf]
    %v297 = vld [vmem:[%s1 + $0x630] sm:$0xff]
    %v298 = vld [vmem:[%s1 + $0x638] sm:$0xf]
    %v299 = vld [vmem:[%s1 + $0x63c] sm:$0xff]
    %v300 = vld [vmem:[%s1 + $0x644] sm:$0xf]
    %v301 = vld [vmem:[%s1 + $0x648] sm:$0xff]
    %v302 = vld [vmem:[%s1 + $0x650] sm:$0xf]
    %v303 = vld [vmem:[%s1 + $0x654] sm:$0xff]
    %v304 = vld [vmem:[%s1 + $0x65c] sm:$0xf]
    %v305 = vld [vmem:[%s1 + $0x660] sm:$0xff]
    %v306 = vld [vmem:[%s1 + $0x668] sm:$0xf]
    %v307 = vld [vmem:[%s1 + $0x66c] sm:$0xff]
    %v308 = vld [vmem:[%s1 + $0x674] sm:$0xf]
    %v309 = vld [vmem:[%s1 + $0x678] sm:$0xff]
    %v310 = vld [vmem:[%s1 + $0x680] sm:$0xf]
    %v311 = vld [vmem:[%s1 + $0x684] sm:$0xff]
    %v312 = vld [vmem:[%s1 + $0x68c] sm:$0xf]
    %v313 = vld [vmem:[%s1 + $0x690] sm:$0xff]
    %v314 = vld [vmem:[%s1 + $0x698] sm:$0xf]
    %v315 = vld [vmem:[%s1 + $0x69c] sm:$0xff]
    %v316 = vld [vmem:[%s1 + $0x6a4] sm:$0xf]
    %v317 = vld [vmem:[%s1 + $0x6a8] sm:$0xff]
    %v318 = vld [vmem:[%s1 + $0x6b0] sm:$0xf]
    %v319 = vld [vmem:[%s1 + $0x6b4] sm:$0xff]
    %v320 = vld [vmem:[%s1 + $0x6bc] sm:$0xf]
    %v321 = vld [vmem:[%s2] sm:$0x7]
    %v323 = vlaneseq
    %v324 = vshrl.u32 %v323, 7
    %v325 = vsub.s32 0, %v324
    %v326 = vrot.slane %v321, %v325
    %v327 = vlaneseq
    %v328 = vshrl.u32 %v327, 7
    %v329 = vsub.s32 1, %v328
    %v330 = vrot.slane %v321, %v329
    %v331 = vlaneseq
    %v332 = vshrl.u32 %v331, 7
    %v333 = vsub.s32 2, %v332
    %v334 = vrot.slane %v321, %v333
    %v340 = vcombine.high %v31, %v31
    %v342 = vunpack.c.l.s4 1966171168
    %v343 = vunpack.c.0.s8 %v342
    %v344 = vlaneseq
    %v345 = vshrl.u32 %v344, 7
    %v346 = vsub.s32 %v343, %v345
    %v347 = vrot.slane %v31, %v346
    %v349 = vunpack.c.l.s4 1966171168
    %v350 = vunpack.c.0.s8 %v349
    %v351 = vlaneseq
    %v352 = vshrl.u32 %v351, 7
    %v353 = vsub.s32 %v350, %v352
    %v354 = vrot.slane %v340, %v353
    %v355 = vcombine.high %v347, %v347
    %v356 = vcombine.high %v354, %v354
    %v358 = vunpack.c.l.s4 1966171168
    %v359 = vunpack.c.0.s8 %v358
    %v360 = vlaneseq
    %v361 = vshrl.u32 %v360, 7
    %v362 = vsub.s32 %v359, %v361
    %v363 = vrot.slane %v347, %v362
    %v365 = vunpack.c.l.s4 1966171168
    %v366 = vunpack.c.0.s8 %v365
    %v367 = vlaneseq
    %v368 = vshrl.u32 %v367, 7
    %v369 = vsub.s32 %v366, %v368
    %v370 = vrot.slane %v354, %v369
    %v372 = vunpack.c.l.s4 1966171168
    %v373 = vunpack.c.0.s8 %v372
    %v374 = vlaneseq
    %v375 = vshrl.u32 %v374, 7
    %v376 = vsub.s32 %v373, %v375
    %v377 = vrot.slane %v355, %v376
    %v379 = vunpack.c.l.s4 1966171168
    %v380 = vunpack.c.0.s8 %v379
    %v381 = vlaneseq
    %v382 = vshrl.u32 %v381, 7
    %v383 = vsub.s32 %v380, %v382
    %v384 = vrot.slane %v356, %v383
    %v385 = vcombine.high %v363, %v363
    %v386 = vcombine.high %v370, %v370
    %v387 = vcombine.high %v377, %v377
    %v388 = vcombine.high %v384, %v384
    %v390 = vunpack.c.l.s4 1966171168
    %v391 = vunpack.c.0.s8 %v390
    %v392 = vlaneseq
    %v393 = vshrl.u32 %v392, 7
    %v394 = vsub.s32 %v391, %v393
    %v395 = vrot.slane %v32, %v394
    %v397 = vunpack.c.l.s4 1966171168
    %v398 = vunpack.c.0.s8 %v397
    %v399 = vlaneseq
    %v400 = vshrl.u32 %v399, 7
    %v401 = vsub.s32 %v398, %v400
    %v402 = vrot.slane %v395, %v401
    %v700 = vunpack.c.l.b16 %v33
    %v701 = vunpack.c.h.b16 %v33
    %v702 = vunpack.c.l.b16 %v34
    %v703 = vunpack.c.l.b16 %v35
    %v704 = vunpack.c.h.b16 %v35
    %v705 = vunpack.c.l.b16 %v36
    %v706 = vunpack.c.l.b16 %v37
    %v707 = vunpack.c.h.b16 %v37
    %v708 = vunpack.c.l.b16 %v38
    %v709 = vunpack.c.l.b16 %v39
    %v710 = vunpack.c.h.b16 %v39
    %v711 = vunpack.c.l.b16 %v40
    %v712 = vunpack.c.l.b16 %v41
    %v713 = vunpack.c.h.b16 %v41
    %v714 = vunpack.c.l.b16 %v42
    %v715 = vunpack.c.l.b16 %v43
    %v716 = vunpack.c.h.b16 %v43
    %v717 = vunpack.c.l.b16 %v44
    %v718 = vunpack.c.l.b16 %v45
    %v719 = vunpack.c.h.b16 %v45
    %v720 = vunpack.c.l.b16 %v46
    %v721 = vunpack.c.l.b16 %v47
    %v722 = vunpack.c.h.b16 %v47
    %v723 = vunpack.c.l.b16 %v48
    %v724 = vunpack.c.l.b16 %v49
    %v725 = vunpack.c.h.b16 %v49
    %v726 = vunpack.c.l.b16 %v50
    %v727 = vunpack.c.l.b16 %v51
    %v728 = vunpack.c.h.b16 %v51
    %v729 = vunpack.c.l.b16 %v52
    %v730 = vunpack.c.l.b16 %v53
    %v731 = vunpack.c.h.b16 %v53
    %v732 = vunpack.c.l.b16 %v54
    %v733 = vunpack.c.l.b16 %v55
    %v734 = vunpack.c.h.b16 %v55
    %v735 = vunpack.c.l.b16 %v56
    %v736 = vunpack.c.l.b16 %v57
    %v737 = vunpack.c.h.b16 %v57
    %v738 = vunpack.c.l.b16 %v58
    %v739 = vunpack.c.l.b16 %v59
    %v740 = vunpack.c.h.b16 %v59
    %v741 = vunpack.c.l.b16 %v60
    %v742 = vunpack.c.l.b16 %v61
    %v743 = vunpack.c.h.b16 %v61
    %v744 = vunpack.c.l.b16 %v62
    %v745 = vunpack.c.l.b16 %v63
    %v746 = vunpack.c.h.b16 %v63
    %v747 = vunpack.c.l.b16 %v64
    %v748 = vunpack.c.l.b16 %v65
    %v749 = vunpack.c.h.b16 %v65
    %v750 = vunpack.c.l.b16 %v66
    %v751 = vunpack.c.l.b16 %v67
    %v752 = vunpack.c.h.b16 %v67
    %v753 = vunpack.c.l.b16 %v68
    %v754 = vunpack.c.l.b16 %v69
    %v755 = vunpack.c.h.b16 %v69
    %v756 = vunpack.c.l.b16 %v70
    %v757 = vunpack.c.l.b16 %v71
    %v758 = vunpack.c.h.b16 %v71
    %v759 = vunpack.c.l.b16 %v72
    %v760 = vunpack.c.l.b16 %v73
    %v761 = vunpack.c.h.b16 %v73
    %v762 = vunpack.c.l.b16 %v74
    %v763 = vunpack.c.l.b16 %v75
    %v764 = vunpack.c.h.b16 %v75
    %v765 = vunpack.c.l.b16 %v76
    %v766 = vunpack.c.l.b16 %v77
    %v767 = vunpack.c.h.b16 %v77
    %v768 = vunpack.c.l.b16 %v78
    %v769 = vunpack.c.l.b16 %v79
    %v770 = vunpack.c.h.b16 %v79
    %v771 = vunpack.c.l.b16 %v80
    %v772 = vunpack.c.l.b16 %v81
    %v773 = vunpack.c.h.b16 %v81
    %v774 = vunpack.c.l.b16 %v82
    %v775 = vunpack.c.l.b16 %v83
    %v776 = vunpack.c.h.b16 %v83
    %v777 = vunpack.c.l.b16 %v84
    %v778 = vunpack.c.l.b16 %v85
    %v779 = vunpack.c.h.b16 %v85
    %v780 = vunpack.c.l.b16 %v86
    %v781 = vunpack.c.l.b16 %v87
    %v782 = vunpack.c.h.b16 %v87
    %v783 = vunpack.c.l.b16 %v88
    %v784 = vunpack.c.l.b16 %v89
    %v785 = vunpack.c.h.b16 %v89
    %v786 = vunpack.c.l.b16 %v90
    %v787 = vunpack.c.l.b16 %v91
    %v788 = vunpack.c.h.b16 %v91
    %v789 = vunpack.c.l.b16 %v92
    %v790 = vunpack.c.l.b16 %v93
    %v791 = vunpack.c.h.b16 %v93
    %v792 = vunpack.c.l.b16 %v94
    %v793 = vunpack.c.l.b16 %v95
    %v794 = vunpack.c.h.b16 %v95
    %v795 = vunpack.c.l.b16 %v96
    %v796 = vunpack.c.l.b16 %v97
    %v797 = vunpack.c.h.b16 %v97
    %v798 = vunpack.c.l.b16 %v98
    %v799 = vunpack.c.l.b16 %v99
    %v800 = vunpack.c.h.b16 %v99
    %v801 = vunpack.c.l.b16 %v100
    %v802 = vunpack.c.l.b16 %v101
    %v803 = vunpack.c.h.b16 %v101
    %v804 = vunpack.c.l.b16 %v102
    %v805 = vunpack.c.l.b16 %v103
    %v806 = vunpack.c.h.b16 %v103
    %v807 = vunpack.c.l.b16 %v104
    %v808 = vunpack.c.l.b16 %v105
    %v809 = vunpack.c.h.b16 %v105
    %v810 = vunpack.c.l.b16 %v106
    %v811 = vunpack.c.l.b16 %v107
    %v812 = vunpack.c.h.b16 %v107
    %v813 = vunpack.c.l.b16 %v108
    %v814 = vunpack.c.l.b16 %v109
    %v815 = vunpack.c.h.b16 %v109
    %v816 = vunpack.c.l.b16 %v110
    %v817 = vunpack.c.l.b16 %v111
    %v818 = vunpack.c.h.b16 %v111
    %v819 = vunpack.c.l.b16 %v112
    %v820 = vunpack.c.l.b16 %v113
    %v821 = vunpack.c.h.b16 %v113
    %v822 = vunpack.c.l.b16 %v114
    %v823 = vunpack.c.l.b16 %v115
    %v824 = vunpack.c.h.b16 %v115
    %v825 = vunpack.c.l.b16 %v116
    %v826 = vunpack.c.l.b16 %v117
    %v827 = vunpack.c.h.b16 %v117
    %v828 = vunpack.c.l.b16 %v118
    %v829 = vunpack.c.l.b16 %v119
    %v830 = vunpack.c.h.b16 %v119
    %v831 = vunpack.c.l.b16 %v120
    %v832 = vunpack.c.l.b16 %v121
    %v833 = vunpack.c.h.b16 %v121
    %v834 = vunpack.c.l.b16 %v122
    %v835 = vunpack.c.l.b16 %v123
    %v836 = vunpack.c.h.b16 %v123
    %v837 = vunpack.c.l.b16 %v124
    %v838 = vunpack.c.l.b16 %v125
    %v839 = vunpack.c.h.b16 %v125
    %v840 = vunpack.c.l.b16 %v126
    %v841 = vunpack.c.l.b16 %v127
    %v842 = vunpack.c.h.b16 %v127
    %v843 = vunpack.c.l.b16 %v128
    %v844 = vunpack.c.l.b16 %v129
    %v845 = vunpack.c.h.b16 %v129
    %v846 = vunpack.c.l.b16 %v130
    %v847 = vunpack.c.l.b16 %v131
    %v848 = vunpack.c.h.b16 %v131
    %v849 = vunpack.c.l.b16 %v132
    %v850 = vunpack.c.l.b16 %v133
    %v851 = vunpack.c.h.b16 %v133
    %v852 = vunpack.c.l.b16 %v134
    %v853 = vunpack.c.l.b16 %v135
    %v854 = vunpack.c.h.b16 %v135
    %v855 = vunpack.c.l.b16 %v136
    %v856 = vunpack.c.l.b16 %v137
    %v857 = vunpack.c.h.b16 %v137
    %v858 = vunpack.c.l.b16 %v138
    %v859 = vunpack.c.l.b16 %v139
    %v860 = vunpack.c.h.b16 %v139
    %v861 = vunpack.c.l.b16 %v140
    %v862 = vunpack.c.l.b16 %v141
    %v863 = vunpack.c.h.b16 %v141
    %v864 = vunpack.c.l.b16 %v142
    %v865 = vunpack.c.l.b16 %v143
    %v866 = vunpack.c.h.b16 %v143
    %v867 = vunpack.c.l.b16 %v144
    %v868 = vunpack.c.l.b16 %v145
    %v869 = vunpack.c.h.b16 %v145
    %v870 = vunpack.c.l.b16 %v146
    %v871 = vunpack.c.l.b16 %v147
    %v872 = vunpack.c.h.b16 %v147
    %v873 = vunpack.c.l.b16 %v148
    %v874 = vunpack.c.l.b16 %v149
    %v875 = vunpack.c.h.b16 %v149
    %v876 = vunpack.c.l.b16 %v150
    %v877 = vunpack.c.l.b16 %v151
    %v878 = vunpack.c.h.b16 %v151
    %v879 = vunpack.c.l.b16 %v152
    %v880 = vunpack.c.l.b16 %v153
    %v881 = vunpack.c.h.b16 %v153
    %v882 = vunpack.c.l.b16 %v154
    %v883 = vunpack.c.l.b16 %v155
    %v884 = vunpack.c.h.b16 %v155
    %v885 = vunpack.c.l.b16 %v156
    %v886 = vunpack.c.l.b16 %v157
    %v887 = vunpack.c.h.b16 %v157
    %v888 = vunpack.c.l.b16 %v158
    %v889 = vunpack.c.l.b16 %v159
    %v890 = vunpack.c.h.b16 %v159
    %v891 = vunpack.c.l.b16 %v160
    %v892 = vunpack.c.l.b16 %v161
    %v893 = vunpack.c.h.b16 %v161
    %v894 = vunpack.c.l.b16 %v162
    %v895 = vunpack.c.l.b16 %v163
    %v896 = vunpack.c.h.b16 %v163
    %v897 = vunpack.c.l.b16 %v164
    %v898 = vunpack.c.l.b16 %v165
    %v899 = vunpack.c.h.b16 %v165
    %v900 = vunpack.c.l.b16 %v166
    %v901 = vunpack.c.l.b16 %v167
    %v902 = vunpack.c.h.b16 %v167
    %v903 = vunpack.c.l.b16 %v168
    %v904 = vunpack.c.l.b16 %v169
    %v905 = vunpack.c.h.b16 %v169
    %v906 = vunpack.c.l.b16 %v170
    %v907 = vunpack.c.l.b16 %v171
    %v908 = vunpack.c.h.b16 %v171
    %v909 = vunpack.c.l.b16 %v172
    %v910 = vunpack.c.l.b16 %v173
    %v911 = vunpack.c.h.b16 %v173
    %v912 = vunpack.c.l.b16 %v174
    %v913 = vunpack.c.l.b16 %v175
    %v914 = vunpack.c.h.b16 %v175
    %v915 = vunpack.c.l.b16 %v176
    %v916 = vunpack.c.l.b16 %v177
    %v917 = vunpack.c.h.b16 %v177
    %v918 = vunpack.c.l.b16 %v178
    %v919 = vunpack.c.l.b16 %v179
    %v920 = vunpack.c.h.b16 %v179
    %v921 = vunpack.c.l.b16 %v180
    %v922 = vunpack.c.l.b16 %v181
    %v923 = vunpack.c.h.b16 %v181
    %v924 = vunpack.c.l.b16 %v182
    %v925 = vunpack.c.l.b16 %v183
    %v926 = vunpack.c.h.b16 %v183
    %v927 = vunpack.c.l.b16 %v184
    %v928 = vunpack.c.l.b16 %v185
    %v929 = vunpack.c.h.b16 %v185
    %v930 = vunpack.c.l.b16 %v186
    %v931 = vunpack.c.l.b16 %v187
    %v932 = vunpack.c.h.b16 %v187
    %v933 = vunpack.c.l.b16 %v188
    %v934 = vunpack.c.l.b16 %v189
    %v935 = vunpack.c.h.b16 %v189
    %v936 = vunpack.c.l.b16 %v190
    %v937 = vunpack.c.l.b16 %v191
    %v938 = vunpack.c.h.b16 %v191
    %v939 = vunpack.c.l.b16 %v192
    %v940 = vunpack.c.l.b16 %v193
    %v941 = vunpack.c.h.b16 %v193
    %v942 = vunpack.c.l.b16 %v194
    %v943 = vunpack.c.l.b16 %v195
    %v944 = vunpack.c.h.b16 %v195
    %v945 = vunpack.c.l.b16 %v196
    %v946 = vunpack.c.l.b16 %v197
    %v947 = vunpack.c.h.b16 %v197
    %v948 = vunpack.c.l.b16 %v198
    %v949 = vunpack.c.l.b16 %v199
    %v950 = vunpack.c.h.b16 %v199
    %v951 = vunpack.c.l.b16 %v200
    %v952 = vunpack.c.l.b16 %v201
    %v953 = vunpack.c.h.b16 %v201
    %v954 = vunpack.c.l.b16 %v202
    %v955 = vunpack.c.l.b16 %v203
    %v956 = vunpack.c.h.b16 %v203
    %v957 = vunpack.c.l.b16 %v204
    %v958 = vunpack.c.l.b16 %v205
    %v959 = vunpack.c.h.b16 %v205
    %v960 = vunpack.c.l.b16 %v206
    %v961 = vunpack.c.l.b16 %v207
    %v962 = vunpack.c.h.b16 %v207
    %v963 = vunpack.c.l.b16 %v208
    %v964 = vunpack.c.l.b16 %v209
    %v965 = vunpack.c.h.b16 %v209
    %v966 = vunpack.c.l.b16 %v210
    %v967 = vunpack.c.l.b16 %v211
    %v968 = vunpack.c.h.b16 %v211
    %v969 = vunpack.c.l.b16 %v212
    %v970 = vunpack.c.l.b16 %v213
    %v971 = vunpack.c.h.b16 %v213
    %v972 = vunpack.c.l.b16 %v214
    %v973 = vunpack.c.l.b16 %v215
    %v974 = vunpack.c.h.b16 %v215
    %v975 = vunpack.c.l.b16 %v216
    %v976 = vunpack.c.l.b16 %v217
    %v977 = vunpack.c.h.b16 %v217
    %v978 = vunpack.c.l.b16 %v218
    %v979 = vunpack.c.l.b16 %v219
    %v980 = vunpack.c.h.b16 %v219
    %v981 = vunpack.c.l.b16 %v220
    %v982 = vunpack.c.l.b16 %v221
    %v983 = vunpack.c.h.b16 %v221
    %v984 = vunpack.c.l.b16 %v222
    %v985 = vunpack.c.l.b16 %v223
    %v986 = vunpack.c.h.b16 %v223
    %v987 = vunpack.c.l.b16 %v224
    %v988 = vunpack.c.l.b16 %v225
    %v989 = vunpack.c.h.b16 %v225
    %v990 = vunpack.c.l.b16 %v226
    %v991 = vunpack.c.l.b16 %v227
    %v992 = vunpack.c.h.b16 %v227
    %v993 = vunpack.c.l.b16 %v228
    %v994 = vunpack.c.l.b16 %v229
    %v995 = vunpack.c.h.b16 %v229
    %v996 = vunpack.c.l.b16 %v230
    %v997 = vunpack.c.l.b16 %v231
    %v998 = vunpack.c.h.b16 %v231
    %v999 = vunpack.c.l.b16 %v232
    %v1000 = vunpack.c.l.b16 %v233
    %v1001 = vunpack.c.h.b16 %v233
    %v1002 = vunpack.c.l.b16 %v234
    %v1003 = vunpack.c.l.b16 %v235
    %v1004 = vunpack.c.h.b16 %v235
    %v1005 = vunpack.c.l.b16 %v236
    %v1006 = vunpack.c.l.b16 %v237
    %v1007 = vunpack.c.h.b16 %v237
    %v1008 = vunpack.c.l.b16 %v238
    %v1009 = vunpack.c.l.b16 %v239
    %v1010 = vunpack.c.h.b16 %v239
    %v1011 = vunpack.c.l.b16 %v240
    %v1012 = vunpack.c.l.b16 %v241
    %v1013 = vunpack.c.h.b16 %v241
    %v1014 = vunpack.c.l.b16 %v242
    %v1015 = vunpack.c.l.b16 %v243
    %v1016 = vunpack.c.h.b16 %v243
    %v1017 = vunpack.c.l.b16 %v244
    %v1018 = vunpack.c.l.b16 %v245
    %v1019 = vunpack.c.h.b16 %v245
    %v1020 = vunpack.c.l.b16 %v246
    %v1021 = vunpack.c.l.b16 %v247
    %v1022 = vunpack.c.h.b16 %v247
    %v1023 = vunpack.c.l.b16 %v248
    %v1024 = vunpack.c.l.b16 %v249
    %v1025 = vunpack.c.h.b16 %v249
    %v1026 = vunpack.c.l.b16 %v250
    %v1027 = vunpack.c.l.b16 %v251
    %v1028 = vunpack.c.h.b16 %v251
    %v1029 = vunpack.c.l.b16 %v252
    %v1030 = vunpack.c.l.b16 %v253
    %v1031 = vunpack.c.h.b16 %v253
    %v1032 = vunpack.c.l.b16 %v254
    %v1033 = vunpack.c.l.b16 %v255
    %v1034 = vunpack.c.h.b16 %v255
    %v1035 = vunpack.c.l.b16 %v256
    %v1036 = vunpack.c.l.b16 %v257
    %v1037 = vunpack.c.h.b16 %v257
    %v1038 = vunpack.c.l.b16 %v258
    %v1039 = vunpack.c.l.b16 %v259
    %v1040 = vunpack.c.h.b16 %v259
    %v1041 = vunpack.c.l.b16 %v260
    %v1042 = vunpack.c.l.b16 %v261
    %v1043 = vunpack.c.h.b16 %v261
    %v1044 = vunpack.c.l.b16 %v262
    %v1045 = vunpack.c.l.b16 %v263
    %v1046 = vunpack.c.h.b16 %v263
    %v1047 = vunpack.c.l.b16 %v264
    %v1048 = vunpack.c.l.b16 %v265
    %v1049 = vunpack.c.h.b16 %v265
    %v1050 = vunpack.c.l.b16 %v266
    %v1051 = vunpack.c.l.b16 %v267
    %v1052 = vunpack.c.h.b16 %v267
    %v1053 = vunpack.c.l.b16 %v268
    %v1054 = vunpack.c.l.b16 %v269
    %v1055 = vunpack.c.h.b16 %v269
    %v1056 = vunpack.c.l.b16 %v270
    %v1057 = vunpack.c.l.b16 %v271
    %v1058 = vunpack.c.h.b16 %v271
    %v1059 = vunpack.c.l.b16 %v272
    %v1060 = vunpack.c.l.b16 %v273
    %v1061 = vunpack.c.h.b16 %v273
    %v1062 = vunpack.c.l.b16 %v274
    %v1063 = vunpack.c.l.b16 %v275
    %v1064 = vunpack.c.h.b16 %v275
    %v1065 = vunpack.c.l.b16 %v276
    %v1066 = vunpack.c.l.b16 %v277
    %v1067 = vunpack.c.h.b16 %v277
    %v1068 = vunpack.c.l.b16 %v278
    %v1069 = vunpack.c.l.b16 %v279
    %v1070 = vunpack.c.h.b16 %v279
    %v1071 = vunpack.c.l.b16 %v280
    %v1072 = vunpack.c.l.b16 %v281
    %v1073 = vunpack.c.h.b16 %v281
    %v1074 = vunpack.c.l.b16 %v282
    %v1075 = vunpack.c.l.b16 %v283
    %v1076 = vunpack.c.h.b16 %v283
    %v1077 = vunpack.c.l.b16 %v284
    %v1078 = vunpack.c.l.b16 %v285
    %v1079 = vunpack.c.h.b16 %v285
    %v1080 = vunpack.c.l.b16 %v286
    %v1081 = vunpack.c.l.b16 %v287
    %v1082 = vunpack.c.h.b16 %v287
    %v1083 = vunpack.c.l.b16 %v288
    %v1084 = vunpack.c.l.b16 %v289
    %v1085 = vunpack.c.h.b16 %v289
    %v1086 = vunpack.c.l.b16 %v290
    %v1087 = vunpack.c.l.b16 %v291
    %v1088 = vunpack.c.h.b16 %v291
    %v1089 = vunpack.c.l.b16 %v292
    %v1090 = vunpack.c.l.b16 %v293
    %v1091 = vunpack.c.h.b16 %v293
    %v1092 = vunpack.c.l.b16 %v294
    %v1093 = vunpack.c.l.b16 %v295
    %v1094 = vunpack.c.h.b16 %v295
    %v1095 = vunpack.c.l.b16 %v296
    %v1096 = vunpack.c.l.b16 %v297
    %v1097 = vunpack.c.h.b16 %v297
    %v1098 = vunpack.c.l.b16 %v298
    %v1099 = vunpack.c.l.b16 %v299
    %v1100 = vunpack.c.h.b16 %v299
    %v1101 = vunpack.c.l.b16 %v300
    %v1102 = vunpack.c.l.b16 %v301
    %v1103 = vunpack.c.h.b16 %v301
    %v1104 = vunpack.c.l.b16 %v302
    %v1105 = vunpack.c.l.b16 %v303
    %v1106 = vunpack.c.h.b16 %v303
    %v1107 = vunpack.c.l.b16 %v304
    %v1108 = vunpack.c.l.b16 %v305
    %v1109 = vunpack.c.h.b16 %v305
    %v1110 = vunpack.c.l.b16 %v306
    %v1111 = vunpack.c.l.b16 %v307
    %v1112 = vunpack.c.h.b16 %v307
    %v1113 = vunpack.c.l.b16 %v308
    %v1114 = vunpack.c.l.b16 %v309
    %v1115 = vunpack.c.h.b16 %v309
    %v1116 = vunpack.c.l.b16 %v310
    %v1117 = vunpack.c.l.b16 %v311
    %v1118 = vunpack.c.h.b16 %v311
    %v1119 = vunpack.c.l.b16 %v312
    %v1120 = vunpack.c.l.b16 %v313
    %v1121 = vunpack.c.h.b16 %v313
    %v1122 = vunpack.c.l.b16 %v314
    %v1123 = vunpack.c.l.b16 %v315
    %v1124 = vunpack.c.h.b16 %v315
    %v1125 = vunpack.c.l.b16 %v316
    %v1126 = vunpack.c.l.b16 %v317
    %v1127 = vunpack.c.h.b16 %v317
    %v1128 = vunpack.c.l.b16 %v318
    %v1129 = vunpack.c.l.b16 %v319
    %v1130 = vunpack.c.h.b16 %v319
    %v1131 = vunpack.c.l.b16 %v320
    %v1132 = vpack.c.b16 %v703, %v700
    %v1133 = vpack.c.b16 %v704, %v701
    %v1134 = vpack.c.b16 %v705, %v702
    %v1135 = vpack.c.b16 %v709, %v706
    %v1136 = vpack.c.b16 %v710, %v707
    %v1137 = vpack.c.b16 %v711, %v708
    %v1138 = vpack.c.b16 %v715, %v712
    %v1139 = vpack.c.b16 %v716, %v713
    %v1140 = vpack.c.b16 %v717, %v714
    %v1141 = vpack.c.b16 %v721, %v718
    %v1142 = vpack.c.b16 %v722, %v719
    %v1143 = vpack.c.b16 %v723, %v720
    %v1144 = vpack.c.b16 %v727, %v724
    %v1145 = vpack.c.b16 %v728, %v725
    %v1146 = vpack.c.b16 %v729, %v726
    %v1147 = vpack.c.b16 %v733, %v730
    %v1148 = vpack.c.b16 %v734, %v731
    %v1149 = vpack.c.b16 %v735, %v732
    %v1150 = vpack.c.b16 %v739, %v736
    %v1151 = vpack.c.b16 %v740, %v737
    %v1152 = vpack.c.b16 %v741, %v738
    %v1153 = vpack.c.b16 %v745, %v742
    %v1154 = vpack.c.b16 %v746, %v743
    %v1155 = vpack.c.b16 %v747, %v744
    %v1156 = vpack.c.b16 %v751, %v748
    %v1157 = vpack.c.b16 %v752, %v749
    %v1158 = vpack.c.b16 %v753, %v750
    %v1159 = vpack.c.b16 %v757, %v754
    %v1160 = vpack.c.b16 %v758, %v755
    %v1161 = vpack.c.b16 %v759, %v756
    %v1162 = vpack.c.b16 %v763, %v760
    %v1163 = vpack.c.b16 %v764, %v761
    %v1164 = vpack.c.b16 %v765, %v762
    %v1165 = vpack.c.b16 %v769, %v766
    %v1166 = vpack.c.b16 %v770, %v767
    %v1167 = vpack.c.b16 %v771, %v768
    %v1168 = vpack.c.b16 %v775, %v772
    %v1169 = vpack.c.b16 %v776, %v773
    %v1170 = vpack.c.b16 %v777, %v774
    %v1171 = vpack.c.b16 %v781, %v778
    %v1172 = vpack.c.b16 %v782, %v779
    %v1173 = vpack.c.b16 %v783, %v780
    %v1174 = vpack.c.b16 %v787, %v784
    %v1175 = vpack.c.b16 %v788, %v785
    %v1176 = vpack.c.b16 %v789, %v786
    %v1177 = vpack.c.b16 %v793, %v790
    %v1178 = vpack.c.b16 %v794, %v791
    %v1179 = vpack.c.b16 %v795, %v792
    %v1180 = vpack.c.b16 %v799, %v796
    %v1181 = vpack.c.b16 %v800, %v797
    %v1182 = vpack.c.b16 %v801, %v798
    %v1183 = vpack.c.b16 %v805, %v802
    %v1184 = vpack.c.b16 %v806, %v803
    %v1185 = vpack.c.b16 %v807, %v804
    %v1186 = vpack.c.b16 %v811, %v808
    %v1187 = vpack.c.b16 %v812, %v809
    %v1188 = vpack.c.b16 %v813, %v810
    %v1189 = vpack.c.b16 %v817, %v814
    %v1190 = vpack.c.b16 %v818, %v815
    %v1191 = vpack.c.b16 %v819, %v816
    %v1192 = vpack.c.b16 %v823, %v820
    %v1193 = vpack.c.b16 %v824, %v821
    %v1194 = vpack.c.b16 %v825, %v822
    %v1195 = vpack.c.b16 %v829, %v826
    %v1196 = vpack.c.b16 %v830, %v827
    %v1197 = vpack.c.b16 %v831, %v828
    %v1198 = vpack.c.b16 %v835, %v832
    %v1199 = vpack.c.b16 %v836, %v833
    %v1200 = vpack.c.b16 %v837, %v834
    %v1201 = vpack.c.b16 %v841, %v838
    %v1202 = vpack.c.b16 %v842, %v839
    %v1203 = vpack.c.b16 %v843, %v840
    %v1204 = vpack.c.b16 %v847, %v844
    %v1205 = vpack.c.b16 %v848, %v845
    %v1206 = vpack.c.b16 %v849, %v846
    %v1207 = vpack.c.b16 %v853, %v850
    %v1208 = vpack.c.b16 %v854, %v851
    %v1209 = vpack.c.b16 %v855, %v852
    %v1210 = vpack.c.b16 %v859, %v856
    %v1211 = vpack.c.b16 %v860, %v857
    %v1212 = vpack.c.b16 %v861, %v858
    %v1213 = vpack.c.b16 %v865, %v862
    %v1214 = vpack.c.b16 %v866, %v863
    %v1215 = vpack.c.b16 %v867, %v864
    %v1216 = vpack.c.b16 %v871, %v868
    %v1217 = vpack.c.b16 %v872, %v869
    %v1218 = vpack.c.b16 %v873, %v870
    %v1219 = vpack.c.b16 %v877, %v874
    %v1220 = vpack.c.b16 %v878, %v875
    %v1221 = vpack.c.b16 %v879, %v876
    %v1222 = vpack.c.b16 %v883, %v880
    %v1223 = vpack.c.b16 %v884, %v881
    %v1224 = vpack.c.b16 %v885, %v882
    %v1225 = vpack.c.b16 %v889, %v886
    %v1226 = vpack.c.b16 %v890, %v887
    %v1227 = vpack.c.b16 %v891, %v888
    %v1228 = vpack.c.b16 %v895, %v892
    %v1229 = vpack.c.b16 %v896, %v893
    %v1230 = vpack.c.b16 %v897, %v894
    %v1231 = vpack.c.b16 %v901, %v898
    %v1232 = vpack.c.b16 %v902, %v899
    %v1233 = vpack.c.b16 %v903, %v900
    %v1234 = vpack.c.b16 %v907, %v904
    %v1235 = vpack.c.b16 %v908, %v905
    %v1236 = vpack.c.b16 %v909, %v906
    %v1237 = vpack.c.b16 %v913, %v910
    %v1238 = vpack.c.b16 %v914, %v911
    %v1239 = vpack.c.b16 %v915, %v912
    %v1240 = vpack.c.b16 %v919, %v916
    %v1241 = vpack.c.b16 %v920, %v917
    %v1242 = vpack.c.b16 %v921, %v918
    %v1243 = vpack.c.b16 %v925, %v922
    %v1244 = vpack.c.b16 %v926, %v923
    %v1245 = vpack.c.b16 %v927, %v924
    %v1246 = vpack.c.b16 %v931, %v928
    %v1247 = vpack.c.b16 %v932, %v929
    %v1248 = vpack.c.b16 %v933, %v930
    %v1249 = vpack.c.b16 %v937, %v934
    %v1250 = vpack.c.b16 %v938, %v935
    %v1251 = vpack.c.b16 %v939, %v936
    %v1252 = vpack.c.b16 %v943, %v940
    %v1253 = vpack.c.b16 %v944, %v941
    %v1254 = vpack.c.b16 %v945, %v942
    %v1255 = vpack.c.b16 %v949, %v946
    %v1256 = vpack.c.b16 %v950, %v947
    %v1257 = vpack.c.b16 %v951, %v948
    %v1258 = vpack.c.b16 %v955, %v952
    %v1259 = vpack.c.b16 %v956, %v953
    %v1260 = vpack.c.b16 %v957, %v954
    %v1261 = vpack.c.b16 %v961, %v958
    %v1262 = vpack.c.b16 %v962, %v959
    %v1263 = vpack.c.b16 %v963, %v960
    %v1264 = vpack.c.b16 %v967, %v964
    %v1265 = vpack.c.b16 %v968, %v965
    %v1266 = vpack.c.b16 %v969, %v966
    %v1267 = vpack.c.b16 %v973, %v970
    %v1268 = vpack.c.b16 %v974, %v971
    %v1269 = vpack.c.b16 %v975, %v972
    %v1270 = vpack.c.b16 %v979, %v976
    %v1271 = vpack.c.b16 %v980, %v977
    %v1272 = vpack.c.b16 %v981, %v978
    %v1273 = vpack.c.b16 %v985, %v982
    %v1274 = vpack.c.b16 %v986, %v983
    %v1275 = vpack.c.b16 %v987, %v984
    %v1276 = vpack.c.b16 %v991, %v988
    %v1277 = vpack.c.b16 %v992, %v989
    %v1278 = vpack.c.b16 %v993, %v990
    %v1279 = vpack.c.b16 %v997, %v994
    %v1280 = vpack.c.b16 %v998, %v995
    %v1281 = vpack.c.b16 %v999, %v996
    %v1282 = vpack.c.b16 %v1003, %v1000
    %v1283 = vpack.c.b16 %v1004, %v1001
    %v1284 = vpack.c.b16 %v1005, %v1002
    %v1285 = vpack.c.b16 %v1009, %v1006
    %v1286 = vpack.c.b16 %v1010, %v1007
    %v1287 = vpack.c.b16 %v1011, %v1008
    %v1288 = vpack.c.b16 %v1015, %v1012
    %v1289 = vpack.c.b16 %v1016, %v1013
    %v1290 = vpack.c.b16 %v1017, %v1014
    %v1291 = vpack.c.b16 %v1021, %v1018
    %v1292 = vpack.c.b16 %v1022, %v1019
    %v1293 = vpack.c.b16 %v1023, %v1020
    %v1294 = vpack.c.b16 %v1027, %v1024
    %v1295 = vpack.c.b16 %v1028, %v1025
    %v1296 = vpack.c.b16 %v1029, %v1026
    %v1297 = vpack.c.b16 %v1033, %v1030
    %v1298 = vpack.c.b16 %v1034, %v1031
    %v1299 = vpack.c.b16 %v1035, %v1032
    %v1300 = vpack.c.b16 %v1039, %v1036
    %v1301 = vpack.c.b16 %v1040, %v1037
    %v1302 = vpack.c.b16 %v1041, %v1038
    %v1303 = vpack.c.b16 %v1045, %v1042
    %v1304 = vpack.c.b16 %v1046, %v1043
    %v1305 = vpack.c.b16 %v1047, %v1044
    %v1306 = vpack.c.b16 %v1051, %v1048
    %v1307 = vpack.c.b16 %v1052, %v1049
    %v1308 = vpack.c.b16 %v1053, %v1050
    %v1309 = vpack.c.b16 %v1057, %v1054
    %v1310 = vpack.c.b16 %v1058, %v1055
    %v1311 = vpack.c.b16 %v1059, %v1056
    %v1312 = vpack.c.b16 %v1063, %v1060
    %v1313 = vpack.c.b16 %v1064, %v1061
    %v1314 = vpack.c.b16 %v1065, %v1062
    %v1315 = vpack.c.b16 %v1069, %v1066
    %v1316 = vpack.c.b16 %v1070, %v1067
    %v1317 = vpack.c.b16 %v1071, %v1068
    %v1318 = vpack.c.b16 %v1075, %v1072
    %v1319 = vpack.c.b16 %v1076, %v1073
    %v1320 = vpack.c.b16 %v1077, %v1074
    %v1321 = vpack.c.b16 %v1081, %v1078
    %v1322 = vpack.c.b16 %v1082, %v1079
    %v1323 = vpack.c.b16 %v1083, %v1080
    %v1324 = vpack.c.b16 %v1087, %v1084
    %v1325 = vpack.c.b16 %v1088, %v1085
    %v1326 = vpack.c.b16 %v1089, %v1086
    %v1327 = vpack.c.b16 %v1093, %v1090
    %v1328 = vpack.c.b16 %v1094, %v1091
    %v1329 = vpack.c.b16 %v1095, %v1092
    %v1330 = vpack.c.b16 %v1099, %v1096
    %v1331 = vpack.c.b16 %v1100, %v1097
    %v1332 = vpack.c.b16 %v1101, %v1098
    %v1333 = vpack.c.b16 %v1105, %v1102
    %v1334 = vpack.c.b16 %v1106, %v1103
    %v1335 = vpack.c.b16 %v1107, %v1104
    %v1336 = vpack.c.b16 %v1111, %v1108
    %v1337 = vpack.c.b16 %v1112, %v1109
    %v1338 = vpack.c.b16 %v1113, %v1110
    %v1339 = vpack.c.b16 %v1117, %v1114
    %v1340 = vpack.c.b16 %v1118, %v1115
    %v1341 = vpack.c.b16 %v1119, %v1116
    %v1342 = vpack.c.b16 %v1123, %v1120
    %v1343 = vpack.c.b16 %v1124, %v1121
    %v1344 = vpack.c.b16 %v1125, %v1122
    %v1345 = vpack.c.b16 %v1129, %v1126
    %v1346 = vpack.c.b16 %v1130, %v1127
    %v1347 = vpack.c.b16 %v1131, %v1128
    %1564 = vmatprep.subr.bf16.mxu0 %v1154
    %1565 = vmatpush1.bf16.msra.mxu0 %v1153
    %1566 = vmatprep.subr.bf16.mxu0 %v1151
    %1567 = vmatpush1.bf16.msra.mxu0 %v1150
    %1568 = vmatprep.subr.bf16.mxu0 %v1148
    %1569 = vmatpush1.bf16.msra.mxu0 %v1147
    %1570 = vmatprep.subr.bf16.mxu0 %v1145
    %1571 = vmatpush1.bf16.msra.mxu0 %v1144
    %1572 = vmatprep.subr.bf16.mxu0 %v1142
    %1573 = vmatpush1.bf16.msra.mxu0 %v1141
    %1574 = vmatprep.subr.bf16.mxu0 %v1139
    %1575 = vmatpush1.bf16.msra.mxu0 %v1138
    %1576 = vmatprep.subr.bf16.mxu0 %v1136
    %1577 = vmatpush1.bf16.msra.mxu0 %v1135
    %1578 = vmatprep.subr.bf16.mxu0 %v1133
    %1579 = vmatpush1.bf16.msra.mxu0 %v1132
    %1580 = vmatprep.subr.bf16.mxu0 %v1178
    %1581 = vmatpush2.bf16.msra.mxu0 %v1177
    %1582 = vmatprep.subr.bf16.mxu0 %v1175
    %1583 = vmatpush2.bf16.msra.mxu0 %v1174
    %1584 = vmatprep.subr.bf16.mxu0 %v1172
    %1585 = vmatpush2.bf16.msra.mxu0 %v1171
    %1586 = vmatprep.subr.bf16.mxu0 %v1169
    %1587 = vmatpush2.bf16.msra.mxu0 %v1168
    %1588 = vmatprep.subr.bf16.mxu0 %v1166
    %1589 = vmatpush2.bf16.msra.mxu0 %v1165
    %1590 = vmatprep.subr.bf16.mxu0 %v1163
    %1591 = vmatpush2.bf16.msra.mxu0 %v1162
    %1592 = vmatprep.subr.bf16.mxu0 %v1160
    %1593 = vmatpush2.bf16.msra.mxu0 %v1159
    %1594 = vmatprep.subr.bf16.mxu0 %v1157
    %1595 = vmatpush2.bf16.msra.mxu0 %v1156
    %1596 = vmatprep.mubr.bf16.mxu0 %v377
    %1597 = vmatmul.mubr.bf16.gmra.mxu0 %v363
    %v1598 = vpop.f32.mrf.mxu0
    %v1599 = vadd.f32 %v326, %v1598
    %v1600 = vpop.f32.mrf.mxu0
    %v1601 = vadd.f32 %v330, %v1600
    %v1602 = vpop.f32.mrf.mxu0
    %v1603 = vpop.f32.mrf.mxu0
    %1604 = vdwg.mxu0
    %1605 = vmatprep.subr.bf16.mxu0 %v1202
    %1606 = vmatpush1.bf16.msra.mxu0 %v1201
    %1607 = vmatprep.subr.bf16.mxu0 %v1199
    %1608 = vmatpush1.bf16.msra.mxu0 %v1198
    %1609 = vmatprep.subr.bf16.mxu0 %v1196
    %1610 = vmatpush1.bf16.msra.mxu0 %v1195
    %1611 = vmatprep.subr.bf16.mxu0 %v1193
    %1612 = vmatpush1.bf16.msra.mxu0 %v1192
    %1613 = vmatprep.subr.bf16.mxu0 %v1190
    %1614 = vmatpush1.bf16.msra.mxu0 %v1189
    %1615 = vmatprep.subr.bf16.mxu0 %v1187
    %1616 = vmatpush1.bf16.msra.mxu0 %v1186
    %1617 = vmatprep.subr.bf16.mxu0 %v1184
    %1618 = vmatpush1.bf16.msra.mxu0 %v1183
    %1619 = vmatprep.subr.bf16.mxu0 %v1181
    %1620 = vmatpush1.bf16.msra.mxu0 %v1180
    %1621 = vmatprep.subr.bf16.mxu0 %v1226
    %1622 = vmatpush2.bf16.msra.mxu0 %v1225
    %1623 = vmatprep.subr.bf16.mxu0 %v1223
    %1624 = vmatpush2.bf16.msra.mxu0 %v1222
    %1625 = vmatprep.subr.bf16.mxu0 %v1220
    %1626 = vmatpush2.bf16.msra.mxu0 %v1219
    %1627 = vmatprep.subr.bf16.mxu0 %v1217
    %1628 = vmatpush2.bf16.msra.mxu0 %v1216
    %1629 = vmatprep.subr.bf16.mxu0 %v1214
    %1630 = vmatpush2.bf16.msra.mxu0 %v1213
    %1631 = vmatprep.subr.bf16.mxu0 %v1211
    %1632 = vmatpush2.bf16.msra.mxu0 %v1210
    %1633 = vmatprep.subr.bf16.mxu0 %v1208
    %1634 = vmatpush2.bf16.msra.mxu0 %v1207
    %1635 = vmatprep.subr.bf16.mxu0 %v1205
    %1636 = vmatpush2.bf16.msra.mxu0 %v1204
    %1637 = vmatprep.mubr.bf16.mxu0 %v387
    %1638 = vmatmul.mubr.bf16.gmra.mxu0 %v385
    %v1639 = vpop.f32.mrf.mxu0
    %v1640 = vadd.f32 %v1599, %v1639
    %v1641 = vpop.f32.mrf.mxu0
    %v1642 = vadd.f32 %v1601, %v1641
    %v1643 = vpop.f32.mrf.mxu0
    %v1644 = vpop.f32.mrf.mxu0
    %1645 = vdwg.mxu0
    %1646 = vmatprep.subr.bf16.mxu0 %v1250
    %1647 = vmatpush1.bf16.msra.mxu0 %v1249
    %1648 = vmatprep.subr.bf16.mxu0 %v1247
    %1649 = vmatpush1.bf16.msra.mxu0 %v1246
    %1650 = vmatprep.subr.bf16.mxu0 %v1244
    %1651 = vmatpush1.bf16.msra.mxu0 %v1243
    %1652 = vmatprep.subr.bf16.mxu0 %v1241
    %1653 = vmatpush1.bf16.msra.mxu0 %v1240
    %1654 = vmatprep.subr.bf16.mxu0 %v1238
    %1655 = vmatpush1.bf16.msra.mxu0 %v1237
    %1656 = vmatprep.subr.bf16.mxu0 %v1235
    %1657 = vmatpush1.bf16.msra.mxu0 %v1234
    %1658 = vmatprep.subr.bf16.mxu0 %v1232
    %1659 = vmatpush1.bf16.msra.mxu0 %v1231
    %1660 = vmatprep.subr.bf16.mxu0 %v1229
    %1661 = vmatpush1.bf16.msra.mxu0 %v1228
    %1662 = vmatprep.subr.bf16.mxu0 %v1274
    %1663 = vmatpush2.bf16.msra.mxu0 %v1273
    %1664 = vmatprep.subr.bf16.mxu0 %v1271
    %1665 = vmatpush2.bf16.msra.mxu0 %v1270
    %1666 = vmatprep.subr.bf16.mxu0 %v1268
    %1667 = vmatpush2.bf16.msra.mxu0 %v1267
    %1668 = vmatprep.subr.bf16.mxu0 %v1265
    %1669 = vmatpush2.bf16.msra.mxu0 %v1264
    %1670 = vmatprep.subr.bf16.mxu0 %v1262
    %1671 = vmatpush2.bf16.msra.mxu0 %v1261
    %1672 = vmatprep.subr.bf16.mxu0 %v1259
    %1673 = vmatpush2.bf16.msra.mxu0 %v1258
    %1674 = vmatprep.subr.bf16.mxu0 %v1256
    %1675 = vmatpush2.bf16.msra.mxu0 %v1255
    %1676 = vmatprep.subr.bf16.mxu0 %v1253
    %1677 = vmatpush2.bf16.msra.mxu0 %v1252
    %1678 = vmatprep.mubr.bf16.mxu0 %v384
    %1679 = vmatmul.mubr.bf16.gmra.mxu0 %v370
    %v1680 = vpop.f32.mrf.mxu0
    %v1681 = vadd.f32 %v1640, %v1680
    %v1682 = vpop.f32.mrf.mxu0
    %v1683 = vadd.f32 %v1642, %v1682
    %v1684 = vpop.f32.mrf.mxu0
    %v1685 = vpop.f32.mrf.mxu0
    %1686 = vdwg.mxu0
    %1687 = vmatprep.subr.bf16.mxu0 %v1298
    %1688 = vmatpush1.bf16.msra.mxu0 %v1297
    %1689 = vmatprep.subr.bf16.mxu0 %v1295
    %1690 = vmatpush1.bf16.msra.mxu0 %v1294
    %1691 = vmatprep.subr.bf16.mxu0 %v1292
    %1692 = vmatpush1.bf16.msra.mxu0 %v1291
    %1693 = vmatprep.subr.bf16.mxu0 %v1289
    %1694 = vmatpush1.bf16.msra.mxu0 %v1288
    %1695 = vmatprep.subr.bf16.mxu0 %v1286
    %1696 = vmatpush1.bf16.msra.mxu0 %v1285
    %1697 = vmatprep.subr.bf16.mxu0 %v1283
    %1698 = vmatpush1.bf16.msra.mxu0 %v1282
    %1699 = vmatprep.subr.bf16.mxu0 %v1280
    %1700 = vmatpush1.bf16.msra.mxu0 %v1279
    %1701 = vmatprep.subr.bf16.mxu0 %v1277
    %1702 = vmatpush1.bf16.msra.mxu0 %v1276
    %1703 = vmatprep.subr.bf16.mxu0 %v1322
    %1704 = vmatpush2.bf16.msra.mxu0 %v1321
    %1705 = vmatprep.subr.bf16.mxu0 %v1319
    %1706 = vmatpush2.bf16.msra.mxu0 %v1318
    %1707 = vmatprep.subr.bf16.mxu0 %v1316
    %1708 = vmatpush2.bf16.msra.mxu0 %v1315
    %1709 = vmatprep.subr.bf16.mxu0 %v1313
    %1710 = vmatpush2.bf16.msra.mxu0 %v1312
    %1711 = vmatprep.subr.bf16.mxu0 %v1310
    %1712 = vmatpush2.bf16.msra.mxu0 %v1309
    %1713 = vmatprep.subr.bf16.mxu0 %v1307
    %1714 = vmatpush2.bf16.msra.mxu0 %v1306
    %1715 = vmatprep.subr.bf16.mxu0 %v1304
    %1716 = vmatpush2.bf16.msra.mxu0 %v1303
    %1717 = vmatprep.subr.bf16.mxu0 %v1301
    %1718 = vmatpush2.bf16.msra.mxu0 %v1300
    %1719 = vmatprep.mubr.bf16.mxu0 %v388
    %1720 = vmatmul.mubr.bf16.gmra.mxu0 %v386
    %v1721 = vpop.f32.mrf.mxu0
    %v1722 = vadd.f32 %v1681, %v1721
    %v1723 = vpop.f32.mrf.mxu0
    %v1724 = vadd.f32 %v1683, %v1723
    %v1725 = vpop.f32.mrf.mxu0
    %v1726 = vpop.f32.mrf.mxu0
    %1727 = vdwg.mxu0
    %1728 = vmatprep.subr.bf16.mxu0 %v1346
    %1729 = vmatpush1.bf16.msra.mxu0 %v1345
    %1730 = vmatprep.subr.bf16.mxu0 %v1343
    %1731 = vmatpush1.bf16.msra.mxu0 %v1342
    %1732 = vmatprep.subr.bf16.mxu0 %v1340
    %1733 = vmatpush1.bf16.msra.mxu0 %v1339
    %1734 = vmatprep.subr.bf16.mxu0 %v1337
    %1735 = vmatpush1.bf16.msra.mxu0 %v1336
    %1736 = vmatprep.subr.bf16.mxu0 %v1334
    %1737 = vmatpush1.bf16.msra.mxu0 %v1333
    %1738 = vmatprep.subr.bf16.mxu0 %v1331
    %1739 = vmatpush1.bf16.msra.mxu0 %v1330
    %1740 = vmatprep.subr.bf16.mxu0 %v1328
    %1741 = vmatpush1.bf16.msra.mxu0 %v1327
    %1742 = vmatprep.subr.bf16.mxu0 %v1325
    %1743 = vmatpush1.bf16.msra.mxu0 %v1324
    %1744 = vmatprep.subr.bf16.mxu0 0
    %1745 = vmatpush2.bf16.msra.mxu0 0
    %1746 = vmatprep.subr.bf16.mxu0 0
    %1747 = vmatpush2.bf16.msra.mxu0 0
    %1748 = vmatprep.subr.bf16.mxu0 0
    %1749 = vmatpush2.bf16.msra.mxu0 0
    %1750 = vmatprep.subr.bf16.mxu0 0
    %1751 = vmatpush2.bf16.msra.mxu0 0
    %1752 = vmatprep.subr.bf16.mxu0 0
    %1753 = vmatpush2.bf16.msra.mxu0 0
    %1754 = vmatprep.subr.bf16.mxu0 0
    %1755 = vmatpush2.bf16.msra.mxu0 0
    %1756 = vmatprep.subr.bf16.mxu0 0
    %1757 = vmatpush2.bf16.msra.mxu0 0
    %1758 = vmatprep.subr.bf16.mxu0 0
    %1759 = vmatpush2.bf16.msra.mxu0 0
    %1760 = vmatprep.mubr.bf16.mxu0 0
    %1761 = vmatmul.mubr.bf16.gmra.mxu0 %v402
    %v1762 = vpop.f32.mrf.mxu0
    %v1763 = vadd.f32 %v1722, %v1762
    %v1764 = vpop.f32.mrf.mxu0
    %v1765 = vadd.f32 %v1724, %v1764
    %v1766 = vpop.f32.mrf.mxu0
    %v1767 = vpop.f32.mrf.mxu0
    %1768 = vdwg.mxu0
    %1769 = vmatprep.subr.bf16.mxu0 0
    %1770 = vmatpush1.bf16.msra.mxu0 %v1155
    %1771 = vmatprep.subr.bf16.mxu0 0
    %1772 = vmatpush1.bf16.msra.mxu0 %v1152
    %1773 = vmatprep.subr.bf16.mxu0 0
    %1774 = vmatpush1.bf16.msra.mxu0 %v1149
    %1775 = vmatprep.subr.bf16.mxu0 0
    %1776 = vmatpush1.bf16.msra.mxu0 %v1146
    %1777 = vmatprep.subr.bf16.mxu0 0
    %1778 = vmatpush1.bf16.msra.mxu0 %v1143
    %1779 = vmatprep.subr.bf16.mxu0 0
    %1780 = vmatpush1.bf16.msra.mxu0 %v1140
    %1781 = vmatprep.subr.bf16.mxu0 0
    %1782 = vmatpush1.bf16.msra.mxu0 %v1137
    %1783 = vmatprep.subr.bf16.mxu0 0
    %1784 = vmatpush1.bf16.msra.mxu0 %v1134
    %1785 = vmatprep.subr.bf16.mxu0 0
    %1786 = vmatpush2.bf16.msra.mxu0 %v1179
    %1787 = vmatprep.subr.bf16.mxu0 0
    %1788 = vmatpush2.bf16.msra.mxu0 %v1176
    %1789 = vmatprep.subr.bf16.mxu0 0
    %1790 = vmatpush2.bf16.msra.mxu0 %v1173
    %1791 = vmatprep.subr.bf16.mxu0 0
    %1792 = vmatpush2.bf16.msra.mxu0 %v1170
    %1793 = vmatprep.subr.bf16.mxu0 0
    %1794 = vmatpush2.bf16.msra.mxu0 %v1167
    %1795 = vmatprep.subr.bf16.mxu0 0
    %1796 = vmatpush2.bf16.msra.mxu0 %v1164
    %1797 = vmatprep.subr.bf16.mxu0 0
    %1798 = vmatpush2.bf16.msra.mxu0 %v1161
    %1799 = vmatprep.subr.bf16.mxu0 0
    %1800 = vmatpush2.bf16.msra.mxu0 %v1158
    %1801 = vmatprep.mubr.bf16.mxu0 %v377
    %1802 = vmatmul.mubr.bf16.gmra.mxu0 %v363
    %v1803 = vpop.f32.mrf.mxu0
    %v1804 = vadd.f32 %v334, %v1803
    %v1805 = vpop.f32.mrf.mxu0
    %v1806 = vpop.f32.mrf.mxu0
    %v1807 = vpop.f32.mrf.mxu0
    %1808 = vdwg.mxu0
    %1809 = vmatprep.subr.bf16.mxu0 0
    %1810 = vmatpush1.bf16.msra.mxu0 %v1203
    %1811 = vmatprep.subr.bf16.mxu0 0
    %1812 = vmatpush1.bf16.msra.mxu0 %v1200
    %1813 = vmatprep.subr.bf16.mxu0 0
    %1814 = vmatpush1.bf16.msra.mxu0 %v1197
    %1815 = vmatprep.subr.bf16.mxu0 0
    %1816 = vmatpush1.bf16.msra.mxu0 %v1194
    %1817 = vmatprep.subr.bf16.mxu0 0
    %1818 = vmatpush1.bf16.msra.mxu0 %v1191
    %1819 = vmatprep.subr.bf16.mxu0 0
    %1820 = vmatpush1.bf16.msra.mxu0 %v1188
    %1821 = vmatprep.subr.bf16.mxu0 0
    %1822 = vmatpush1.bf16.msra.mxu0 %v1185
    %1823 = vmatprep.subr.bf16.mxu0 0
    %1824 = vmatpush1.bf16.msra.mxu0 %v1182
    %1825 = vmatprep.subr.bf16.mxu0 0
    %1826 = vmatpush2.bf16.msra.mxu0 %v1227
    %1827 = vmatprep.subr.bf16.mxu0 0
    %1828 = vmatpush2.bf16.msra.mxu0 %v1224
    %1829 = vmatprep.subr.bf16.mxu0 0
    %1830 = vmatpush2.bf16.msra.mxu0 %v1221
    %1831 = vmatprep.subr.bf16.mxu0 0
    %1832 = vmatpush2.bf16.msra.mxu0 %v1218
    %1833 = vmatprep.subr.bf16.mxu0 0
    %1834 = vmatpush2.bf16.msra.mxu0 %v1215
    %1835 = vmatprep.subr.bf16.mxu0 0
    %1836 = vmatpush2.bf16.msra.mxu0 %v1212
    %1837 = vmatprep.subr.bf16.mxu0 0
    %1838 = vmatpush2.bf16.msra.mxu0 %v1209
    %1839 = vmatprep.subr.bf16.mxu0 0
    %1840 = vmatpush2.bf16.msra.mxu0 %v1206
    %1841 = vmatprep.mubr.bf16.mxu0 %v387
    %1842 = vmatmul.mubr.bf16.gmra.mxu0 %v385
    %v1843 = vpop.f32.mrf.mxu0
    %v1844 = vadd.f32 %v1804, %v1843
    %v1845 = vpop.f32.mrf.mxu0
    %v1846 = vpop.f32.mrf.mxu0
    %v1847 = vpop.f32.mrf.mxu0
    %1848 = vdwg.mxu0
    %1849 = vmatprep.subr.bf16.mxu0 0
    %1850 = vmatpush1.bf16.msra.mxu0 %v1251
    %1851 = vmatprep.subr.bf16.mxu0 0
    %1852 = vmatpush1.bf16.msra.mxu0 %v1248
    %1853 = vmatprep.subr.bf16.mxu0 0
    %1854 = vmatpush1.bf16.msra.mxu0 %v1245
    %1855 = vmatprep.subr.bf16.mxu0 0
    %1856 = vmatpush1.bf16.msra.mxu0 %v1242
    %1857 = vmatprep.subr.bf16.mxu0 0
    %1858 = vmatpush1.bf16.msra.mxu0 %v1239
    %1859 = vmatprep.subr.bf16.mxu0 0
    %1860 = vmatpush1.bf16.msra.mxu0 %v1236
    %1861 = vmatprep.subr.bf16.mxu0 0
    %1862 = vmatpush1.bf16.msra.mxu0 %v1233
    %1863 = vmatprep.subr.bf16.mxu0 0
    %1864 = vmatpush1.bf16.msra.mxu0 %v1230
    %1865 = vmatprep.subr.bf16.mxu0 0
    %1866 = vmatpush2.bf16.msra.mxu0 %v1275
    %1867 = vmatprep.subr.bf16.mxu0 0
    %1868 = vmatpush2.bf16.msra.mxu0 %v1272
    %1869 = vmatprep.subr.bf16.mxu0 0
    %1870 = vmatpush2.bf16.msra.mxu0 %v1269
    %1871 = vmatprep.subr.bf16.mxu0 0
    %1872 = vmatpush2.bf16.msra.mxu0 %v1266
    %1873 = vmatprep.subr.bf16.mxu0 0
    %1874 = vmatpush2.bf16.msra.mxu0 %v1263
    %1875 = vmatprep.subr.bf16.mxu0 0
    %1876 = vmatpush2.bf16.msra.mxu0 %v1260
    %1877 = vmatprep.subr.bf16.mxu0 0
    %1878 = vmatpush2.bf16.msra.mxu0 %v1257
    %1879 = vmatprep.subr.bf16.mxu0 0
    %1880 = vmatpush2.bf16.msra.mxu0 %v1254
    %1881 = vmatprep.mubr.bf16.mxu0 %v384
    %1882 = vmatmul.mubr.bf16.gmra.mxu0 %v370
    %v1883 = vpop.f32.mrf.mxu0
    %v1884 = vadd.f32 %v1844, %v1883
    %v1885 = vpop.f32.mrf.mxu0
    %v1886 = vpop.f32.mrf.mxu0
    %v1887 = vpop.f32.mrf.mxu0
    %1888 = vdwg.mxu0
    %1889 = vmatprep.subr.bf16.mxu0 0
    %1890 = vmatpush1.bf16.msra.mxu0 %v1299
    %1891 = vmatprep.subr.bf16.mxu0 0
    %1892 = vmatpush1.bf16.msra.mxu0 %v1296
    %1893 = vmatprep.subr.bf16.mxu0 0
    %1894 = vmatpush1.bf16.msra.mxu0 %v1293
    %1895 = vmatprep.subr.bf16.mxu0 0
    %1896 = vmatpush1.bf16.msra.mxu0 %v1290
    %1897 = vmatprep.subr.bf16.mxu0 0
    %1898 = vmatpush1.bf16.msra.mxu0 %v1287
    %1899 = vmatprep.subr.bf16.mxu0 0
    %1900 = vmatpush1.bf16.msra.mxu0 %v1284
    %1901 = vmatprep.subr.bf16.mxu0 0
    %1902 = vmatpush1.bf16.msra.mxu0 %v1281
    %1903 = vmatprep.subr.bf16.mxu0 0
    %1904 = vmatpush1.bf16.msra.mxu0 %v1278
    %1905 = vmatprep.subr.bf16.mxu0 0
    %1906 = vmatpush2.bf16.msra.mxu0 %v1323
    %1907 = vmatprep.subr.bf16.mxu0 0
    %1908 = vmatpush2.bf16.msra.mxu0 %v1320
    %1909 = vmatprep.subr.bf16.mxu0 0
    %1910 = vmatpush2.bf16.msra.mxu0 %v1317
    %1911 = vmatprep.subr.bf16.mxu0 0
    %1912 = vmatpush2.bf16.msra.mxu0 %v1314
    %1913 = vmatprep.subr.bf16.mxu0 0
    %1914 = vmatpush2.bf16.msra.mxu0 %v1311
    %1915 = vmatprep.subr.bf16.mxu0 0
    %1916 = vmatpush2.bf16.msra.mxu0 %v1308
    %1917 = vmatprep.subr.bf16.mxu0 0
    %1918 = vmatpush2.bf16.msra.mxu0 %v1305
    %1919 = vmatprep.subr.bf16.mxu0 0
    %1920 = vmatpush2.bf16.msra.mxu0 %v1302
    %1921 = vmatprep.mubr.bf16.mxu0 %v388
    %1922 = vmatmul.mubr.bf16.gmra.mxu0 %v386
    %v1923 = vpop.f32.mrf.mxu0
    %v1924 = vadd.f32 %v1884, %v1923
    %v1925 = vpop.f32.mrf.mxu0
    %v1926 = vpop.f32.mrf.mxu0
    %v1927 = vpop.f32.mrf.mxu0
    %1928 = vdwg.mxu0
    %1929 = vmatprep.subr.bf16.mxu0 0
    %1930 = vmatpush1.bf16.msra.mxu0 %v1347
    %1931 = vmatprep.subr.bf16.mxu0 0
    %1932 = vmatpush1.bf16.msra.mxu0 %v1344
    %1933 = vmatprep.subr.bf16.mxu0 0
    %1934 = vmatpush1.bf16.msra.mxu0 %v1341
    %1935 = vmatprep.subr.bf16.mxu0 0
    %1936 = vmatpush1.bf16.msra.mxu0 %v1338
    %1937 = vmatprep.subr.bf16.mxu0 0
    %1938 = vmatpush1.bf16.msra.mxu0 %v1335
    %1939 = vmatprep.subr.bf16.mxu0 0
    %1940 = vmatpush1.bf16.msra.mxu0 %v1332
    %1941 = vmatprep.subr.bf16.mxu0 0
    %1942 = vmatpush1.bf16.msra.mxu0 %v1329
    %1943 = vmatprep.subr.bf16.mxu0 0
    %1944 = vmatpush1.bf16.msra.mxu0 %v1326
    %1945 = vmatprep.subr.bf16.mxu0 0
    %1946 = vmatpush2.bf16.msra.mxu0 0
    %1947 = vmatprep.subr.bf16.mxu0 0
    %1948 = vmatpush2.bf16.msra.mxu0 0
    %1949 = vmatprep.subr.bf16.mxu0 0
    %1950 = vmatpush2.bf16.msra.mxu0 0
    %1951 = vmatprep.subr.bf16.mxu0 0
    %1952 = vmatpush2.bf16.msra.mxu0 0
    %1953 = vmatprep.subr.bf16.mxu0 0
    %1954 = vmatpush2.bf16.msra.mxu0 0
    %1955 = vmatprep.subr.bf16.mxu0 0
    %1956 = vmatpush2.bf16.msra.mxu0 0
    %1957 = vmatprep.subr.bf16.mxu0 0
    %1958 = vmatpush2.bf16.msra.mxu0 0
    %1959 = vmatprep.subr.bf16.mxu0 0
    %1960 = vmatpush2.bf16.msra.mxu0 0
    %1961 = vmatprep.mubr.bf16.mxu0 0
    %1962 = vmatmul.mubr.bf16.gmra.mxu0 %v402
    %v1963 = vpop.f32.mrf.mxu0
    %v1964 = vadd.f32 %v1924, %v1963
    %v1965 = vpop.f32.mrf.mxu0
    %v1966 = vpop.f32.mrf.mxu0
    %v1967 = vpop.f32.mrf.mxu0
    %1968 = vdwg.mxu0
    %v1969 = vmax.f32 %v1763, 0.0
    %v1970 = vmax.f32 %v1765, 0.0
    %v1971 = vmax.f32 %v1964, 0.0
    %v1972 = vld [vmem:[%s3] sm:$0xff]
    %v1973 = vld [vmem:[%s3 + $0x8] sm:$0xff]
    %v1974 = vld [vmem:[%s3 + $0x10] sm:$0xff]
    %v1975 = vld [vmem:[%s3 + $0x18] sm:$0xff]
    %v1976 = vld [vmem:[%s4] sm:$0x1]
    %v1978 = vlaneseq
    %v1979 = vshrl.u32 %v1978, 7
    %v1980 = vsub.s32 0, %v1979
    %v1981 = vrot.slane %v1976, %v1980
    %vm1983 = vcmask 261120
    %v1985 = vsel %vm1983, %v1969, 0
    %1987 = vmatprep.subr.mxu0 0.0
    %1988 = vmatpush1.msra.mxu0 0.0
    %1989 = vmatprep.subr.mxu0 0.0
    %1990 = vmatpush1.msra.mxu0 0.0
    %1991 = vmatprep.subr.mxu0 0.0
    %1992 = vmatpush1.msra.mxu0 0.0
    %1993 = vmatprep.subr.mxu0 0.0
    %1994 = vmatpush1.msra.mxu0 0.0
    %1995 = vmatprep.subr.mxu0 0.0
    %1996 = vmatpush1.msra.mxu0 0.0
    %1997 = vmatprep.subr.mxu0 0.0
    %1998 = vmatpush1.msra.mxu0 0.0
    %1999 = vmatprep.subr.mxu0 0.0
    %2000 = vmatpush1.msra.mxu0 0.0
    %2001 = vmatprep.subr.mxu0 0.0
    %2002 = vmatpush1.msra.mxu0 0.0
    %2003 = vmatprep.subr.mxu0 0.0
    %2004 = vmatpush1.msra.mxu0 0.0
    %2005 = vmatprep.subr.mxu0 0.0
    %2006 = vmatpush1.msra.mxu0 0.0
    %2007 = vmatprep.subr.mxu0 0.0
    %2008 = vmatpush1.msra.mxu0 0.0
    %2009 = vmatprep.subr.mxu0 0.0
    %2010 = vmatpush1.msra.mxu0 0.0
    %2011 = vmatprep.subr.mxu0 0.0
    %2012 = vmatpush1.msra.mxu0 %v1975
    %2013 = vmatprep.subr.mxu0 0.0
    %2014 = vmatpush1.msra.mxu0 %v1974
    %2015 = vmatprep.subr.mxu0 0.0
    %2016 = vmatpush1.msra.mxu0 %v1973
    %2017 = vmatprep.subr.mxu0 0.0
    %2018 = vmatpush1.msra.mxu0 %v1972
    %2019 = vmatprep.subr.mxu0 0.0
    %2020 = vmatpush2.msra.mxu0 0.0
    %2021 = vmatprep.subr.mxu0 0.0
    %2022 = vmatpush2.msra.mxu0 0.0
    %2023 = vmatprep.subr.mxu0 0.0
    %2024 = vmatpush2.msra.mxu0 0.0
    %2025 = vmatprep.subr.mxu0 0.0
    %2026 = vmatpush2.msra.mxu0 0.0
    %2027 = vmatprep.subr.mxu0 0.0
    %2028 = vmatpush2.msra.mxu0 0.0
    %2029 = vmatprep.subr.mxu0 0.0
    %2030 = vmatpush2.msra.mxu0 0.0
    %2031 = vmatprep.subr.mxu0 0.0
    %2032 = vmatpush2.msra.mxu0 0.0
    %2033 = vmatprep.subr.mxu0 0.0
    %2034 = vmatpush2.msra.mxu0 0.0
    %2035 = vmatprep.subr.mxu0 0.0
    %2036 = vmatpush2.msra.mxu0 0.0
    %2037 = vmatprep.subr.mxu0 0.0
    %2038 = vmatpush2.msra.mxu0 0.0
    %2039 = vmatprep.subr.mxu0 0.0
    %2040 = vmatpush2.msra.mxu0 0.0
    %2041 = vmatprep.subr.mxu0 0.0
    %2042 = vmatpush2.msra.mxu0 0.0
    %2043 = vmatprep.subr.mxu0 0.0
    %2044 = vmatpush2.msra.mxu0 0.0
    %2045 = vmatprep.subr.mxu0 0.0
    %2046 = vmatpush2.msra.mxu0 0.0
    %2047 = vmatprep.subr.mxu0 0.0
    %2048 = vmatpush2.msra.mxu0 0.0
    %2049 = vmatprep.subr.mxu0 0.0
    %2050 = vmatpush2.msra.mxu0 0.0
    %2051 = vmatprep.mubr.f32.mxu0 0.0
    %2052 = vmatmul.mubr.f32.gmra.mxu0 %v1985
    %v2053 = vpop.f32.mrf.mxu0
    %v2054 = vadd.f32 %v1981, %v2053
    %v2055 = vpop.f32.mrf.mxu0
    %2056 = vdwg.mxu0
    %v2057 = vmax.f32 %v2054, 0.0
    %v2058 = vld [vmem:[%s5] sm:$0xff]
    %v2059 = vld [vmem:[%s5 + $0x8] sm:$0xff]
    %v2060 = vld [vmem:[%s5 + $0x10] sm:$0xff]
    %v2061 = vld [vmem:[%s5 + $0x18] sm:$0xff]
    %v2062 = vld [vmem:[%s5 + $0x20] sm:$0xff]
    %v2063 = vld [vmem:[%s5 + $0x28] sm:$0xff]
    %v2064 = vld [vmem:[%s5 + $0x30] sm:$0xff]
    %v2065 = vld [vmem:[%s5 + $0x38] sm:$0xff]
    %v2066 = vld [vmem:[%s5 + $0x40] sm:$0xff]
    %v2067 = vld [vmem:[%s5 + $0x48] sm:$0xff]
    %v2068 = vld [vmem:[%s5 + $0x50] sm:$0xff]
    %v2069 = vld [vmem:[%s5 + $0x58] sm:$0xff]
    %v2070 = vld [vmem:[%s5 + $0x60] sm:$0xff]
    %v2071 = vld [vmem:[%s5 + $0x68] sm:$0xff]
    %v2072 = vld [vmem:[%s5 + $0x70] sm:$0xff]
    %v2073 = vld [vmem:[%s5 + $0x78] sm:$0xff]
    %v2074 = vld [vmem:[%s5 + $0x80] sm:$0xff]
    %v2075 = vld [vmem:[%s5 + $0x88] sm:$0xff]
    %v2076 = vld [vmem:[%s5 + $0x90] sm:$0xff]
    %v2077 = vld [vmem:[%s5 + $0x98] sm:$0xff]
    %v2078 = vld [vmem:[%s5 + $0xa0] sm:$0xff]
    %v2079 = vld [vmem:[%s5 + $0xa8] sm:$0xff]
    %v2080 = vld [vmem:[%s5 + $0xb0] sm:$0xff]
    %v2081 = vld [vmem:[%s5 + $0xb8] sm:$0xff]
    %v2082 = vld [vmem:[%s5 + $0xc0] sm:$0xff]
    %v2083 = vld [vmem:[%s5 + $0xc8] sm:$0xff]
    %v2084 = vld [vmem:[%s5 + $0xd0] sm:$0xff]
    %v2085 = vld [vmem:[%s5 + $0xd8] sm:$0xff]
    %v2086 = vld [vmem:[%s5 + $0xe0] sm:$0xff]
    %v2087 = vld [vmem:[%s5 + $0xe8] sm:$0xff]
    %v2088 = vld [vmem:[%s5 + $0xf0] sm:$0xff]
    %v2089 = vld [vmem:[%s5 + $0xf8] sm:$0xff]
    %v2090 = vld [vmem:[%s5 + $0x100] sm:$0xff]
    %v2091 = vld [vmem:[%s5 + $0x108] sm:$0xff]
    %v2092 = vld [vmem:[%s5 + $0x110] sm:$0xff]
    %v2093 = vld [vmem:[%s5 + $0x118] sm:$0xff]
    %v2094 = vld [vmem:[%s5 + $0x120] sm:$0xff]
    %v2095 = vld [vmem:[%s5 + $0x128] sm:$0xff]
    %v2096 = vld [vmem:[%s5 + $0x130] sm:$0xff]
    %v2097 = vld [vmem:[%s5 + $0x138] sm:$0xff]
    %v2098 = vld [vmem:[%s6] sm:$0xff]
    %v2099 = vld [vmem:[%s6 + $0x8] sm:$0xff]
    %v2100 = vld [vmem:[%s6 + $0x10] sm:$0xff]
    %v2101 = vld [vmem:[%s6 + $0x18] sm:$0xff]
    %v2103 = vsel %vm1983, %v2057, 0
    %2105 = vmatprep.subr.mxu0 0.0
    %2106 = vmatpush1.msra.mxu0 0.0
    %2107 = vmatprep.subr.mxu0 0.0
    %2108 = vmatpush1.msra.mxu0 0.0
    %2109 = vmatprep.subr.mxu0 0.0
    %2110 = vmatpush1.msra.mxu0 0.0
    %2111 = vmatprep.subr.mxu0 0.0
    %2112 = vmatpush1.msra.mxu0 0.0
    %2113 = vmatprep.subr.mxu0 0.0
    %2114 = vmatpush1.msra.mxu0 0.0
    %2115 = vmatprep.subr.mxu0 0.0
    %2116 = vmatpush1.msra.mxu0 0.0
    %2117 = vmatprep.subr.mxu0 0.0
    %2118 = vmatpush1.msra.mxu0 0.0
    %2119 = vmatprep.subr.mxu0 0.0
    %2120 = vmatpush1.msra.mxu0 0.0
    %2121 = vmatprep.subr.mxu0 0.0
    %2122 = vmatpush1.msra.mxu0 0.0
    %2123 = vmatprep.subr.mxu0 0.0
    %2124 = vmatpush1.msra.mxu0 0.0
    %2125 = vmatprep.subr.mxu0 0.0
    %2126 = vmatpush1.msra.mxu0 0.0
    %2127 = vmatprep.subr.mxu0 0.0
    %2128 = vmatpush1.msra.mxu0 0.0
    %2129 = vmatprep.subr.mxu0 0.0
    %2130 = vmatpush1.msra.mxu0 %v2101
    %2131 = vmatprep.subr.mxu0 0.0
    %2132 = vmatpush1.msra.mxu0 %v2100
    %2133 = vmatprep.subr.mxu0 0.0
    %2134 = vmatpush1.msra.mxu0 %v2099
    %2135 = vmatprep.subr.mxu0 0.0
    %2136 = vmatpush1.msra.mxu0 %v2098
    %2137 = vmatprep.subr.mxu0 0.0
    %2138 = vmatpush2.msra.mxu0 0.0
    %2139 = vmatprep.subr.mxu0 0.0
    %2140 = vmatpush2.msra.mxu0 0.0
    %2141 = vmatprep.subr.mxu0 0.0
    %2142 = vmatpush2.msra.mxu0 0.0
    %2143 = vmatprep.subr.mxu0 0.0
    %2144 = vmatpush2.msra.mxu0 0.0
    %2145 = vmatprep.subr.mxu0 0.0
    %2146 = vmatpush2.msra.mxu0 0.0
    %2147 = vmatprep.subr.mxu0 0.0
    %2148 = vmatpush2.msra.mxu0 0.0
    %2149 = vmatprep.subr.mxu0 0.0
    %2150 = vmatpush2.msra.mxu0 0.0
    %2151 = vmatprep.subr.mxu0 0.0
    %2152 = vmatpush2.msra.mxu0 0.0
    %2153 = vmatprep.subr.mxu0 0.0
    %2154 = vmatpush2.msra.mxu0 0.0
    %2155 = vmatprep.subr.mxu0 0.0
    %2156 = vmatpush2.msra.mxu0 0.0
    %2157 = vmatprep.subr.mxu0 0.0
    %2158 = vmatpush2.msra.mxu0 0.0
    %2159 = vmatprep.subr.mxu0 0.0
    %2160 = vmatpush2.msra.mxu0 0.0
    %2161 = vmatprep.subr.mxu0 0.0
    %2162 = vmatpush2.msra.mxu0 0.0
    %2163 = vmatprep.subr.mxu0 0.0
    %2164 = vmatpush2.msra.mxu0 0.0
    %2165 = vmatprep.subr.mxu0 0.0
    %2166 = vmatpush2.msra.mxu0 0.0
    %2167 = vmatprep.subr.mxu0 0.0
    %2168 = vmatpush2.msra.mxu0 0.0
    %2169 = vmatprep.mubr.f32.mxu0 0.0
    %2170 = vmatmul.mubr.f32.gmra.mxu0 %v2103
    %v2171 = vpop.f32.mrf.mxu0
    %v2172 = vadd.f32 0.0, %v2171
    %v2173 = vpop.f32.mrf.mxu0
    %2174 = vdwg.mxu0
    %vm2175 = vcmask 523264
    %v2177 = vsel %vm2175, %v1971, 0
    %2179 = vmatprep.subr.mxu0 0.0
    %2180 = vmatpush1.msra.mxu0 %v2073
    %2181 = vmatprep.subr.mxu0 0.0
    %2182 = vmatpush1.msra.mxu0 %v2072
    %2183 = vmatprep.subr.mxu0 0.0
    %2184 = vmatpush1.msra.mxu0 %v2071
    %2185 = vmatprep.subr.mxu0 0.0
    %2186 = vmatpush1.msra.mxu0 %v2070
    %2187 = vmatprep.subr.mxu0 0.0
    %2188 = vmatpush1.msra.mxu0 %v2069
    %2189 = vmatprep.subr.mxu0 0.0
    %2190 = vmatpush1.msra.mxu0 %v2068
    %2191 = vmatprep.subr.mxu0 0.0
    %2192 = vmatpush1.msra.mxu0 %v2067
    %2193 = vmatprep.subr.mxu0 0.0
    %2194 = vmatpush1.msra.mxu0 %v2066
    %2195 = vmatprep.subr.mxu0 0.0
    %2196 = vmatpush1.msra.mxu0 %v2065
    %2197 = vmatprep.subr.mxu0 0.0
    %2198 = vmatpush1.msra.mxu0 %v2064
    %2199 = vmatprep.subr.mxu0 0.0
    %2200 = vmatpush1.msra.mxu0 %v2063
    %2201 = vmatprep.subr.mxu0 0.0
    %2202 = vmatpush1.msra.mxu0 %v2062
    %2203 = vmatprep.subr.mxu0 0.0
    %2204 = vmatpush1.msra.mxu0 %v2061
    %2205 = vmatprep.subr.mxu0 0.0
    %2206 = vmatpush1.msra.mxu0 %v2060
    %2207 = vmatprep.subr.mxu0 0.0
    %2208 = vmatpush1.msra.mxu0 %v2059
    %2209 = vmatprep.subr.mxu0 0.0
    %2210 = vmatpush1.msra.mxu0 %v2058
    %2211 = vmatprep.subr.mxu0 0.0
    %2212 = vmatpush2.msra.mxu0 %v2089
    %2213 = vmatprep.subr.mxu0 0.0
    %2214 = vmatpush2.msra.mxu0 %v2088
    %2215 = vmatprep.subr.mxu0 0.0
    %2216 = vmatpush2.msra.mxu0 %v2087
    %2217 = vmatprep.subr.mxu0 0.0
    %2218 = vmatpush2.msra.mxu0 %v2086
    %2219 = vmatprep.subr.mxu0 0.0
    %2220 = vmatpush2.msra.mxu0 %v2085
    %2221 = vmatprep.subr.mxu0 0.0
    %2222 = vmatpush2.msra.mxu0 %v2084
    %2223 = vmatprep.subr.mxu0 0.0
    %2224 = vmatpush2.msra.mxu0 %v2083
    %2225 = vmatprep.subr.mxu0 0.0
    %2226 = vmatpush2.msra.mxu0 %v2082
    %2227 = vmatprep.subr.mxu0 0.0
    %2228 = vmatpush2.msra.mxu0 %v2081
    %2229 = vmatprep.subr.mxu0 0.0
    %2230 = vmatpush2.msra.mxu0 %v2080
    %2231 = vmatprep.subr.mxu0 0.0
    %2232 = vmatpush2.msra.mxu0 %v2079
    %2233 = vmatprep.subr.mxu0 0.0
    %2234 = vmatpush2.msra.mxu0 %v2078
    %2235 = vmatprep.subr.mxu0 0.0
    %2236 = vmatpush2.msra.mxu0 %v2077
    %2237 = vmatprep.subr.mxu0 0.0
    %2238 = vmatpush2.msra.mxu0 %v2076
    %2239 = vmatprep.subr.mxu0 0.0
    %2240 = vmatpush2.msra.mxu0 %v2075
    %2241 = vmatprep.subr.mxu0 0.0
    %2242 = vmatpush2.msra.mxu0 %v2074
    %2243 = vmatprep.mubr.f32.mxu0 %v1970
    %2244 = vmatmul.mubr.f32.gmra.mxu0 %v1969
    %v2245 = vpop.f32.mrf.mxu0
    %v2246 = vadd.f32 %v2172, %v2245
    %v2247 = vpop.f32.mrf.mxu0
    %2248 = vdwg.mxu0
    %2249 = vmatprep.subr.mxu0 0.0
    %2250 = vmatpush1.msra.mxu0 0.0
    %2251 = vmatprep.subr.mxu0 0.0
    %2252 = vmatpush1.msra.mxu0 0.0
    %2253 = vmatprep.subr.mxu0 0.0
    %2254 = vmatpush1.msra.mxu0 0.0
    %2255 = vmatprep.subr.mxu0 0.0
    %2256 = vmatpush1.msra.mxu0 0.0
    %2257 = vmatprep.subr.mxu0 0.0
    %2258 = vmatpush1.msra.mxu0 0.0
    %2259 = vmatprep.subr.mxu0 0.0
    %2260 = vmatpush1.msra.mxu0 0.0
    %2261 = vmatprep.subr.mxu0 0.0
    %2262 = vmatpush1.msra.mxu0 0.0
    %2263 = vmatprep.subr.mxu0 0.0
    %2264 = vmatpush1.msra.mxu0 0.0
    %2265 = vmatprep.subr.mxu0 0.0
    %2266 = vmatpush1.msra.mxu0 %v2097
    %2267 = vmatprep.subr.mxu0 0.0
    %2268 = vmatpush1.msra.mxu0 %v2096
    %2269 = vmatprep.subr.mxu0 0.0
    %2270 = vmatpush1.msra.mxu0 %v2095
    %2271 = vmatprep.subr.mxu0 0.0
    %2272 = vmatpush1.msra.mxu0 %v2094
    %2273 = vmatprep.subr.mxu0 0.0
    %2274 = vmatpush1.msra.mxu0 %v2093
    %2275 = vmatprep.subr.mxu0 0.0
    %2276 = vmatpush1.msra.mxu0 %v2092
    %2277 = vmatprep.subr.mxu0 0.0
    %2278 = vmatpush1.msra.mxu0 %v2091
    %2279 = vmatprep.subr.mxu0 0.0
    %2280 = vmatpush1.msra.mxu0 %v2090
    %2281 = vmatprep.subr.mxu0 0.0
    %2282 = vmatpush2.msra.mxu0 0.0
    %2283 = vmatprep.subr.mxu0 0.0
    %2284 = vmatpush2.msra.mxu0 0.0
    %2285 = vmatprep.subr.mxu0 0.0
    %2286 = vmatpush2.msra.mxu0 0.0
    %2287 = vmatprep.subr.mxu0 0.0
    %2288 = vmatpush2.msra.mxu0 0.0
    %2289 = vmatprep.subr.mxu0 0.0
    %2290 = vmatpush2.msra.mxu0 0.0
    %2291 = vmatprep.subr.mxu0 0.0
    %2292 = vmatpush2.msra.mxu0 0.0
    %2293 = vmatprep.subr.mxu0 0.0
    %2294 = vmatpush2.msra.mxu0 0.0
    %2295 = vmatprep.subr.mxu0 0.0
    %2296 = vmatpush2.msra.mxu0 0.0
    %2297 = vmatprep.subr.mxu0 0.0
    %2298 = vmatpush2.msra.mxu0 0.0
    %2299 = vmatprep.subr.mxu0 0.0
    %2300 = vmatpush2.msra.mxu0 0.0
    %2301 = vmatprep.subr.mxu0 0.0
    %2302 = vmatpush2.msra.mxu0 0.0
    %2303 = vmatprep.subr.mxu0 0.0
    %2304 = vmatpush2.msra.mxu0 0.0
    %2305 = vmatprep.subr.mxu0 0.0
    %2306 = vmatpush2.msra.mxu0 0.0
    %2307 = vmatprep.subr.mxu0 0.0
    %2308 = vmatpush2.msra.mxu0 0.0
    %2309 = vmatprep.subr.mxu0 0.0
    %2310 = vmatpush2.msra.mxu0 0.0
    %2311 = vmatprep.subr.mxu0 0.0
    %2312 = vmatpush2.msra.mxu0 0.0
    %2313 = vmatprep.mubr.f32.mxu0 0.0
    %2314 = vmatmul.mubr.f32.gmra.mxu0 %v2177
    %v2315 = vpop.f32.mrf.mxu0
    %v2316 = vadd.f32 %v2246, %v2315
    %v2317 = vpop.f32.mrf.mxu0
    %2318 = vdwg.mxu0
    %v2319 = vld [vmem:[%s7] sm:$0x1]
    %v2321 = vlaneseq
    %v2322 = vshrl.u32 %v2321, 7
    %v2323 = vsub.s32 0, %v2322
    %v2324 = vrot.slane %v2319, %v2323
    %v2326 = vadd.f32 %v2316, %v2324
    %v2327 = vlaneseq
    %v2328 = vand.u32 %v2327, 127
    %vm2329 = vcmp.lt.s32.totalorder %v2328, 9
    %v2330 = vsel %vm2329, %v2326, -1e+30
    %vm2331 = vcmask 123904
    %v2332 = vsel %vm2331, %v2330, -inf
    %2333 = vmax.xlane.f32.xlu0 %v2332
    %v2334 = vpop.xlane.xlu0 %2333
    %v2335 = vsub.f32 %v2330, %v2334
    %v2336 = vmul.f32 %v2335, 1.442695
    %v2337 = vpow.pop %v2336
    %v2338 = vsel %vm2329, %v2337, 0.0
    %v2339 = vsel %vm2331, %v2338, 0.0
    %2340 = vadd.xlane.f32.xlu0 %v2339
    %v2341 = vpop.xlane.xlu0 %2340
    %v2342 = vrcp.pop %v2341
    %v2343 = vmul.f32 %v2341, %v2342
    %v2344 = vsub.f32 2.0, %v2343
    %v2345 = vmul.f32 %v2342, %v2344
    %v2346 = vmul.f32 %v2338, %v2345
    %v2347 = vtanh.pop %v2326
    %vm2348 = vcmp.eq.s32.totalorder %v2328, 9
    %v2349 = vsel %vm2348, %v2347, 0.0
    %v2350 = vsel %vm2329, %v2346, %v2349
    %2351 = vst.msk [vmem:[#allocation2] sm:$0x3] %vm2331, %v2350
    // Predicated region
    $region34: #{tpu_custom_call.1} parent=1 // pred_check
      _
    $region35: #{tpu_custom_call.1} parent=1 // pred_check_branch
      %2353 = sbr.rel (0) target = $region37
    $region36: #{tpu_custom_call.1} parent=1 // pred_region
      %s2355 = ssub.s32 32, 32
      %2356 = vsyncadd [#allocation3], %s2355
      %s2358 = sshll.u32 [#allocation2], 4
      %s2359 = int_to_ptr.vmem [resolvable:$true] %s2358
      %2361 = dma.vmem_to_hbm [thread:$0]  %s2359, 32, %s8, [#allocation3]
    $region37: #{tpu_custom_call.1} parent=1 // pred_fallthru
      _
    // Predicated region
    $region38: #{tpu_custom_call.1} parent=1 // pred_check
      _
    $region39: #{tpu_custom_call.1} parent=1 // pred_check_branch
      %2363 = sbr.rel (0) target = $region41
    $region40: #{tpu_custom_call.1} parent=1 // pred_region
      %2364 = dma.done [#allocation3], 32
    $region41: #{tpu_custom_call.1} parent=1 // pred_fallthru
      _
    %2365 = vsyncpa [#allocation3], 1

</llo_original>
